<compile_context>
chip_gen: v6e
topology: v6e:2x2x1
jax: 0.10.0
libtpu: 0.0.40
codegen_flags: <defaults>
</compile_context>

<pallas_src>
import functools

import jax
import jax.numpy as jnp
from jax import lax
from jax.experimental import pallas as pl
from jax.experimental.pallas import tpu as pltpu


# ---------------------------------------------------------------------------
# Host-side helpers
# ---------------------------------------------------------------------------
def _pad128(c):
    return ((c + 127) // 128) * 128


def _hw_budget(s):
    """(n_tile_target, vmem_limit_bytes) based on the chip's VMEM capacity."""
    try:
        cap = int(pltpu.get_tpu_info().vmem_capacity_bytes)
    except Exception:  # pragma: no cover - conservative default
        cap = 128 * 1024 * 1024
    if cap >= 100 * 1024 * 1024:          # v5e / v6e class: 128 MiB VMEM
        return 512, 96 * 1024 * 1024
    # v7x class: 64 MiB VMEM -> smaller tiles for big S, tighter scoped limit
    target = 256 if s >= 2048 else 512
    return target, min(48 * 1024 * 1024, (cap * 3) // 4)


def _choose_tiles(n, target):
    """Pick a sublane-aligned tile <= target and the padded N it divides."""
    n8 = ((n + 7) // 8) * 8
    if n8 <= target:
        return n8, n8
    t = (target // 8) * 8
    best = None
    while t >= 128:                       # prefer a divisor of n8 (no padding)
        if n8 % t == 0:
            best = t
            break
        t -= 8
    if best is None:
        best = (target // 8) * 8
    n_pad = ((n8 + best - 1) // best) * best
    return best, n_pad


# ---------------------------------------------------------------------------
# Fused kernel: interpolation + (points1 ++ interp) + folded-BN MLP stack
# ---------------------------------------------------------------------------
def _fused_fp_kernel(*refs, n_layers, k, s_pow2, has_points1, do_interp,
                     fold_interp):
    idx = 0
    if do_interp:
        xyz1_ref, xyz2t_ref = refs[idx], refs[idx + 1]
        idx += 2
    feat2_ref = refs[idx]            # pb (= points2 @ W_b) if folded, else points2
    idx += 1
    pts1_ref = None
    if has_points1:
        pts1_ref = refs[idx]
        idx += 1
    wa_ref = None
    if has_points1:
        wa_ref = refs[idx]
        idx += 1
    wb_ref = None
    if not fold_interp:
        wb_ref = refs[idx]
        idx += 1
    sh0_ref = refs[idx]
    idx += 1
    tail = []
    for _ in range(n_layers - 1):
        tail.append((refs[idx], refs[idx + 1]))
        idx += 2
    out_ref = refs[idx]

    tn = out_ref.shape[1]
    c0_pad = sh0_ref.shape[-1]

    # ----------------- k-NN inverse-distance interpolation -----------------
    if do_interp:
        x1 = xyz1_ref[0].astype(jnp.float32)        # (TN, C)
        x2t = xyz2t_ref[0].astype(jnp.float32)      # (C,  S)
        ncoord = x1.shape[-1]
        # Squared distances on the VPU (keeps the MXU free for the MLP).
        d = None
        for c in range(ncoord):
            diff = x1[:, c:c + 1] - x2t[c:c + 1, :]     # (TN, S) broadcast
            sq = diff * diff
            d = sq if d is None else d + sq
        recip = pl.reciprocal(d + 1e-4, approx=True)    # module eps = 1e-4
        # Pack the column index into the low bits of the non-negative f32
        # distance bits: one int32 cross-lane min per k-step -> value+argmin,
        # ties broken on the smaller column index.
        col = lax.broadcasted_iota(jnp.int32, d.shape, 1)
        keys0 = (pltpu.bitcast(d, jnp.int32) & jnp.int32(-s_pow2)) | col
        int_max = jnp.int32(2 ** 31 - 1)

        def body(_, carry):
            keys, w_acc = carry
            min_key = jnp.min(keys, axis=1, keepdims=True)   # (TN, 1)
            sel = keys == min_key                            # exactly one / row
            w_acc = w_acc + jnp.where(sel, recip, 0.0)
            keys = jnp.where(sel, int_max, keys)
            return keys, w_acc

        _, w = lax.fori_loop(0, k, body, (keys0, jnp.zeros_like(d)),
                             unroll=True)
        w = w * pl.reciprocal(jnp.sum(w, axis=1, keepdims=True), approx=True)
        w16 = w.astype(jnp.bfloat16)
        if fold_interp:
            # interpolation folded into the first conv: w @ (points2 @ W_b)
            y0 = jnp.dot(w16, feat2_ref[0],
                         preferred_element_type=jnp.float32)     # (TN, c0_pad)
        else:
            interp = jnp.dot(w16, feat2_ref[0].astype(jnp.bfloat16),
                             preferred_element_type=jnp.float32)  # (TN, D2)
            y0 = jnp.dot(interp.astype(jnp.bfloat16), wb_ref[...],
                         preferred_element_type=jnp.float32)
    else:
        # S == 1: PyTorch repeats points2 across N; conv already folded host-side
        y0 = jnp.broadcast_to(feat2_ref[0].astype(jnp.float32), (tn, c0_pad))

    # -------- fused MLP stack: (1x1 conv -> folded BN -> ReLU) x L --------
    if has_points1:
        y0 = y0 + jnp.dot(pts1_ref[0].astype(jnp.bfloat16), wa_ref[...],
                          preferred_element_type=jnp.float32)
    x = jnp.maximum(y0 + sh0_ref[...], 0.0)

    for (w_ref, sh_ref) in tail:
        y = jnp.dot(x.astype(jnp.bfloat16), w_ref[...],
                    preferred_element_type=jnp.float32)
        x = jnp.maximum(y + sh_ref[...], 0.0)

    out_ref[0] = x.astype(out_ref.dtype)


# ---------------------------------------------------------------------------
# Parameter init (PyTorch-style Conv1d(k=1) + BatchNorm1d stack) and forward
# ---------------------------------------------------------------------------
def init_params(key, in_channel, mlp):
    params = []
    last = in_channel
    for out in mlp:
        key, k1, k2, k3, k4, k5 = jax.random.split(key, 6)
        w = 0.1 * jax.random.normal(k1, (out, last), jnp.float32)   # conv weight
        b = 0.1 * jax.random.normal(k2, (out,), jnp.float32)        # conv bias
        gamma = 1.0 + 0.1 * jax.random.normal(k3, (out,), jnp.float32)
        beta = 0.1 * jax.random.normal(k4, (out,), jnp.float32)
        run_mean = 0.1 * jax.random.normal(k5, (out,), jnp.float32)
        run_var = jnp.ones((out,), jnp.float32)
        params.append((w, b, gamma, beta, run_mean, run_var))
        last = out
    return params


def pointnet_fp_forward(xyz1, xyz2, points1, points2, params,
                        interpolate_neighbors, out_dtype=jnp.float32):
    """xyz1:[B,N,C] xyz2:[B,S,C] points1:[B,N,D1]|None points2:[B,S,D2]."""
    assert len(params) >= 1
    B, N, C = xyz1.shape
    S = xyz2.shape[1]
    D2 = points2.shape[-1]
    has_points1 = points1 is not None
    D1 = points1.shape[-1] if has_points1 else 0
    do_interp = S > 1
    k = max(1, min(int(interpolate_neighbors), S))
    s_pow2 = (1 << (S - 1).bit_length()) if S > 1 else 1

    n_target, vmem_limit = _hw_budget(S)
    tn, n_pad = _choose_tiles(N, n_target)
    n_tiles = n_pad // tn
    # v7x has 2 TensorCores per chip: make sure the parallel grid has >= 2 steps
    if B * n_tiles < 2 and n_pad >= 16:
        tn = ((n_pad // 2 + 7) // 8) * 8
        n_pad = 2 * tn
        n_tiles = 2

    # ---- fold BN (eval mode) + scale into conv weights; pad channels ----
    eps = 1e-5
    couts = [int(w.shape[0]) for (w, *_r) in params]
    c_pads = [_pad128(c) for c in couts]
    folded = []
    for (w, b, gamma, beta, rm, rv) in params:
        g = gamma / jnp.sqrt(rv + eps)
        folded.append((w * g[:, None], (b - rm) * g + beta))

    c0, c0_pad = couts[0], c_pads[0]
    w0, sh0 = folded[0]
    wa_f32 = None
    if has_points1:
        wa_f32 = jnp.pad(w0[:, :D1].T, ((0, 0), (0, c0_pad - c0)))   # (D1, c0p)
    wb_f32 = jnp.pad(w0[:, D1:].T, ((0, 0), (0, c0_pad - c0)))       # (D2, c0p)
    sh0_p = jnp.pad(sh0, (0, c0_pad - c0)).reshape(1, c0_pad).astype(jnp.float32)

    # Fold interpolation into the first conv when it reduces per-tile MACs.
    fold_interp = (not do_interp) or (S * c0_pad <= S * D2 + D2 * c0_pad)
    cL_pad = c_pads[-1]

    def _build_and_call(single_buffer_consts):
        const_kw = (dict(pipeline_mode=pl.Buffered(1))
                    if single_buffer_consts else {})
        inputs, in_specs = [], []
        if do_interp:
            xyz1_p = jnp.pad(xyz1, ((0, 0), (0, n_pad - N), (0, 0)))
            inputs.append(xyz1_p.astype(jnp.float32))
            in_specs.append(pl.BlockSpec((1, tn, C), lambda b_, t_: (b_, t_, 0)))
            xyz2t = jnp.transpose(xyz2, (0, 2, 1)).astype(jnp.float32)
            inputs.append(xyz2t)
            in_specs.append(pl.BlockSpec((1, C, S), lambda b_, t_: (b_, 0, 0)))
        if fold_interp:
            pb = jnp.einsum('bsd,dc->bsc', points2.astype(jnp.float32), wb_f32)
            pb = pb.astype(jnp.bfloat16 if do_interp else jnp.float32)
            inputs.append(pb)
            in_specs.append(pl.BlockSpec((1, S, c0_pad),
                                         lambda b_, t_: (b_, 0, 0)))
        else:
            inputs.append(points2.astype(jnp.float32))
            in_specs.append(pl.BlockSpec((1, S, D2), lambda b_, t_: (b_, 0, 0)))
        if has_points1:
            p1_p = jnp.pad(points1, ((0, 0), (0, n_pad - N), (0, 0)))
            inputs.append(p1_p.astype(jnp.float32))
            in_specs.append(pl.BlockSpec((1, tn, D1), lambda b_, t_: (b_, t_, 0)))
        # --- layer 0 weights (grid-invariant -> single-buffered) ---
        if has_points1:
            inputs.append(wa_f32.astype(jnp.bfloat16))
            in_specs.append(pl.BlockSpec((D1, c0_pad), lambda b_, t_: (0, 0),
                                         **const_kw))
        if not fold_interp:
            inputs.append(wb_f32.astype(jnp.bfloat16))
            in_specs.append(pl.BlockSpec((D2, c0_pad), lambda b_, t_: (0, 0),
                                         **const_kw))
        inputs.append(sh0_p)
        in_specs.append(pl.BlockSpec((1, c0_pad), lambda b_, t_: (0, 0),
                                     **const_kw))
        # --- remaining layers ---
        for li in range(1, len(params)):
            cin, cin_pad = couts[li - 1], c_pads[li - 1]
            ci, ci_pad = couts[li], c_pads[li]
            w_f, sh = folded[li]
            wt = jnp.pad(w_f.T, ((0, cin_pad - cin),
                                 (0, ci_pad - ci))).astype(jnp.bfloat16)
            sh_p = jnp.pad(sh, (0, ci_pad - ci)).reshape(1, ci_pad)
            inputs.append(wt)
            in_specs.append(pl.BlockSpec((cin_pad, ci_pad),
                                         lambda b_, t_: (0, 0), **const_kw))
            inputs.append(sh_p.astype(jnp.float32))
            in_specs.append(pl.BlockSpec((1, ci_pad), lambda b_, t_: (0, 0),
                                         **const_kw))

        kern = functools.partial(
            _fused_fp_kernel, n_layers=len(params), k=k, s_pow2=s_pow2,
            has_points1=has_points1, do_interp=do_interp,
            fold_interp=fold_interp)

        return pl.pallas_call(
            kern,
            out_shape=jax.ShapeDtypeStruct((B, n_pad, cL_pad), out_dtype),
            grid=(B, n_tiles),
            in_specs=in_specs,
            out_specs=pl.BlockSpec((1, tn, cL_pad), lambda b_, t_: (b_, t_, 0)),
            compiler_params=pltpu.CompilerParams(
                dimension_semantics=("parallel", "parallel"),
                vmem_limit_bytes=vmem_limit),
        )(*inputs)

    try:
        out = jax.block_until_ready(_build_and_call(True))
    except Exception:                      # fall back without Buffered(1)
        out = _build_and_call(False)

    if n_pad != N or cL_pad != couts[-1]:
        out = out[:, :N, :couts[-1]]
    return out


# ---------------------------------------------------------------------------
# Pure-JAX reference (mirrors the PyTorch module, eval-mode BN)
# ---------------------------------------------------------------------------
def _reference_forward(xyz1, xyz2, points1, points2, params, k_nn):
    B, N, _ = xyz1.shape
    S = xyz2.shape[1]
    if S == 1:
        interp = jnp.broadcast_to(points2, (B, N, points2.shape[-1]))
    else:
        kk = min(int(k_nn), S)
        d = jnp.sum((xyz1[:, :, None, :] - xyz2[:, None, :, :]) ** 2, axis=-1)
        idx = jnp.argsort(d, axis=-1)[..., :kk]                      # (B,N,k)
        dk = jnp.take_along_axis(d, idx, axis=-1)
        recip = 1.0 / (dk + 1e-4)
        wgt = recip / jnp.sum(recip, axis=-1, keepdims=True)
        gathered = jax.vmap(lambda p, i: p[i])(points2, idx)         # (B,N,k,D2)
        interp = jnp.sum(gathered * wgt[..., None], axis=2)
    x = jnp.concatenate([points1, interp], -1) if points1 is not None else interp
    for (w, b, gamma, beta, rm, rv) in params:
        y = jnp.einsum('bnc,oc->bno', x, w) + b
        y = gamma * (y - rm) * lax.rsqrt(rv + 1e-5) + beta
        x = jnp.maximum(y, 0.0)
    return x


if __name__ == "__main__":
    key = jax.random.PRNGKey(0)
    B, N, S, C = 2, 64, 32, 3            # small shapes
    D1, D2 = 8, 8                        # feature dims of points1 / points2
    k_nn = 8                             # interpolate_neighbors (<= S)
    mlp = [32, 16]

    ks = jax.random.split(key, 6)
    xyz1 = jax.random.normal(ks[0], (B, N, C), jnp.float32)
    xyz2 = jax.random.normal(ks[1], (B, S, C), jnp.float32)
    points1 = jax.random.normal(ks[2], (B, N, D1), jnp.float32)
    points2 = jax.random.normal(ks[3], (B, S, D2), jnp.float32)

    # Case 1: S > 1 with points1 (interpolation + concat + MLP)
    params = init_params(ks[4], D1 + D2, mlp)
    out = pointnet_fp_forward(xyz1, xyz2, points1, points2, params, k_nn)
    out = jax.block_until_ready(out)
    assert out.shape == (B, N, mlp[-1]), out.shape
    assert bool(jnp.all(jnp.isfinite(out)))
    ref = _reference_forward(xyz1, xyz2, points1, points2, params, k_nn)
    assert float(jnp.max(jnp.abs(out - ref))) < 8e-2

    # Case 2: S == 1, points1 = None (repeat branch, folded first conv)
    params2 = init_params(ks[5], D2, mlp)
    out2 = pointnet_fp_forward(xyz1, xyz2[:, :1], None, points2[:, :1],
                               params2, k_nn)
    out2 = jax.block_until_ready(out2)
    assert out2.shape == (B, N, mlp[-1]), out2.shape
    assert bool(jnp.all(jnp.isfinite(out2)))
    ref2 = _reference_forward(xyz1, xyz2[:, :1], None, points2[:, :1],
                              params2, k_nn)
    assert float(jnp.max(jnp.abs(out2 - ref2))) < 8e-2

    print("KERNEL_OK")
</pallas_src>

<mosaic_0001>
module attributes {stable_mosaic.version = 11 : i64} {
  func.func @_fused_fp_kernel(%arg0: i32, %arg1: i32, %arg2: memref<1x64x3xf32, #tpu.memory_space<vmem>>, %arg3: memref<1x3x32xf32, #tpu.memory_space<vmem>>, %arg4: memref<1x32x8xf32, #tpu.memory_space<vmem>>, %arg5: memref<1x64x8xf32, #tpu.memory_space<vmem>>, %arg6: memref<8x128xbf16, #tpu.memory_space<vmem>>, %arg7: memref<8x128xbf16, #tpu.memory_space<vmem>>, %arg8: memref<1x128xf32, #tpu.memory_space<vmem>>, %arg9: memref<128x128xbf16, #tpu.memory_space<vmem>>, %arg10: memref<1x128xf32, #tpu.memory_space<vmem>>, %arg11: memref<1x64x128xf32, #tpu.memory_space<vmem>>) attributes {dimension_semantics = [#tpu.dimension_semantics<parallel>, #tpu.dimension_semantics<parallel>], iteration_bounds = array<i64: 2, 1>, scalar_prefetch = 0 : i64, scratch_operands = 0 : i64, tpu.core_type = #tpu.core_type<tc>, window_params = [{transform_indices = @transform_0, window_bounds = array<i64: 1, 64, 3>}, {transform_indices = @transform_1, window_bounds = array<i64: 1, 3, 32>}, {transform_indices = @transform_2, window_bounds = array<i64: 1, 32, 8>}, {transform_indices = @transform_3, window_bounds = array<i64: 1, 64, 8>}, {pipeline_mode = #tpu.pipeline_mode<synchronous>, transform_indices = @transform_4, window_bounds = array<i64: 8, 128>}, {pipeline_mode = #tpu.pipeline_mode<synchronous>, transform_indices = @transform_5, window_bounds = array<i64: 8, 128>}, {pipeline_mode = #tpu.pipeline_mode<synchronous>, transform_indices = @transform_6, window_bounds = array<i64: 1, 128>}, {pipeline_mode = #tpu.pipeline_mode<synchronous>, transform_indices = @transform_7, window_bounds = array<i64: 128, 128>}, {pipeline_mode = #tpu.pipeline_mode<synchronous>, transform_indices = @transform_8, window_bounds = array<i64: 1, 128>}, {transform_indices = @transform_9, window_bounds = array<i64: 1, 64, 128>}]} {
    %c0 = arith.constant 0 : index
    %c0_0 = arith.constant 0 : index
    %c0_1 = arith.constant 0 : index
    %0 = vector.load %arg2[%c0, %c0_0, %c0_1] : memref<1x64x3xf32, #tpu.memory_space<vmem>>, vector<1x64x3xf32>
    %1 = vector.shape_cast %0 : vector<1x64x3xf32> to vector<64x3xf32>
    %c0_2 = arith.constant 0 : index
    %c0_3 = arith.constant 0 : index
    %c0_4 = arith.constant 0 : index
    %2 = vector.load %arg3[%c0_2, %c0_3, %c0_4] : memref<1x3x32xf32, #tpu.memory_space<vmem>>, vector<1x3x32xf32>
    %3 = vector.shape_cast %2 : vector<1x3x32xf32> to vector<3x32xf32>
    %4 = vector.extract_strided_slice %1 {offsets = [0, 0], sizes = [64, 1], strides = [1, 1]} : vector<64x3xf32> to vector<64x1xf32>
    %5 = vector.extract_strided_slice %3 {offsets = [0, 0], sizes = [1, 32], strides = [1, 1]} : vector<3x32xf32> to vector<1x32xf32>
    %6 = vector.broadcast %4 : vector<64x1xf32> to vector<64x32xf32>
    %7 = vector.broadcast %5 : vector<1x32xf32> to vector<64x32xf32>
    %8 = arith.subf %6, %7 : vector<64x32xf32>
    %9 = arith.mulf %8, %8 : vector<64x32xf32>
    %10 = vector.extract_strided_slice %1 {offsets = [0, 1], sizes = [64, 1], strides = [1, 1]} : vector<64x3xf32> to vector<64x1xf32>
    %11 = vector.extract_strided_slice %3 {offsets = [1, 0], sizes = [1, 32], strides = [1, 1]} : vector<3x32xf32> to vector<1x32xf32>
    %12 = vector.broadcast %10 : vector<64x1xf32> to vector<64x32xf32>
    %13 = vector.broadcast %11 : vector<1x32xf32> to vector<64x32xf32>
    %14 = arith.subf %12, %13 : vector<64x32xf32>
    %15 = arith.mulf %14, %14 : vector<64x32xf32>
    %16 = arith.addf %9, %15 : vector<64x32xf32>
    %17 = vector.extract_strided_slice %1 {offsets = [0, 2], sizes = [64, 1], strides = [1, 1]} : vector<64x3xf32> to vector<64x1xf32>
    %18 = vector.extract_strided_slice %3 {offsets = [2, 0], sizes = [1, 32], strides = [1, 1]} : vector<3x32xf32> to vector<1x32xf32>
    %19 = vector.broadcast %17 : vector<64x1xf32> to vector<64x32xf32>
    %20 = vector.broadcast %18 : vector<1x32xf32> to vector<64x32xf32>
    %21 = arith.subf %19, %20 : vector<64x32xf32>
    %22 = arith.mulf %21, %21 : vector<64x32xf32>
    %23 = arith.addf %16, %22 : vector<64x32xf32>
    %cst = arith.constant 9.99999974E-5 : f32
    %24 = vector.broadcast %cst : f32 to vector<64x32xf32>
    %25 = arith.addf %23, %24 : vector<64x32xf32>
    %26 = tpu.reciprocal %25 {approx = true} : vector<64x32xf32> -> vector<64x32xf32>
    %27 = tpu.iota {dimensions = array<i32: 1>} : vector<64x32xi32>
    %28 = tpu.bitcast %23 : vector<64x32xf32> -> vector<64x32xi32>
    %c-32_i32 = arith.constant -32 : i32
    %29 = vector.broadcast %c-32_i32 : i32 to vector<64x32xi32>
    %30 = arith.andi %28, %29 : vector<64x32xi32>
    %31 = arith.ori %30, %27 : vector<64x32xi32>
    %cst_5 = arith.constant 0.000000e+00 : f32
    %32 = vector.broadcast %cst_5 : f32 to vector<64x32xf32>
    %c2147483647_i32 = arith.constant 2147483647 : i32
    %c0_i32 = arith.constant 0 : i32
    %cst_6 = arith.constant dense<2147483647> : vector<64xi32>
    %33 = vector.multi_reduction <minsi>, %31, %cst_6 [1] : vector<64x32xi32> to vector<64xi32>
    %34 = vector.shape_cast %33 : vector<64xi32> to vector<64x1xi32>
    %35 = vector.broadcast %34 : vector<64x1xi32> to vector<64x32xi32>
    %36 = arith.cmpi eq, %31, %35 : vector<64x32xi32>
    %cst_7 = arith.constant 0.000000e+00 : f32
    %37 = vector.broadcast %cst_7 : f32 to vector<64x32xf32>
    %38 = arith.select %36, %26, %37 : vector<64x32xi1>, vector<64x32xf32>
    %39 = arith.addf %32, %38 : vector<64x32xf32>
    %40 = vector.broadcast %c2147483647_i32 : i32 to vector<64x32xi32>
    %41 = arith.select %36, %40, %31 : vector<64x32xi1>, vector<64x32xi32>
    %c1_i32 = arith.constant 1 : i32
    %cst_8 = arith.constant dense<2147483647> : vector<64xi32>
    %42 = vector.multi_reduction <minsi>, %41, %cst_8 [1] : vector<64x32xi32> to vector<64xi32>
    %43 = vector.shape_cast %42 : vector<64xi32> to vector<64x1xi32>
    %44 = vector.broadcast %43 : vector<64x1xi32> to vector<64x32xi32>
    %45 = arith.cmpi eq, %41, %44 : vector<64x32xi32>
    %cst_9 = arith.constant 0.000000e+00 : f32
    %46 = vector.broadcast %cst_9 : f32 to vector<64x32xf32>
    %47 = arith.select %45, %26, %46 : vector<64x32xi1>, vector<64x32xf32>
    %48 = arith.addf %39, %47 : vector<64x32xf32>
    %49 = vector.broadcast %c2147483647_i32 : i32 to vector<64x32xi32>
    %50 = arith.select %45, %49, %41 : vector<64x32xi1>, vector<64x32xi32>
    %c2_i32 = arith.constant 2 : i32
    %cst_10 = arith.constant dense<2147483647> : vector<64xi32>
    %51 = vector.multi_reduction <minsi>, %50, %cst_10 [1] : vector<64x32xi32> to vector<64xi32>
    %52 = vector.shape_cast %51 : vector<64xi32> to vector<64x1xi32>
    %53 = vector.broadcast %52 : vector<64x1xi32> to vector<64x32xi32>
    %54 = arith.cmpi eq, %50, %53 : vector<64x32xi32>
    %cst_11 = arith.constant 0.000000e+00 : f32
    %55 = vector.broadcast %cst_11 : f32 to vector<64x32xf32>
    %56 = arith.select %54, %26, %55 : vector<64x32xi1>, vector<64x32xf32>
    %57 = arith.addf %48, %56 : vector<64x32xf32>
    %58 = vector.broadcast %c2147483647_i32 : i32 to vector<64x32xi32>
    %59 = arith.select %54, %58, %50 : vector<64x32xi1>, vector<64x32xi32>
    %c3_i32 = arith.constant 3 : i32
    %cst_12 = arith.constant dense<2147483647> : vector<64xi32>
    %60 = vector.multi_reduction <minsi>, %59, %cst_12 [1] : vector<64x32xi32> to vector<64xi32>
    %61 = vector.shape_cast %60 : vector<64xi32> to vector<64x1xi32>
    %62 = vector.broadcast %61 : vector<64x1xi32> to vector<64x32xi32>
    %63 = arith.cmpi eq, %59, %62 : vector<64x32xi32>
    %cst_13 = arith.constant 0.000000e+00 : f32
    %64 = vector.broadcast %cst_13 : f32 to vector<64x32xf32>
    %65 = arith.select %63, %26, %64 : vector<64x32xi1>, vector<64x32xf32>
    %66 = arith.addf %57, %65 : vector<64x32xf32>
    %67 = vector.broadcast %c2147483647_i32 : i32 to vector<64x32xi32>
    %68 = arith.select %63, %67, %59 : vector<64x32xi1>, vector<64x32xi32>
    %c4_i32 = arith.constant 4 : i32
    %cst_14 = arith.constant dense<2147483647> : vector<64xi32>
    %69 = vector.multi_reduction <minsi>, %68, %cst_14 [1] : vector<64x32xi32> to vector<64xi32>
    %70 = vector.shape_cast %69 : vector<64xi32> to vector<64x1xi32>
    %71 = vector.broadcast %70 : vector<64x1xi32> to vector<64x32xi32>
    %72 = arith.cmpi eq, %68, %71 : vector<64x32xi32>
    %cst_15 = arith.constant 0.000000e+00 : f32
    %73 = vector.broadcast %cst_15 : f32 to vector<64x32xf32>
    %74 = arith.select %72, %26, %73 : vector<64x32xi1>, vector<64x32xf32>
    %75 = arith.addf %66, %74 : vector<64x32xf32>
    %76 = vector.broadcast %c2147483647_i32 : i32 to vector<64x32xi32>
    %77 = arith.select %72, %76, %68 : vector<64x32xi1>, vector<64x32xi32>
    %c5_i32 = arith.constant 5 : i32
    %cst_16 = arith.constant dense<2147483647> : vector<64xi32>
    %78 = vector.multi_reduction <minsi>, %77, %cst_16 [1] : vector<64x32xi32> to vector<64xi32>
    %79 = vector.shape_cast %78 : vector<64xi32> to vector<64x1xi32>
    %80 = vector.broadcast %79 : vector<64x1xi32> to vector<64x32xi32>
    %81 = arith.cmpi eq, %77, %80 : vector<64x32xi32>
    %cst_17 = arith.constant 0.000000e+00 : f32
    %82 = vector.broadcast %cst_17 : f32 to vector<64x32xf32>
    %83 = arith.select %81, %26, %82 : vector<64x32xi1>, vector<64x32xf32>
    %84 = arith.addf %75, %83 : vector<64x32xf32>
    %85 = vector.broadcast %c2147483647_i32 : i32 to vector<64x32xi32>
    %86 = arith.select %81, %85, %77 : vector<64x32xi1>, vector<64x32xi32>
    %c6_i32 = arith.constant 6 : i32
    %cst_18 = arith.constant dense<2147483647> : vector<64xi32>
    %87 = vector.multi_reduction <minsi>, %86, %cst_18 [1] : vector<64x32xi32> to vector<64xi32>
    %88 = vector.shape_cast %87 : vector<64xi32> to vector<64x1xi32>
    %89 = vector.broadcast %88 : vector<64x1xi32> to vector<64x32xi32>
    %90 = arith.cmpi eq, %86, %89 : vector<64x32xi32>
    %cst_19 = arith.constant 0.000000e+00 : f32
    %91 = vector.broadcast %cst_19 : f32 to vector<64x32xf32>
    %92 = arith.select %90, %26, %91 : vector<64x32xi1>, vector<64x32xf32>
    %93 = arith.addf %84, %92 : vector<64x32xf32>
    %94 = vector.broadcast %c2147483647_i32 : i32 to vector<64x32xi32>
    %95 = arith.select %90, %94, %86 : vector<64x32xi1>, vector<64x32xi32>
    %c7_i32 = arith.constant 7 : i32
    %cst_20 = arith.constant dense<2147483647> : vector<64xi32>
    %96 = vector.multi_reduction <minsi>, %95, %cst_20 [1] : vector<64x32xi32> to vector<64xi32>
    %97 = vector.shape_cast %96 : vector<64xi32> to vector<64x1xi32>
    %98 = vector.broadcast %97 : vector<64x1xi32> to vector<64x32xi32>
    %99 = arith.cmpi eq, %95, %98 : vector<64x32xi32>
    %cst_21 = arith.constant 0.000000e+00 : f32
    %100 = vector.broadcast %cst_21 : f32 to vector<64x32xf32>
    %101 = arith.select %99, %26, %100 : vector<64x32xi1>, vector<64x32xf32>
    %102 = arith.addf %93, %101 : vector<64x32xf32>
    %103 = vector.broadcast %c2147483647_i32 : i32 to vector<64x32xi32>
    %104 = arith.select %99, %103, %95 : vector<64x32xi1>, vector<64x32xi32>
    %cst_22 = arith.constant dense<0.000000e+00> : vector<64xf32>
    %105 = vector.multi_reduction <add>, %102, %cst_22 [1] : vector<64x32xf32> to vector<64xf32>
    %106 = vector.shape_cast %105 : vector<64xf32> to vector<64x1xf32>
    %107 = tpu.reciprocal %106 {approx = true} : vector<64x1xf32> -> vector<64x1xf32>
    %108 = vector.broadcast %107 : vector<64x1xf32> to vector<64x32xf32>
    %109 = arith.mulf %102, %108 : vector<64x32xf32>
    %110 = arith.truncf %109 : vector<64x32xf32> to vector<64x32xbf16>
    %c0_23 = arith.constant 0 : index
    %c0_24 = arith.constant 0 : index
    %c0_25 = arith.constant 0 : index
    %111 = vector.load %arg4[%c0_23, %c0_24, %c0_25] : memref<1x32x8xf32, #tpu.memory_space<vmem>>, vector<1x32x8xf32>
    %112 = vector.shape_cast %111 : vector<1x32x8xf32> to vector<32x8xf32>
    %113 = arith.truncf %112 : vector<32x8xf32> to vector<32x8xbf16>
    %cst_26 = arith.constant dense<0.000000e+00> : vector<64x8xf32>
    %114 = tpu.matmul %110, %113, %cst_26 {dimension_numbers = #tpu.dot_dimension_numbers<[1], [0], [0], [1], [0, 0, 1, 1], [], []>} : vector<64x32xbf16>, vector<32x8xbf16>, vector<64x8xf32> -> vector<64x8xf32>
    %115 = arith.truncf %114 : vector<64x8xf32> to vector<64x8xbf16>
    %c0_27 = arith.constant 0 : index
    %c0_28 = arith.constant 0 : index
    %116 = vector.load %arg7[%c0_27, %c0_28] : memref<8x128xbf16, #tpu.memory_space<vmem>>, vector<8x128xbf16>
    %cst_29 = arith.constant dense<0.000000e+00> : vector<64x128xf32>
    %117 = tpu.matmul %115, %116, %cst_29 {dimension_numbers = #tpu.dot_dimension_numbers<[1], [0], [0], [1], [0, 0, 1, 1], [], []>} : vector<64x8xbf16>, vector<8x128xbf16>, vector<64x128xf32> -> vector<64x128xf32>
    %c0_30 = arith.constant 0 : index
    %c0_31 = arith.constant 0 : index
    %c0_32 = arith.constant 0 : index
    %118 = vector.load %arg5[%c0_30, %c0_31, %c0_32] : memref<1x64x8xf32, #tpu.memory_space<vmem>>, vector<1x64x8xf32>
    %119 = vector.shape_cast %118 : vector<1x64x8xf32> to vector<64x8xf32>
    %120 = arith.truncf %119 : vector<64x8xf32> to vector<64x8xbf16>
    %c0_33 = arith.constant 0 : index
    %c0_34 = arith.constant 0 : index
    %121 = vector.load %arg6[%c0_33, %c0_34] : memref<8x128xbf16, #tpu.memory_space<vmem>>, vector<8x128xbf16>
    %cst_35 = arith.constant dense<0.000000e+00> : vector<64x128xf32>
    %122 = tpu.matmul %120, %121, %cst_35 {dimension_numbers = #tpu.dot_dimension_numbers<[1], [0], [0], [1], [0, 0, 1, 1], [], []>} : vector<64x8xbf16>, vector<8x128xbf16>, vector<64x128xf32> -> vector<64x128xf32>
    %123 = arith.addf %117, %122 : vector<64x128xf32>
    %c0_36 = arith.constant 0 : index
    %c0_37 = arith.constant 0 : index
    %124 = vector.load %arg8[%c0_36, %c0_37] : memref<1x128xf32, #tpu.memory_space<vmem>>, vector<1x128xf32>
    %125 = vector.broadcast %124 : vector<1x128xf32> to vector<64x128xf32>
    %126 = arith.addf %123, %125 : vector<64x128xf32>
    %cst_38 = arith.constant 0.000000e+00 : f32
    %127 = vector.broadcast %cst_38 : f32 to vector<64x128xf32>
    %128 = arith.maximumf %126, %127 : vector<64x128xf32>
    %129 = arith.truncf %128 : vector<64x128xf32> to vector<64x128xbf16>
    %c0_39 = arith.constant 0 : index
    %c0_40 = arith.constant 0 : index
    %130 = vector.load %arg9[%c0_39, %c0_40] : memref<128x128xbf16, #tpu.memory_space<vmem>>, vector<128x128xbf16>
    %cst_41 = arith.constant dense<0.000000e+00> : vector<64x128xf32>
    %131 = tpu.matmul %129, %130, %cst_41 {dimension_numbers = #tpu.dot_dimension_numbers<[1], [0], [0], [1], [0, 0, 1, 1], [], []>} : vector<64x128xbf16>, vector<128x128xbf16>, vector<64x128xf32> -> vector<64x128xf32>
    %c0_42 = arith.constant 0 : index
    %c0_43 = arith.constant 0 : index
    %132 = vector.load %arg10[%c0_42, %c0_43] : memref<1x128xf32, #tpu.memory_space<vmem>>, vector<1x128xf32>
    %133 = vector.broadcast %132 : vector<1x128xf32> to vector<64x128xf32>
    %134 = arith.addf %131, %133 : vector<64x128xf32>
    %cst_44 = arith.constant 0.000000e+00 : f32
    %135 = vector.broadcast %cst_44 : f32 to vector<64x128xf32>
    %136 = arith.maximumf %134, %135 : vector<64x128xf32>
    %c0_45 = arith.constant 0 : index
    %c0_46 = arith.constant 0 : index
    %c0_47 = arith.constant 0 : index
    %137 = vector.load %arg11[%c0_45, %c0_46, %c0_47] : memref<1x64x128xf32, #tpu.memory_space<vmem>>, vector<1x64x128xf32>
    %138 = vector.shape_cast %137 : vector<1x64x128xf32> to vector<64x128xf32>
    %139 = vector.shape_cast %136 : vector<64x128xf32> to vector<1x64x128xf32>
    tpu.vector_store %arg11[%c0_45, %c0_46, %c0_47], %139 {strides = array<i32>} : memref<1x64x128xf32, #tpu.memory_space<vmem>>, vector<1x64x128xf32>,
    return
  }
  func.func @transform_0(%arg0: i32, %arg1: i32) -> (i32, i32, i32) {
    %c0_i32 = arith.constant 0 : i32
    %c0_i32_0 = arith.constant 0 : i32
    return %arg0, %arg1, %c0_i32 : i32, i32, i32
  }
  func.func @transform_1(%arg0: i32, %arg1: i32) -> (i32, i32, i32) {
    %c0_i32 = arith.constant 0 : i32
    %c0_i32_0 = arith.constant 0 : i32
    %c0_i32_1 = arith.constant 0 : i32
    return %arg0, %c0_i32, %c0_i32_0 : i32, i32, i32
  }
  func.func @transform_2(%arg0: i32, %arg1: i32) -> (i32, i32, i32) {
    %c0_i32 = arith.constant 0 : i32
    %c0_i32_0 = arith.constant 0 : i32
    %c0_i32_1 = arith.constant 0 : i32
    return %arg0, %c0_i32, %c0_i32_0 : i32, i32, i32
  }
  func.func @transform_3(%arg0: i32, %arg1: i32) -> (i32, i32, i32) {
    %c0_i32 = arith.constant 0 : i32
    %c0_i32_0 = arith.constant 0 : i32
    return %arg0, %arg1, %c0_i32 : i32, i32, i32
  }
  func.func @transform_4(%arg0: i32, %arg1: i32) -> (i32, i32) {
    %c0_i32 = arith.constant 0 : i32
    %c0_i32_0 = arith.constant 0 : i32
    %c0_i32_1 = arith.constant 0 : i32
    return %c0_i32, %c0_i32_0 : i32, i32
  }
  func.func @transform_5(%arg0: i32, %arg1: i32) -> (i32, i32) {
    %c0_i32 = arith.constant 0 : i32
    %c0_i32_0 = arith.constant 0 : i32
    %c0_i32_1 = arith.constant 0 : i32
    return %c0_i32, %c0_i32_0 : i32, i32
  }
  func.func @transform_6(%arg0: i32, %arg1: i32) -> (i32, i32) {
    %c0_i32 = arith.constant 0 : i32
    %c0_i32_0 = arith.constant 0 : i32
    %c0_i32_1 = arith.constant 0 : i32
    return %c0_i32, %c0_i32_0 : i32, i32
  }
  func.func @transform_7(%arg0: i32, %arg1: i32) -> (i32, i32) {
    %c0_i32 = arith.constant 0 : i32
    %c0_i32_0 = arith.constant 0 : i32
    %c0_i32_1 = arith.constant 0 : i32
    return %c0_i32, %c0_i32_0 : i32, i32
  }
  func.func @transform_8(%arg0: i32, %arg1: i32) -> (i32, i32) {
    %c0_i32 = arith.constant 0 : i32
    %c0_i32_0 = arith.constant 0 : i32
    %c0_i32_1 = arith.constant 0 : i32
    return %c0_i32, %c0_i32_0 : i32, i32
  }
  func.func @transform_9(%arg0: i32, %arg1: i32) -> (i32, i32, i32) {
    %c0_i32 = arith.constant 0 : i32
    %c0_i32_0 = arith.constant 0 : i32
    return %arg0, %arg1, %c0_i32 : i32, i32, i32
  }
}

module attributes {stable_mosaic.version = 11 : i64} {
  func.func @_fused_fp_kernel(%arg0: i32, %arg1: i32, %arg2: memref<1x64x3xf32, #tpu.memory_space<vmem>>, %arg3: memref<1x3x32xf32, #tpu.memory_space<vmem>>, %arg4: memref<1x32x8xf32, #tpu.memory_space<vmem>>, %arg5: memref<1x64x8xf32, #tpu.memory_space<vmem>>, %arg6: memref<8x128xbf16, #tpu.memory_space<vmem>>, %arg7: memref<8x128xbf16, #tpu.memory_space<vmem>>, %arg8: memref<1x128xf32, #tpu.memory_space<vmem>>, %arg9: memref<128x128xbf16, #tpu.memory_space<vmem>>, %arg10: memref<1x128xf32, #tpu.memory_space<vmem>>, %arg11: memref<1x64x128xf32, #tpu.memory_space<vmem>>) attributes {dimension_semantics = [#tpu.dimension_semantics<parallel>, #tpu.dimension_semantics<parallel>], iteration_bounds = array<i64: 2, 1>, scalar_prefetch = 0 : i64, scratch_operands = 0 : i64, tpu.core_type = #tpu.core_type<tc>, window_params = [{transform_indices = @transform_0, window_bounds = array<i64: 1, 64, 3>}, {transform_indices = @transform_1, window_bounds = array<i64: 1, 3, 32>}, {transform_indices = @transform_2, window_bounds = array<i64: 1, 32, 8>}, {transform_indices = @transform_3, window_bounds = array<i64: 1, 64, 8>}, {pipeline_mode = #tpu.pipeline_mode<synchronous>, transform_indices = @transform_4, window_bounds = array<i64: 8, 128>}, {pipeline_mode = #tpu.pipeline_mode<synchronous>, transform_indices = @transform_5, window_bounds = array<i64: 8, 128>}, {pipeline_mode = #tpu.pipeline_mode<synchronous>, transform_indices = @transform_6, window_bounds = array<i64: 1, 128>}, {pipeline_mode = #tpu.pipeline_mode<synchronous>, transform_indices = @transform_7, window_bounds = array<i64: 128, 128>}, {pipeline_mode = #tpu.pipeline_mode<synchronous>, transform_indices = @transform_8, window_bounds = array<i64: 1, 128>}, {transform_indices = @transform_9, window_bounds = array<i64: 1, 64, 128>}]} {
    %c0 = arith.constant 0 : index
    %c0_0 = arith.constant 0 : index
    %c0_1 = arith.constant 0 : index
    %0 = vector.load %arg2[%c0, %c0_0, %c0_1] : memref<1x64x3xf32, #tpu.memory_space<vmem>>, vector<1x64x3xf32>
    %1 = vector.shape_cast %0 : vector<1x64x3xf32> to vector<64x3xf32>
    %c0_2 = arith.constant 0 : index
    %c0_3 = arith.constant 0 : index
    %c0_4 = arith.constant 0 : index
    %2 = vector.load %arg3[%c0_2, %c0_3, %c0_4] : memref<1x3x32xf32, #tpu.memory_space<vmem>>, vector<1x3x32xf32>
    %3 = vector.shape_cast %2 : vector<1x3x32xf32> to vector<3x32xf32>
    %4 = vector.extract_strided_slice %1 {offsets = [0, 0], sizes = [64, 1], strides = [1, 1]} : vector<64x3xf32> to vector<64x1xf32>
    %5 = vector.extract_strided_slice %3 {offsets = [0, 0], sizes = [1, 32], strides = [1, 1]} : vector<3x32xf32> to vector<1x32xf32>
    %6 = vector.broadcast %4 : vector<64x1xf32> to vector<64x32xf32>
    %7 = vector.broadcast %5 : vector<1x32xf32> to vector<64x32xf32>
    %8 = arith.subf %6, %7 : vector<64x32xf32>
    %9 = arith.mulf %8, %8 : vector<64x32xf32>
    %10 = vector.extract_strided_slice %1 {offsets = [0, 1], sizes = [64, 1], strides = [1, 1]} : vector<64x3xf32> to vector<64x1xf32>
    %11 = vector.extract_strided_slice %3 {offsets = [1, 0], sizes = [1, 32], strides = [1, 1]} : vector<3x32xf32> to vector<1x32xf32>
    %12 = vector.broadcast %10 : vector<64x1xf32> to vector<64x32xf32>
    %13 = vector.broadcast %11 : vector<1x32xf32> to vector<64x32xf32>
    %14 = arith.subf %12, %13 : vector<64x32xf32>
    %15 = arith.mulf %14, %14 : vector<64x32xf32>
    %16 = arith.addf %9, %15 : vector<64x32xf32>
    %17 = vector.extract_strided_slice %1 {offsets = [0, 2], sizes = [64, 1], strides = [1, 1]} : vector<64x3xf32> to vector<64x1xf32>
    %18 = vector.extract_strided_slice %3 {offsets = [2, 0], sizes = [1, 32], strides = [1, 1]} : vector<3x32xf32> to vector<1x32xf32>
    %19 = vector.broadcast %17 : vector<64x1xf32> to vector<64x32xf32>
    %20 = vector.broadcast %18 : vector<1x32xf32> to vector<64x32xf32>
    %21 = arith.subf %19, %20 : vector<64x32xf32>
    %22 = arith.mulf %21, %21 : vector<64x32xf32>
    %23 = arith.addf %16, %22 : vector<64x32xf32>
    %cst = arith.constant 9.99999974E-5 : f32
    %24 = vector.broadcast %cst : f32 to vector<64x32xf32>
    %25 = arith.addf %23, %24 : vector<64x32xf32>
    %26 = tpu.reciprocal %25 {approx = true} : vector<64x32xf32> -> vector<64x32xf32>
    %27 = tpu.iota {dimensions = array<i32: 1>} : vector<64x32xi32>
    %28 = tpu.bitcast %23 : vector<64x32xf32> -> vector<64x32xi32>
    %c-32_i32 = arith.constant -32 : i32
    %29 = vector.broadcast %c-32_i32 : i32 to vector<64x32xi32>
    %30 = arith.andi %28, %29 : vector<64x32xi32>
    %31 = arith.ori %30, %27 : vector<64x32xi32>
    %cst_5 = arith.constant 0.000000e+00 : f32
    %32 = vector.broadcast %cst_5 : f32 to vector<64x32xf32>
    %c2147483647_i32 = arith.constant 2147483647 : i32
    %c0_i32 = arith.constant 0 : i32
    %cst_6 = arith.constant dense<2147483647> : vector<64xi32>
    %33 = vector.multi_reduction <minsi>, %31, %cst_6 [1] : vector<64x32xi32> to vector<64xi32>
    %34 = vector.shape_cast %33 : vector<64xi32> to vector<64x1xi32>
    %35 = vector.broadcast %34 : vector<64x1xi32> to vector<64x32xi32>
    %36 = arith.cmpi eq, %31, %35 : vector<64x32xi32>
    %cst_7 = arith.constant 0.000000e+00 : f32
    %37 = vector.broadcast %cst_7 : f32 to vector<64x32xf32>
    %38 = arith.select %36, %26, %37 : vector<64x32xi1>, vector<64x32xf32>
    %39 = arith.addf %32, %38 : vector<64x32xf32>
    %40 = vector.broadcast %c2147483647_i32 : i32 to vector<64x32xi32>
    %41 = arith.select %36, %40, %31 : vector<64x32xi1>, vector<64x32xi32>
    %c1_i32 = arith.constant 1 : i32
    %cst_8 = arith.constant dense<2147483647> : vector<64xi32>
    %42 = vector.multi_reduction <minsi>, %41, %cst_8 [1] : vector<64x32xi32> to vector<64xi32>
    %43 = vector.shape_cast %42 : vector<64xi32> to vector<64x1xi32>
    %44 = vector.broadcast %43 : vector<64x1xi32> to vector<64x32xi32>
    %45 = arith.cmpi eq, %41, %44 : vector<64x32xi32>
    %cst_9 = arith.constant 0.000000e+00 : f32
    %46 = vector.broadcast %cst_9 : f32 to vector<64x32xf32>
    %47 = arith.select %45, %26, %46 : vector<64x32xi1>, vector<64x32xf32>
    %48 = arith.addf %39, %47 : vector<64x32xf32>
    %49 = vector.broadcast %c2147483647_i32 : i32 to vector<64x32xi32>
    %50 = arith.select %45, %49, %41 : vector<64x32xi1>, vector<64x32xi32>
    %c2_i32 = arith.constant 2 : i32
    %cst_10 = arith.constant dense<2147483647> : vector<64xi32>
    %51 = vector.multi_reduction <minsi>, %50, %cst_10 [1] : vector<64x32xi32> to vector<64xi32>
    %52 = vector.shape_cast %51 : vector<64xi32> to vector<64x1xi32>
    %53 = vector.broadcast %52 : vector<64x1xi32> to vector<64x32xi32>
    %54 = arith.cmpi eq, %50, %53 : vector<64x32xi32>
    %cst_11 = arith.constant 0.000000e+00 : f32
    %55 = vector.broadcast %cst_11 : f32 to vector<64x32xf32>
    %56 = arith.select %54, %26, %55 : vector<64x32xi1>, vector<64x32xf32>
    %57 = arith.addf %48, %56 : vector<64x32xf32>
    %58 = vector.broadcast %c2147483647_i32 : i32 to vector<64x32xi32>
    %59 = arith.select %54, %58, %50 : vector<64x32xi1>, vector<64x32xi32>
    %c3_i32 = arith.constant 3 : i32
    %cst_12 = arith.constant dense<2147483647> : vector<64xi32>
    %60 = vector.multi_reduction <minsi>, %59, %cst_12 [1] : vector<64x32xi32> to vector<64xi32>
    %61 = vector.shape_cast %60 : vector<64xi32> to vector<64x1xi32>
    %62 = vector.broadcast %61 : vector<64x1xi32> to vector<64x32xi32>
    %63 = arith.cmpi eq, %59, %62 : vector<64x32xi32>
    %cst_13 = arith.constant 0.000000e+00 : f32
    %64 = vector.broadcast %cst_13 : f32 to vector<64x32xf32>
    %65 = arith.select %63, %26, %64 : vector<64x32xi1>, vector<64x32xf32>
    %66 = arith.addf %57, %65 : vector<64x32xf32>
    %67 = vector.broadcast %c2147483647_i32 : i32 to vector<64x32xi32>
    %68 = arith.select %63, %67, %59 : vector<64x32xi1>, vector<64x32xi32>
    %c4_i32 = arith.constant 4 : i32
    %cst_14 = arith.constant dense<2147483647> : vector<64xi32>
    %69 = vector.multi_reduction <minsi>, %68, %cst_14 [1] : vector<64x32xi32> to vector<64xi32>
    %70 = vector.shape_cast %69 : vector<64xi32> to vector<64x1xi32>
    %71 = vector.broadcast %70 : vector<64x1xi32> to vector<64x32xi32>
    %72 = arith.cmpi eq, %68, %71 : vector<64x32xi32>
    %cst_15 = arith.constant 0.000000e+00 : f32
    %73 = vector.broadcast %cst_15 : f32 to vector<64x32xf32>
    %74 = arith.select %72, %26, %73 : vector<64x32xi1>, vector<64x32xf32>
    %75 = arith.addf %66, %74 : vector<64x32xf32>
    %76 = vector.broadcast %c2147483647_i32 : i32 to vector<64x32xi32>
    %77 = arith.select %72, %76, %68 : vector<64x32xi1>, vector<64x32xi32>
    %c5_i32 = arith.constant 5 : i32
    %cst_16 = arith.constant dense<2147483647> : vector<64xi32>
    %78 = vector.multi_reduction <minsi>, %77, %cst_16 [1] : vector<64x32xi32> to vector<64xi32>
    %79 = vector.shape_cast %78 : vector<64xi32> to vector<64x1xi32>
    %80 = vector.broadcast %79 : vector<64x1xi32> to vector<64x32xi32>
    %81 = arith.cmpi eq, %77, %80 : vector<64x32xi32>
    %cst_17 = arith.constant 0.000000e+00 : f32
    %82 = vector.broadcast %cst_17 : f32 to vector<64x32xf32>
    %83 = arith.select %81, %26, %82 : vector<64x32xi1>, vector<64x32xf32>
    %84 = arith.addf %75, %83 : vector<64x32xf32>
    %85 = vector.broadcast %c2147483647_i32 : i32 to vector<64x32xi32>
    %86 = arith.select %81, %85, %77 : vector<64x32xi1>, vector<64x32xi32>
    %c6_i32 = arith.constant 6 : i32
    %cst_18 = arith.constant dense<2147483647> : vector<64xi32>
    %87 = vector.multi_reduction <minsi>, %86, %cst_18 [1] : vector<64x32xi32> to vector<64xi32>
    %88 = vector.shape_cast %87 : vector<64xi32> to vector<64x1xi32>
    %89 = vector.broadcast %88 : vector<64x1xi32> to vector<64x32xi32>
    %90 = arith.cmpi eq, %86, %89 : vector<64x32xi32>
    %cst_19 = arith.constant 0.000000e+00 : f32
    %91 = vector.broadcast %cst_19 : f32 to vector<64x32xf32>
    %92 = arith.select %90, %26, %91 : vector<64x32xi1>, vector<64x32xf32>
    %93 = arith.addf %84, %92 : vector<64x32xf32>
    %94 = vector.broadcast %c2147483647_i32 : i32 to vector<64x32xi32>
    %95 = arith.select %90, %94, %86 : vector<64x32xi1>, vector<64x32xi32>
    %c7_i32 = arith.constant 7 : i32
    %cst_20 = arith.constant dense<2147483647> : vector<64xi32>
    %96 = vector.multi_reduction <minsi>, %95, %cst_20 [1] : vector<64x32xi32> to vector<64xi32>
    %97 = vector.shape_cast %96 : vector<64xi32> to vector<64x1xi32>
    %98 = vector.broadcast %97 : vector<64x1xi32> to vector<64x32xi32>
    %99 = arith.cmpi eq, %95, %98 : vector<64x32xi32>
    %cst_21 = arith.constant 0.000000e+00 : f32
    %100 = vector.broadcast %cst_21 : f32 to vector<64x32xf32>
    %101 = arith.select %99, %26, %100 : vector<64x32xi1>, vector<64x32xf32>
    %102 = arith.addf %93, %101 : vector<64x32xf32>
    %103 = vector.broadcast %c2147483647_i32 : i32 to vector<64x32xi32>
    %104 = arith.select %99, %103, %95 : vector<64x32xi1>, vector<64x32xi32>
    %cst_22 = arith.constant dense<0.000000e+00> : vector<64xf32>
    %105 = vector.multi_reduction <add>, %102, %cst_22 [1] : vector<64x32xf32> to vector<64xf32>
    %106 = vector.shape_cast %105 : vector<64xf32> to vector<64x1xf32>
    %107 = tpu.reciprocal %106 {approx = true} : vector<64x1xf32> -> vector<64x1xf32>
    %108 = vector.broadcast %107 : vector<64x1xf32> to vector<64x32xf32>
    %109 = arith.mulf %102, %108 : vector<64x32xf32>
    %110 = arith.truncf %109 : vector<64x32xf32> to vector<64x32xbf16>
    %c0_23 = arith.constant 0 : index
    %c0_24 = arith.constant 0 : index
    %c0_25 = arith.constant 0 : index
    %111 = vector.load %arg4[%c0_23, %c0_24, %c0_25] : memref<1x32x8xf32, #tpu.memory_space<vmem>>, vector<1x32x8xf32>
    %112 = vector.shape_cast %111 : vector<1x32x8xf32> to vector<32x8xf32>
    %113 = arith.truncf %112 : vector<32x8xf32> to vector<32x8xbf16>
    %cst_26 = arith.constant dense<0.000000e+00> : vector<64x8xf32>
    %114 = tpu.matmul %110, %113, %cst_26 {dimension_numbers = #tpu.dot_dimension_numbers<[1], [0], [0], [1], [0, 0, 1, 1], [], []>} : vector<64x32xbf16>, vector<32x8xbf16>, vector<64x8xf32> -> vector<64x8xf32>
    %115 = arith.truncf %114 : vector<64x8xf32> to vector<64x8xbf16>
    %c0_27 = arith.constant 0 : index
    %c0_28 = arith.constant 0 : index
    %116 = vector.load %arg7[%c0_27, %c0_28] : memref<8x128xbf16, #tpu.memory_space<vmem>>, vector<8x128xbf16>
    %cst_29 = arith.constant dense<0.000000e+00> : vector<64x128xf32>
    %117 = tpu.matmul %115, %116, %cst_29 {dimension_numbers = #tpu.dot_dimension_numbers<[1], [0], [0], [1], [0, 0, 1, 1], [], []>} : vector<64x8xbf16>, vector<8x128xbf16>, vector<64x128xf32> -> vector<64x128xf32>
    %c0_30 = arith.constant 0 : index
    %c0_31 = arith.constant 0 : index
    %c0_32 = arith.constant 0 : index
    %118 = vector.load %arg5[%c0_30, %c0_31, %c0_32] : memref<1x64x8xf32, #tpu.memory_space<vmem>>, vector<1x64x8xf32>
    %119 = vector.shape_cast %118 : vector<1x64x8xf32> to vector<64x8xf32>
    %120 = arith.truncf %119 : vector<64x8xf32> to vector<64x8xbf16>
    %c0_33 = arith.constant 0 : index
    %c0_34 = arith.constant 0 : index
    %121 = vector.load %arg6[%c0_33, %c0_34] : memref<8x128xbf16, #tpu.memory_space<vmem>>, vector<8x128xbf16>
    %cst_35 = arith.constant dense<0.000000e+00> : vector<64x128xf32>
    %122 = tpu.matmul %120, %121, %cst_35 {dimension_numbers = #tpu.dot_dimension_numbers<[1], [0], [0], [1], [0, 0, 1, 1], [], []>} : vector<64x8xbf16>, vector<8x128xbf16>, vector<64x128xf32> -> vector<64x128xf32>
    %123 = arith.addf %117, %122 : vector<64x128xf32>
    %c0_36 = arith.constant 0 : index
    %c0_37 = arith.constant 0 : index
    %124 = vector.load %arg8[%c0_36, %c0_37] : memref<1x128xf32, #tpu.memory_space<vmem>>, vector<1x128xf32>
    %125 = vector.broadcast %124 : vector<1x128xf32> to vector<64x128xf32>
    %126 = arith.addf %123, %125 : vector<64x128xf32>
    %cst_38 = arith.constant 0.000000e+00 : f32
    %127 = vector.broadcast %cst_38 : f32 to vector<64x128xf32>
    %128 = arith.maximumf %126, %127 : vector<64x128xf32>
    %129 = arith.truncf %128 : vector<64x128xf32> to vector<64x128xbf16>
    %c0_39 = arith.constant 0 : index
    %c0_40 = arith.constant 0 : index
    %130 = vector.load %arg9[%c0_39, %c0_40] : memref<128x128xbf16, #tpu.memory_space<vmem>>, vector<128x128xbf16>
    %cst_41 = arith.constant dense<0.000000e+00> : vector<64x128xf32>
    %131 = tpu.matmul %129, %130, %cst_41 {dimension_numbers = #tpu.dot_dimension_numbers<[1], [0], [0], [1], [0, 0, 1, 1], [], []>} : vector<64x128xbf16>, vector<128x128xbf16>, vector<64x128xf32> -> vector<64x128xf32>
    %c0_42 = arith.constant 0 : index
    %c0_43 = arith.constant 0 : index
    %132 = vector.load %arg10[%c0_42, %c0_43] : memref<1x128xf32, #tpu.memory_space<vmem>>, vector<1x128xf32>
    %133 = vector.broadcast %132 : vector<1x128xf32> to vector<64x128xf32>
    %134 = arith.addf %131, %133 : vector<64x128xf32>
    %cst_44 = arith.constant 0.000000e+00 : f32
    %135 = vector.broadcast %cst_44 : f32 to vector<64x128xf32>
    %136 = arith.maximumf %134, %135 : vector<64x128xf32>
    %c0_45 = arith.constant 0 : index
    %c0_46 = arith.constant 0 : index
    %c0_47 = arith.constant 0 : index
    %137 = vector.load %arg11[%c0_45, %c0_46, %c0_47] : memref<1x64x128xf32, #tpu.memory_space<vmem>>, vector<1x64x128xf32>
    %138 = vector.shape_cast %137 : vector<1x64x128xf32> to vector<64x128xf32>
    %139 = vector.shape_cast %136 : vector<64x128xf32> to vector<1x64x128xf32>
    tpu.vector_store %arg11[%c0_45, %c0_46, %c0_47], %139 {strides = array<i32>} : memref<1x64x128xf32, #tpu.memory_space<vmem>>, vector<1x64x128xf32>,
    return
  }
  func.func @transform_0(%arg0: i32, %arg1: i32) -> (i32, i32, i32) {
    %c0_i32 = arith.constant 0 : i32
    %c0_i32_0 = arith.constant 0 : i32
    return %arg0, %arg1, %c0_i32 : i32, i32, i32
  }
  func.func @transform_1(%arg0: i32, %arg1: i32) -> (i32, i32, i32) {
    %c0_i32 = arith.constant 0 : i32
    %c0_i32_0 = arith.constant 0 : i32
    %c0_i32_1 = arith.constant 0 : i32
    return %arg0, %c0_i32, %c0_i32_0 : i32, i32, i32
  }
  func.func @transform_2(%arg0: i32, %arg1: i32) -> (i32, i32, i32) {
    %c0_i32 = arith.constant 0 : i32
    %c0_i32_0 = arith.constant 0 : i32
    %c0_i32_1 = arith.constant 0 : i32
    return %arg0, %c0_i32, %c0_i32_0 : i32, i32, i32
  }
  func.func @transform_3(%arg0: i32, %arg1: i32) -> (i32, i32, i32) {
    %c0_i32 = arith.constant 0 : i32
    %c0_i32_0 = arith.constant 0 : i32
    return %arg0, %arg1, %c0_i32 : i32, i32, i32
  }
  func.func @transform_4(%arg0: i32, %arg1: i32) -> (i32, i32) {
    %c0_i32 = arith.constant 0 : i32
    %c0_i32_0 = arith.constant 0 : i32
    %c0_i32_1 = arith.constant 0 : i32
    return %c0_i32, %c0_i32_0 : i32, i32
  }
  func.func @transform_5(%arg0: i32, %arg1: i32) -> (i32, i32) {
    %c0_i32 = arith.constant 0 : i32
    %c0_i32_0 = arith.constant 0 : i32
    %c0_i32_1 = arith.constant 0 : i32
    return %c0_i32, %c0_i32_0 : i32, i32
  }
  func.func @transform_6(%arg0: i32, %arg1: i32) -> (i32, i32) {
    %c0_i32 = arith.constant 0 : i32
    %c0_i32_0 = arith.constant 0 : i32
    %c0_i32_1 = arith.constant 0 : i32
    return %c0_i32, %c0_i32_0 : i32, i32
  }
  func.func @transform_7(%arg0: i32, %arg1: i32) -> (i32, i32) {
    %c0_i32 = arith.constant 0 : i32
    %c0_i32_0 = arith.constant 0 : i32
    %c0_i32_1 = arith.constant 0 : i32
    return %c0_i32, %c0_i32_0 : i32, i32
  }
  func.func @transform_8(%arg0: i32, %arg1: i32) -> (i32, i32) {
    %c0_i32 = arith.constant 0 : i32
    %c0_i32_0 = arith.constant 0 : i32
    %c0_i32_1 = arith.constant 0 : i32
    return %c0_i32, %c0_i32_0 : i32, i32
  }
  func.func @transform_9(%arg0: i32, %arg1: i32) -> (i32, i32, i32) {
    %c0_i32 = arith.constant 0 : i32
    %c0_i32_0 = arith.constant 0 : i32
    return %arg0, %arg1, %c0_i32 : i32, i32, i32
  }
}

</mosaic_0001>

<llo_original>
// kernel: tpu_custom_call.1
$region0: #{tpu_custom_call.1}
  #allocation0 [shape = 'u32[]', space=smem, size = 0x4, offset = 0x4, fixed_abs, tag = 'smem constant byte address 0x4 - core index']
  #allocation1 [shape = 'u32[144,128]{1,0:T(1,128)}', space=vmem, size = 0x12000, scoped, tag = 'internal scratch']
  %s0 = inlined_call_operand.vmem [shape: f32[2,64,3], index: 0, kind: input, shape index: {}]
  %s1 = inlined_call_operand.vmem [shape: f32[2,3,32], index: 1, kind: input, shape index: {}]
  %s2 = inlined_call_operand.vmem [shape: f32[2,32,8], index: 2, kind: input, shape index: {}]
  %s3 = inlined_call_operand.vmem [shape: f32[2,64,8], index: 3, kind: input, shape index: {}]
  %s4 = inlined_call_operand.vmem [shape: bf16[8,128], index: 4, kind: input, shape index: {}]
  %s5 = inlined_call_operand.vmem [shape: bf16[8,128], index: 5, kind: input, shape index: {}]
  %s6 = inlined_call_operand.vmem [shape: f32[1,128], index: 6, kind: input, shape index: {}]
  %s7 = inlined_call_operand.vmem [shape: bf16[128,128], index: 7, kind: input, shape index: {}]
  %s8 = inlined_call_operand.vmem [shape: f32[1,128], index: 8, kind: input, shape index: {}]
  %s9 = inlined_call_operand.hbm [shape: f32[2,64,128], index: 9, kind: output, shape index: {}]
  %s10 = sld [smem:[#allocation0]]
  $region69: #{tpu_custom_call.1} parent=0
    _
  %s12 = ssub.s32 1, %s10
  %s13 = scalar_select 0, %s12, %s10
  $region1: #{tpu_custom_call.1} parent=0
    #allocation2 [shape = 'u8[65536]{0}', space=vmem, size = 0x10000, scoped, tag = 'output window, operand 0']
    #allocation3 [shape = 's32[2]{0}', space=sflag, size = 0x8, scoped, tag = 'scoped memory for tpu_custom_call.1']
    %14 = vsyncpa [#allocation3], 0
    %s15 = scalar_lea.sflag [#allocation3], 1
    %16 = vsyncpa %s15, 0
    loop: start=0, step=1, limit=4
    $region2: #{tpu_custom_call.1} parent=1 // loop_pre_header
      _
    $region3: #{tpu_custom_call.1} parent=1 // loop_header
      %s18 = sphi 0, %s22
      %p19 = scmp.ge.s32.totalorder %s18, 4
      %s25 = sphi 0, %s37
      %s26 = sphi 0, %s33
      %s27 = sphi 0, %s25
      %s28 = sphi 0, %s26
      %s29 = sphi 0, %s27
      %s30 = sphi 0, %s28
      %s42 = sphi 0, %s44
      %s45 = sphi 0, %s42
      %s46 = sphi 0, %s45
      %s62 = sphi 0, %s46
      %s68 = sphi 0, %s70
      %s71 = sphi 0, %s68
      %s72 = sphi 0, %s71
      %s88 = sphi 0, %s72
      %s94 = sphi 0, %s96
      %s97 = sphi 0, %s94
      %s98 = sphi 0, %s97
      %s114 = sphi 0, %s98
      %s122 = sphi 0, %s124
      %s125 = sphi 0, %s122
      %s126 = sphi 0, %s125
      %s142 = sphi 0, %s126
      %s146 = sphi 0, %s146
      %s148 = sphi 0, %s146
      %s149 = sphi 0, %s148
      %s163 = sphi 0, %s149
      %s167 = sphi 0, %s167
      %s169 = sphi 0, %s167
      %s170 = sphi 0, %s169
      %s184 = sphi 0, %s170
      %s188 = sphi 0, %s188
      %s190 = sphi 0, %s188
      %s191 = sphi 0, %s190
      %s205 = sphi 0, %s191
      %s209 = sphi 0, %s209
      %s211 = sphi 0, %s209
      %s212 = sphi 0, %s211
      %s226 = sphi 0, %s212
      %s230 = sphi 0, %s230
      %s232 = sphi 0, %s230
      %s233 = sphi 0, %s232
      %s247 = sphi 0, %s233
      %s255 = sphi 0, %s257
      %s258 = sphi 0, %s255
      %s259 = sphi 0, %s258
      %s275 = sphi 0, %s259
    $region4: #{tpu_custom_call.1} parent=1 // loop_header_branch
      %21 = sbr.rel (%p19) target = $region8
    $region5: #{tpu_custom_call.1} parent=1 // loop_body
      %s23 = ssub.s32 %s18, 1
      %s24 = ssub.s32 %s18, 2
      %s31 = sadd.s32 1, %s26
      %p32 = scmp.ge.s32.totalorder %s31, 1
      %s33 = scalar_select %p32, 0, %s31
      %s34 = sadd.s32 1, %s25
      %s35 = scalar_select %p32, %s34, %s25
      %p36 = scmp.ge.s32.totalorder %s35, 2
      %s37 = scalar_select %p36, 0, %s35
      %s38 = ssub.s32 %s25, %s37
      %s39 = ssub.s32 %s26, %s33
      %s40 = sor.u32 %s38, %s39
      %p41 = scmp.eq.s32.totalorder %s40, 0
      %s43 = sadd.s32 %s42, 1
      %s44 = scalar_select %p41, %s42, %s43
      %p47 = pneg %p41
      %p48 = scmp.eq.s32.totalorder %s18, 1
      %p49 = por %p47, %p48
      %p50 = scmp.ne.s32.totalorder %s42, %s45
      %p51 = scmp.eq.s32.totalorder %s18, 0
      %p52 = por %p50, %p51
      %p53 = scmp.ne.s32.totalorder %s42, %s45
      %p54 = scmp.eq.s32.totalorder %s23, 1
      %p55 = por %p53, %p54
      %p56 = scmp.ne.s32.totalorder %s45, %s46
      %p57 = scmp.eq.s32.totalorder %s23, 0
      %p58 = por %p56, %p57
      %p59 = scmp.ne.s32.totalorder %s45, %s46
      %p60 = scmp.eq.s32.totalorder %s24, 1
      %p61 = por %p59, %p60
      %p63 = scmp.ne.s32.totalorder %s46, %s62
      %p64 = scmp.eq.s32.totalorder %s24, 0
      %p65 = por %p63, %p64
      %s66 = ssub.s32 %s25, %s37
      %p67 = scmp.eq.s32.totalorder %s66, 0
      %s69 = sadd.s32 %s68, 1
      %s70 = scalar_select %p67, %s68, %s69
      %p73 = pneg %p67
      %p74 = scmp.eq.s32.totalorder %s18, 1
      %p75 = por %p73, %p74
      %p76 = scmp.ne.s32.totalorder %s68, %s71
      %p77 = scmp.eq.s32.totalorder %s18, 0
      %p78 = por %p76, %p77
      %p79 = scmp.ne.s32.totalorder %s68, %s71
      %p80 = scmp.eq.s32.totalorder %s23, 1
      %p81 = por %p79, %p80
      %p82 = scmp.ne.s32.totalorder %s71, %s72
      %p83 = scmp.eq.s32.totalorder %s23, 0
      %p84 = por %p82, %p83
      %p85 = scmp.ne.s32.totalorder %s71, %s72
      %p86 = scmp.eq.s32.totalorder %s24, 1
      %p87 = por %p85, %p86
      %p89 = scmp.ne.s32.totalorder %s72, %s88
      %p90 = scmp.eq.s32.totalorder %s24, 0
      %p91 = por %p89, %p90
      %s92 = ssub.s32 %s25, %s37
      %p93 = scmp.eq.s32.totalorder %s92, 0
      %s95 = sadd.s32 %s94, 1
      %s96 = scalar_select %p93, %s94, %s95
      %p99 = pneg %p93
      %p100 = scmp.eq.s32.totalorder %s18, 1
      %p101 = por %p99, %p100
      %p102 = scmp.ne.s32.totalorder %s94, %s97
      %p103 = scmp.eq.s32.totalorder %s18, 0
      %p104 = por %p102, %p103
      %p105 = scmp.ne.s32.totalorder %s94, %s97
      %p106 = scmp.eq.s32.totalorder %s23, 1
      %p107 = por %p105, %p106
      %p108 = scmp.ne.s32.totalorder %s97, %s98
      %p109 = scmp.eq.s32.totalorder %s23, 0
      %p110 = por %p108, %p109
      %p111 = scmp.ne.s32.totalorder %s97, %s98
      %p112 = scmp.eq.s32.totalorder %s24, 1
      %p113 = por %p111, %p112
      %p115 = scmp.ne.s32.totalorder %s98, %s114
      %p116 = scmp.eq.s32.totalorder %s24, 0
      %p117 = por %p115, %p116
      %s118 = ssub.s32 %s25, %s37
      %s119 = ssub.s32 %s26, %s33
      %s120 = sor.u32 %s118, %s119
      %p121 = scmp.eq.s32.totalorder %s120, 0
      %s123 = sadd.s32 %s122, 1
      %s124 = scalar_select %p121, %s122, %s123
      %p127 = pneg %p121
      %p128 = scmp.eq.s32.totalorder %s18, 1
      %p129 = por %p127, %p128
      %p130 = scmp.ne.s32.totalorder %s122, %s125
      %p131 = scmp.eq.s32.totalorder %s18, 0
      %p132 = por %p130, %p131
      %p133 = scmp.ne.s32.totalorder %s122, %s125
      %p134 = scmp.eq.s32.totalorder %s23, 1
      %p135 = por %p133, %p134
      %p136 = scmp.ne.s32.totalorder %s125, %s126
      %p137 = scmp.eq.s32.totalorder %s23, 0
      %p138 = por %p136, %p137
      %p139 = scmp.ne.s32.totalorder %s125, %s126
      %p140 = scmp.eq.s32.totalorder %s24, 1
      %p141 = por %p139, %p140
      %p143 = scmp.ne.s32.totalorder %s126, %s142
      %p144 = scmp.eq.s32.totalorder %s24, 0
      %p145 = por %p143, %p144
      %s147 = sadd.s32 %s146, 1
      %p150 = scmp.eq.s32.totalorder %s18, 1
      %p151 = scmp.ne.s32.totalorder %s146, %s148
      %p152 = scmp.eq.s32.totalorder %s18, 0
      %p153 = por %p151, %p152
      %p154 = scmp.ne.s32.totalorder %s146, %s148
      %p155 = scmp.eq.s32.totalorder %s23, 1
      %p156 = por %p154, %p155
      %p157 = scmp.ne.s32.totalorder %s148, %s149
      %p158 = scmp.eq.s32.totalorder %s23, 0
      %p159 = por %p157, %p158
      %p160 = scmp.ne.s32.totalorder %s148, %s149
      %p161 = scmp.eq.s32.totalorder %s24, 1
      %p162 = por %p160, %p161
      %p164 = scmp.ne.s32.totalorder %s149, %s163
      %p165 = scmp.eq.s32.totalorder %s24, 0
      %p166 = por %p164, %p165
      %s168 = sadd.s32 %s167, 1
      %p171 = scmp.eq.s32.totalorder %s18, 1
      %p172 = scmp.ne.s32.totalorder %s167, %s169
      %p173 = scmp.eq.s32.totalorder %s18, 0
      %p174 = por %p172, %p173
      %p175 = scmp.ne.s32.totalorder %s167, %s169
      %p176 = scmp.eq.s32.totalorder %s23, 1
      %p177 = por %p175, %p176
      %p178 = scmp.ne.s32.totalorder %s169, %s170
      %p179 = scmp.eq.s32.totalorder %s23, 0
      %p180 = por %p178, %p179
      %p181 = scmp.ne.s32.totalorder %s169, %s170
      %p182 = scmp.eq.s32.totalorder %s24, 1
      %p183 = por %p181, %p182
      %p185 = scmp.ne.s32.totalorder %s170, %s184
      %p186 = scmp.eq.s32.totalorder %s24, 0
      %p187 = por %p185, %p186
      %s189 = sadd.s32 %s188, 1
      %p192 = scmp.eq.s32.totalorder %s18, 1
      %p193 = scmp.ne.s32.totalorder %s188, %s190
      %p194 = scmp.eq.s32.totalorder %s18, 0
      %p195 = por %p193, %p194
      %p196 = scmp.ne.s32.totalorder %s188, %s190
      %p197 = scmp.eq.s32.totalorder %s23, 1
      %p198 = por %p196, %p197
      %p199 = scmp.ne.s32.totalorder %s190, %s191
      %p200 = scmp.eq.s32.totalorder %s23, 0
      %p201 = por %p199, %p200
      %p202 = scmp.ne.s32.totalorder %s190, %s191
      %p203 = scmp.eq.s32.totalorder %s24, 1
      %p204 = por %p202, %p203
      %p206 = scmp.ne.s32.totalorder %s191, %s205
      %p207 = scmp.eq.s32.totalorder %s24, 0
      %p208 = por %p206, %p207
      %s210 = sadd.s32 %s209, 1
      %p213 = scmp.eq.s32.totalorder %s18, 1
      %p214 = scmp.ne.s32.totalorder %s209, %s211
      %p215 = scmp.eq.s32.totalorder %s18, 0
      %p216 = por %p214, %p215
      %p217 = scmp.ne.s32.totalorder %s209, %s211
      %p218 = scmp.eq.s32.totalorder %s23, 1
      %p219 = por %p217, %p218
      %p220 = scmp.ne.s32.totalorder %s211, %s212
      %p221 = scmp.eq.s32.totalorder %s23, 0
      %p222 = por %p220, %p221
      %p223 = scmp.ne.s32.totalorder %s211, %s212
      %p224 = scmp.eq.s32.totalorder %s24, 1
      %p225 = por %p223, %p224
      %p227 = scmp.ne.s32.totalorder %s212, %s226
      %p228 = scmp.eq.s32.totalorder %s24, 0
      %p229 = por %p227, %p228
      %s231 = sadd.s32 %s230, 1
      %p234 = scmp.eq.s32.totalorder %s18, 1
      %p235 = scmp.ne.s32.totalorder %s230, %s232
      %p236 = scmp.eq.s32.totalorder %s18, 0
      %p237 = por %p235, %p236
      %p238 = scmp.ne.s32.totalorder %s230, %s232
      %p239 = scmp.eq.s32.totalorder %s23, 1
      %p240 = por %p238, %p239
      %p241 = scmp.ne.s32.totalorder %s232, %s233
      %p242 = scmp.eq.s32.totalorder %s23, 0
      %p243 = por %p241, %p242
      %p244 = scmp.ne.s32.totalorder %s232, %s233
      %p245 = scmp.eq.s32.totalorder %s24, 1
      %p246 = por %p244, %p245
      %p248 = scmp.ne.s32.totalorder %s233, %s247
      %p249 = scmp.eq.s32.totalorder %s24, 0
      %p250 = por %p248, %p249
      %s251 = ssub.s32 %s25, %s37
      %s252 = ssub.s32 %s26, %s33
      %s253 = sor.u32 %s251, %s252
      %p254 = scmp.eq.s32.totalorder %s253, 0
      %s256 = sadd.s32 %s255, 1
      %s257 = scalar_select %p254, %s255, %s256
      %p260 = pneg %p254
      %p261 = scmp.eq.s32.totalorder %s18, 1
      %p262 = por %p260, %p261
      %p263 = scmp.ne.s32.totalorder %s255, %s258
      %p264 = scmp.eq.s32.totalorder %s18, 0
      %p265 = por %p263, %p264
      %p266 = scmp.ne.s32.totalorder %s255, %s258
      %p267 = scmp.eq.s32.totalorder %s23, 1
      %p268 = por %p266, %p267
      %p269 = scmp.ne.s32.totalorder %s258, %s259
      %p270 = scmp.eq.s32.totalorder %s23, 0
      %p271 = por %p269, %p270
      %p272 = scmp.ne.s32.totalorder %s258, %s259
      %p273 = scmp.eq.s32.totalorder %s24, 1
      %p274 = por %p272, %p273
      %p276 = scmp.ne.s32.totalorder %s259, %s275
      %p277 = scmp.eq.s32.totalorder %s24, 0
      %p278 = por %p276, %p277
      %p279 = scmp.le.s32.totalorder 1, %s18
      %p280 = scmp.lt.s32.totalorder %s18, 3
      %p281 = pnand %p279, %p280
      %p282 = pneg %p281
      // Predicated region
      $region9: #{tpu_custom_call.1} parent=5 // pred_check
        _
      $region10: #{tpu_custom_call.1} parent=5 // pred_check_branch
        %284 = sbr.rel (%p281) target = $region12
      $region11: #{tpu_custom_call.1} parent=5 // pred_region
        %s285 = ssub.s32 %s18, 1
        // Predicated region
        $region13: #{tpu_custom_call.1} parent=11 // pred_check
          %p286 = pneg %p159
        $region14: #{tpu_custom_call.1} parent=11 // pred_check_branch
          %288 = sbr.rel (%p286) target = $region16
        $region15: #{tpu_custom_call.1} parent=11 // pred_region
          _
        $region16: #{tpu_custom_call.1} parent=11 // pred_fallthru
          _
        // Predicated region
        $region17: #{tpu_custom_call.1} parent=11 // pred_check
          %p289 = pneg %p180
        $region18: #{tpu_custom_call.1} parent=11 // pred_check_branch
          %291 = sbr.rel (%p289) target = $region20
        $region19: #{tpu_custom_call.1} parent=11 // pred_region
          _
        $region20: #{tpu_custom_call.1} parent=11 // pred_fallthru
          _
        // Predicated region
        $region21: #{tpu_custom_call.1} parent=11 // pred_check
          %p292 = pneg %p201
        $region22: #{tpu_custom_call.1} parent=11 // pred_check_branch
          %294 = sbr.rel (%p292) target = $region24
        $region23: #{tpu_custom_call.1} parent=11 // pred_region
          _
        $region24: #{tpu_custom_call.1} parent=11 // pred_fallthru
          _
        // Predicated region
        $region25: #{tpu_custom_call.1} parent=11 // pred_check
          %p295 = pneg %p222
        $region26: #{tpu_custom_call.1} parent=11 // pred_check_branch
          %297 = sbr.rel (%p295) target = $region28
        $region27: #{tpu_custom_call.1} parent=11 // pred_region
          _
        $region28: #{tpu_custom_call.1} parent=11 // pred_fallthru
          _
        // Predicated region
        $region29: #{tpu_custom_call.1} parent=11 // pred_check
          %p298 = pneg %p243
        $region30: #{tpu_custom_call.1} parent=11 // pred_check_branch
          %300 = sbr.rel (%p298) target = $region32
        $region31: #{tpu_custom_call.1} parent=11 // pred_region
          _
        $region32: #{tpu_custom_call.1} parent=11 // pred_fallthru
          _
      $region12: #{tpu_custom_call.1} parent=5 // pred_fallthru
        _
      %p301 = scmp.lt.s32.totalorder %s18, 2
      // Predicated region
      $region33: #{tpu_custom_call.1} parent=5 // pred_check
        %p302 = pneg %p301
      $region34: #{tpu_custom_call.1} parent=5 // pred_check_branch
        %304 = sbr.rel (%p302) target = $region36
      $region35: #{tpu_custom_call.1} parent=5 // pred_region
        // Predicated region
        $region37: #{tpu_custom_call.1} parent=35 // pred_check
          %p305 = pneg %p52
        $region38: #{tpu_custom_call.1} parent=35 // pred_check_branch
          %307 = sbr.rel (%p305) target = $region40
        $region39: #{tpu_custom_call.1} parent=35 // pred_region
          %s308 = smul.u32 8, %s26
          %p309 = scmp.lt.s32.totalorder %s25, 1
          %s310 = scalar_select %p309, %s25, 1
          %p311 = scmp.lt.s32.totalorder %s308, 7
          %s312 = scalar_select %p311, %s308, 7
          %s313 = smul.addr %s310, 8
          %s314 = sadd.s32 %s312, %s313
          %s315 = smul.addr %s314, 8
          %s316 = scalar_lea.vmem %s0, %s315
          %s317 = smul.u32 8, %s26
        $region40: #{tpu_custom_call.1} parent=35 // pred_fallthru
          _
        // Predicated region
        $region41: #{tpu_custom_call.1} parent=35 // pred_check
          %p318 = pneg %p78
        $region42: #{tpu_custom_call.1} parent=35 // pred_check_branch
          %320 = sbr.rel (%p318) target = $region44
        $region43: #{tpu_custom_call.1} parent=35 // pred_region
          %p321 = scmp.lt.s32.totalorder %s25, 1
          %s322 = scalar_select %p321, %s25, 1
          %s323 = smul.addr %s322, 4
          %s324 = scalar_lea.vmem %s1, %s323
        $region44: #{tpu_custom_call.1} parent=35 // pred_fallthru
          _
        // Predicated region
        $region45: #{tpu_custom_call.1} parent=35 // pred_check
          %p325 = pneg %p104
        $region46: #{tpu_custom_call.1} parent=35 // pred_check_branch
          %327 = sbr.rel (%p325) target = $region48
        $region47: #{tpu_custom_call.1} parent=35 // pred_region
          %p328 = scmp.lt.s32.totalorder %s25, 1
          %s329 = scalar_select %p328, %s25, 1
          %s330 = smul.addr %s329, 4
          %s331 = smul.addr %s330, 8
          %s332 = scalar_lea.vmem %s2, %s331
        $region48: #{tpu_custom_call.1} parent=35 // pred_fallthru
          _
        // Predicated region
        $region49: #{tpu_custom_call.1} parent=35 // pred_check
          %p333 = pneg %p132
        $region50: #{tpu_custom_call.1} parent=35 // pred_check_branch
          %335 = sbr.rel (%p333) target = $region52
        $region51: #{tpu_custom_call.1} parent=35 // pred_region
          %s336 = smul.u32 8, %s26
          %p337 = scmp.lt.s32.totalorder %s25, 1
          %s338 = scalar_select %p337, %s25, 1
          %p339 = scmp.lt.s32.totalorder %s336, 7
          %s340 = scalar_select %p339, %s336, 7
          %s341 = smul.addr %s338, 8
          %s342 = sadd.s32 %s340, %s341
          %s343 = smul.addr %s342, 8
          %s344 = scalar_lea.vmem %s3, %s343
          %s345 = smul.u32 8, %s26
        $region52: #{tpu_custom_call.1} parent=35 // pred_fallthru
          _
      $region36: #{tpu_custom_call.1} parent=5 // pred_fallthru
        _
      %p346 = scmp.le.s32.totalorder 1, %s18
      %p347 = scmp.lt.s32.totalorder %s18, 3
      %p348 = pnand %p346, %p347
      %p349 = pneg %p348
      // Predicated region
      $region53: #{tpu_custom_call.1} parent=5 // pred_check
        _
      $region54: #{tpu_custom_call.1} parent=5 // pred_check_branch
        %351 = sbr.rel (%p348) target = $region56
      $region55: #{tpu_custom_call.1} parent=5 // pred_region
        %s352 = ssub.s32 %s18, 1
        %s353 = smul.u32 8, %s28
        %p354 = scmp.lt.s32.totalorder %s27, 1
        %s355 = scalar_select %p354, %s27, 1
        %p356 = scmp.lt.s32.totalorder %s353, 7
        %s357 = scalar_select %p356, %s353, 7
        %s358 = smul.addr %s355, 8
        %s359 = sadd.s32 %s357, %s358
        %s360 = smul.addr %s359, 8
        %s361 = scalar_lea.vmem %s0, %s360
        %p362 = pneg %p58
        %p363 = pneg %p55
        %p364 = scmp.lt.s32.totalorder %s27, 1
        %s365 = scalar_select %p364, %s27, 1
        %s366 = smul.addr %s365, 4
        %s367 = scalar_lea.vmem %s1, %s366
        %p368 = pneg %p84
        %p369 = pneg %p81
        %p370 = scmp.lt.s32.totalorder %s27, 1
        %s371 = scalar_select %p370, %s27, 1
        %s372 = smul.addr %s371, 4
        %s373 = smul.addr %s372, 8
        %s374 = scalar_lea.vmem %s2, %s373
        %p375 = pneg %p110
        %p376 = pneg %p107
        %s377 = smul.u32 8, %s28
        %p378 = scmp.lt.s32.totalorder %s27, 1
        %s379 = scalar_select %p378, %s27, 1
        %p380 = scmp.lt.s32.totalorder %s377, 7
        %s381 = scalar_select %p380, %s377, 7
        %s382 = smul.addr %s379, 8
        %s383 = sadd.s32 %s381, %s382
        %s384 = smul.addr %s383, 8
        %s385 = scalar_lea.vmem %s3, %s384
        %p386 = pneg %p138
        %p387 = pneg %p135
        %p388 = pneg %p159
        %p389 = pneg %p156
        %p390 = pneg %p180
        %p391 = pneg %p177
        %p392 = pneg %p201
        %p393 = pneg %p198
        %p394 = pneg %p222
        %p395 = pneg %p219
        %p396 = pneg %p243
        %p397 = pneg %p240
        %p398 = pneg %p271
        %p399 = pneg %p268
        %s400 = sand.u32 %s258, 1
        %s401 = scalar_lea.sflag [#allocation3], %s400
        %s402 = sand.u32 %s258, 1
        %s403 = smul.addr %s402, 64
        %s404 = scalar_lea.vmem [#allocation2], %s403
        %s405 = smul.u32 8, %s28
        %p406 = scmp.lt.s32.totalorder %s27, 1
        %s407 = scalar_select %p406, %s27, 1
        %p408 = scmp.lt.s32.totalorder %s405, 7
        %s409 = scalar_select %p408, %s405, 7
        %s410 = smul.addr %s407, 8
        %s411 = sadd.s32 %s409, %s410
        %s412 = smul.addr %s411, 8
        %s413 = scalar_lea.vmem %s0, %s412
        %s414 = smul.u32 8, %s28
        %p415 = scmp.lt.s32.totalorder %s27, 1
        %s416 = scalar_select %p415, %s27, 1
        %s417 = smul.addr %s416, 4
        %s418 = scalar_lea.vmem %s1, %s417
        %p419 = scmp.lt.s32.totalorder %s27, 1
        %s420 = scalar_select %p419, %s27, 1
        %s421 = smul.addr %s420, 4
        %s422 = smul.addr %s421, 8
        %s423 = scalar_lea.vmem %s2, %s422
        %s424 = smul.u32 8, %s28
        %p425 = scmp.lt.s32.totalorder %s27, 1
        %s426 = scalar_select %p425, %s27, 1
        %p427 = scmp.lt.s32.totalorder %s424, 7
        %s428 = scalar_select %p427, %s424, 7
        %s429 = smul.addr %s426, 8
        %s430 = sadd.s32 %s428, %s429
        %s431 = smul.addr %s430, 8
        %s432 = scalar_lea.vmem %s3, %s431
        %s433 = smul.u32 8, %s28
        %s434 = smul.u32 8, %s28
        %v436 = vld [vmem:[%s413] sm:$0xff]
        %v437 = vld [vmem:[%s413 + $0x8] sm:$0xff]
        %v438 = vld [vmem:[%s413 + $0x10] sm:$0xff]
        %v439 = vld [vmem:[%s413 + $0x18] sm:$0xff]
        %v440 = vld [vmem:[%s413 + $0x20] sm:$0xff]
        %v441 = vld [vmem:[%s413 + $0x28] sm:$0xff]
        %v442 = vld [vmem:[%s413 + $0x30] sm:$0xff]
        %v443 = vld [vmem:[%s413 + $0x38] sm:$0xff]
        %v444 = vld [vmem:[%s418] sm:$0x7]
        %446 = vset.pattern.permute.xlu0 0
        %447 = vperm.xlu0 %446, %v436
        %v448 = vpop.permute.xlu0 %447
        %451 = vset.pattern.permute.xlu0 0
        %452 = vperm.xlu0 %451, %v437
        %v453 = vpop.permute.xlu0 %452
        %456 = vset.pattern.permute.xlu0 0
        %457 = vperm.xlu0 %456, %v438
        %v458 = vpop.permute.xlu0 %457
        %461 = vset.pattern.permute.xlu0 0
        %462 = vperm.xlu0 %461, %v439
        %v463 = vpop.permute.xlu0 %462
        %466 = vset.pattern.permute.xlu0 0
        %467 = vperm.xlu0 %466, %v440
        %v468 = vpop.permute.xlu0 %467
        %471 = vset.pattern.permute.xlu0 0
        %472 = vperm.xlu0 %471, %v441
        %v473 = vpop.permute.xlu0 %472
        %476 = vset.pattern.permute.xlu0 0
        %477 = vperm.xlu0 %476, %v442
        %v478 = vpop.permute.xlu0 %477
        %481 = vset.pattern.permute.xlu0 0
        %482 = vperm.xlu0 %481, %v443
        %v483 = vpop.permute.xlu0 %482
        %v485 = vlaneseq
        %v486 = vshrl.u32 %v485, 7
        %v487 = vsub.s32 0, %v486
        %v488 = vrot.slane %v444, %v487
        %v489 = vsub.f32 %v448, %v488
        %v490 = vsub.f32 %v453, %v488
        %v491 = vsub.f32 %v458, %v488
        %v492 = vsub.f32 %v463, %v488
        %v493 = vsub.f32 %v468, %v488
        %v494 = vsub.f32 %v473, %v488
        %v495 = vsub.f32 %v478, %v488
        %v496 = vsub.f32 %v483, %v488
        %v497 = vmul.f32 %v489, %v489
        %v498 = vmul.f32 %v490, %v490
        %v499 = vmul.f32 %v491, %v491
        %v500 = vmul.f32 %v492, %v492
        %v501 = vmul.f32 %v493, %v493
        %v502 = vmul.f32 %v494, %v494
        %v503 = vmul.f32 %v495, %v495
        %v504 = vmul.f32 %v496, %v496
        %505 = vset.pattern.permute.xlu0 1
        %506 = vperm.xlu0 %505, %v436
        %v507 = vpop.permute.xlu0 %506
        %509 = vset.pattern.permute.xlu0 1
        %510 = vperm.xlu0 %509, %v437
        %v511 = vpop.permute.xlu0 %510
        %513 = vset.pattern.permute.xlu0 1
        %514 = vperm.xlu0 %513, %v438
        %v515 = vpop.permute.xlu0 %514
        %517 = vset.pattern.permute.xlu0 1
        %518 = vperm.xlu0 %517, %v439
        %v519 = vpop.permute.xlu0 %518
        %521 = vset.pattern.permute.xlu0 1
        %522 = vperm.xlu0 %521, %v440
        %v523 = vpop.permute.xlu0 %522
        %525 = vset.pattern.permute.xlu0 1
        %526 = vperm.xlu0 %525, %v441
        %v527 = vpop.permute.xlu0 %526
        %529 = vset.pattern.permute.xlu0 1
        %530 = vperm.xlu0 %529, %v442
        %v531 = vpop.permute.xlu0 %530
        %533 = vset.pattern.permute.xlu0 1
        %534 = vperm.xlu0 %533, %v443
        %v535 = vpop.permute.xlu0 %534
        %v537 = vlaneseq
        %v538 = vshrl.u32 %v537, 7
        %v539 = vsub.s32 1, %v538
        %v540 = vrot.slane %v444, %v539
        %v541 = vsub.f32 %v507, %v540
        %v542 = vsub.f32 %v511, %v540
        %v543 = vsub.f32 %v515, %v540
        %v544 = vsub.f32 %v519, %v540
        %v545 = vsub.f32 %v523, %v540
        %v546 = vsub.f32 %v527, %v540
        %v547 = vsub.f32 %v531, %v540
        %v548 = vsub.f32 %v535, %v540
        %v549 = vmul.f32 %v541, %v541
        %v550 = vmul.f32 %v542, %v542
        %v551 = vmul.f32 %v543, %v543
        %v552 = vmul.f32 %v544, %v544
        %v553 = vmul.f32 %v545, %v545
        %v554 = vmul.f32 %v546, %v546
        %v555 = vmul.f32 %v547, %v547
        %v556 = vmul.f32 %v548, %v548
        %v557 = vadd.f32 %v497, %v549
        %v558 = vadd.f32 %v498, %v550
        %v559 = vadd.f32 %v499, %v551
        %v560 = vadd.f32 %v500, %v552
        %v561 = vadd.f32 %v501, %v553
        %v562 = vadd.f32 %v502, %v554
        %v563 = vadd.f32 %v503, %v555
        %v564 = vadd.f32 %v504, %v556
        %565 = vset.pattern.permute.xlu0 2
        %566 = vperm.xlu0 %565, %v436
        %v567 = vpop.permute.xlu0 %566
        %569 = vset.pattern.permute.xlu0 2
        %570 = vperm.xlu0 %569, %v437
        %v571 = vpop.permute.xlu0 %570
        %573 = vset.pattern.permute.xlu0 2
        %574 = vperm.xlu0 %573, %v438
        %v575 = vpop.permute.xlu0 %574
        %577 = vset.pattern.permute.xlu0 2
        %578 = vperm.xlu0 %577, %v439
        %v579 = vpop.permute.xlu0 %578
        %581 = vset.pattern.permute.xlu0 2
        %582 = vperm.xlu0 %581, %v440
        %v583 = vpop.permute.xlu0 %582
        %585 = vset.pattern.permute.xlu0 2
        %586 = vperm.xlu0 %585, %v441
        %v587 = vpop.permute.xlu0 %586
        %589 = vset.pattern.permute.xlu0 2
        %590 = vperm.xlu0 %589, %v442
        %v591 = vpop.permute.xlu0 %590
        %593 = vset.pattern.permute.xlu0 2
        %594 = vperm.xlu0 %593, %v443
        %v595 = vpop.permute.xlu0 %594
        %v597 = vlaneseq
        %v598 = vshrl.u32 %v597, 7
        %v599 = vsub.s32 2, %v598
        %v600 = vrot.slane %v444, %v599
        %v601 = vsub.f32 %v567, %v600
        %v602 = vsub.f32 %v571, %v600
        %v603 = vsub.f32 %v575, %v600
        %v604 = vsub.f32 %v579, %v600
        %v605 = vsub.f32 %v583, %v600
        %v606 = vsub.f32 %v587, %v600
        %v607 = vsub.f32 %v591, %v600
        %v608 = vsub.f32 %v595, %v600
        %v609 = vmul.f32 %v601, %v601
        %v610 = vmul.f32 %v602, %v602
        %v611 = vmul.f32 %v603, %v603
        %v612 = vmul.f32 %v604, %v604
        %v613 = vmul.f32 %v605, %v605
        %v614 = vmul.f32 %v606, %v606
        %v615 = vmul.f32 %v607, %v607
        %v616 = vmul.f32 %v608, %v608
        %v617 = vadd.f32 %v557, %v609
        %v618 = vadd.f32 %v558, %v610
        %v619 = vadd.f32 %v559, %v611
        %v620 = vadd.f32 %v560, %v612
        %v621 = vadd.f32 %v561, %v613
        %v622 = vadd.f32 %v562, %v614
        %v623 = vadd.f32 %v563, %v615
        %v624 = vadd.f32 %v564, %v616
        %v625 = vadd.f32 %v617, 0.0001
        %v626 = vadd.f32 %v618, 0.0001
        %v627 = vadd.f32 %v619, 0.0001
        %v628 = vadd.f32 %v620, 0.0001
        %v629 = vadd.f32 %v621, 0.0001
        %v630 = vadd.f32 %v622, 0.0001
        %v631 = vadd.f32 %v623, 0.0001
        %v632 = vadd.f32 %v624, 0.0001
        %v633 = vrcp.pop %v625
        %v634 = vrcp.pop %v626
        %v635 = vrcp.pop %v627
        %v636 = vrcp.pop %v628
        %v637 = vrcp.pop %v629
        %v638 = vrcp.pop %v630
        %v639 = vrcp.pop %v631
        %v640 = vrcp.pop %v632
        %v641 = vlaneseq
        %v642 = vand.u32 %v641, 127
        %v651 = vand.u32 %v617, 4294967264
        %v652 = vand.u32 %v618, 4294967264
        %v653 = vand.u32 %v619, 4294967264
        %v654 = vand.u32 %v620, 4294967264
        %v655 = vand.u32 %v621, 4294967264
        %v656 = vand.u32 %v622, 4294967264
        %v657 = vand.u32 %v623, 4294967264
        %v658 = vand.u32 %v624, 4294967264
        %v659 = vor.u32 %v651, %v642
        %v660 = vor.u32 %v652, %v642
        %v661 = vor.u32 %v653, %v642
        %v662 = vor.u32 %v654, %v642
        %v663 = vor.u32 %v655, %v642
        %v664 = vor.u32 %v656, %v642
        %v665 = vor.u32 %v657, %v642
        %v666 = vor.u32 %v658, %v642
        %vm667 = vcmask 261120
        %v668 = vsel %vm667, %v659, 2147483647
        %v669 = vand.u32 %v668, 65535
        %v670 = vshra.s32 %v668, 16
        %v671 = vcvt.s32.f32 %v669
        %v672 = vcvt.s32.f32 %v670
        %673 = vmin.xlane.f32.xlu0 %v672
        %v674 = vpop.xlane.xlu0 %673
        %vm675 = vcmp.eq.f32.partialorder %v672, %v674
        %v676 = vsel %vm675, %v671, inf
        %677 = vmin.xlane.f32.xlu0 %v676
        %v678 = vpop.xlane.xlu0 %677
        %v679 = vcvt.f32.s32 %v678
        %v680 = vcvt.f32.s32 %v674
        %v681 = vshll.u32 %v680, 16
        %v682 = vadd.s32 %v681, %v679
        %v683 = vsel %vm667, %v660, 2147483647
        %v684 = vand.u32 %v683, 65535
        %v685 = vshra.s32 %v683, 16
        %v686 = vcvt.s32.f32 %v684
        %v687 = vcvt.s32.f32 %v685
        %688 = vmin.xlane.f32.xlu0 %v687
        %v689 = vpop.xlane.xlu0 %688
        %vm690 = vcmp.eq.f32.partialorder %v687, %v689
        %v691 = vsel %vm690, %v686, inf
        %692 = vmin.xlane.f32.xlu0 %v691
        %v693 = vpop.xlane.xlu0 %692
        %v694 = vcvt.f32.s32 %v693
        %v695 = vcvt.f32.s32 %v689
        %v696 = vshll.u32 %v695, 16
        %v697 = vadd.s32 %v696, %v694
        %v698 = vsel %vm667, %v661, 2147483647
        %v699 = vand.u32 %v698, 65535
        %v700 = vshra.s32 %v698, 16
        %v701 = vcvt.s32.f32 %v699
        %v702 = vcvt.s32.f32 %v700
        %703 = vmin.xlane.f32.xlu0 %v702
        %v704 = vpop.xlane.xlu0 %703
        %vm705 = vcmp.eq.f32.partialorder %v702, %v704
        %v706 = vsel %vm705, %v701, inf
        %707 = vmin.xlane.f32.xlu0 %v706
        %v708 = vpop.xlane.xlu0 %707
        %v709 = vcvt.f32.s32 %v708
        %v710 = vcvt.f32.s32 %v704
        %v711 = vshll.u32 %v710, 16
        %v712 = vadd.s32 %v711, %v709
        %v713 = vsel %vm667, %v662, 2147483647
        %v714 = vand.u32 %v713, 65535
        %v715 = vshra.s32 %v713, 16
        %v716 = vcvt.s32.f32 %v714
        %v717 = vcvt.s32.f32 %v715
        %718 = vmin.xlane.f32.xlu0 %v717
        %v719 = vpop.xlane.xlu0 %718
        %vm720 = vcmp.eq.f32.partialorder %v717, %v719
        %v721 = vsel %vm720, %v716, inf
        %722 = vmin.xlane.f32.xlu0 %v721
        %v723 = vpop.xlane.xlu0 %722
        %v724 = vcvt.f32.s32 %v723
        %v725 = vcvt.f32.s32 %v719
        %v726 = vshll.u32 %v725, 16
        %v727 = vadd.s32 %v726, %v724
        %v728 = vsel %vm667, %v663, 2147483647
        %v729 = vand.u32 %v728, 65535
        %v730 = vshra.s32 %v728, 16
        %v731 = vcvt.s32.f32 %v729
        %v732 = vcvt.s32.f32 %v730
        %733 = vmin.xlane.f32.xlu0 %v732
        %v734 = vpop.xlane.xlu0 %733
        %vm735 = vcmp.eq.f32.partialorder %v732, %v734
        %v736 = vsel %vm735, %v731, inf
        %737 = vmin.xlane.f32.xlu0 %v736
        %v738 = vpop.xlane.xlu0 %737
        %v739 = vcvt.f32.s32 %v738
        %v740 = vcvt.f32.s32 %v734
        %v741 = vshll.u32 %v740, 16
        %v742 = vadd.s32 %v741, %v739
        %v743 = vsel %vm667, %v664, 2147483647
        %v744 = vand.u32 %v743, 65535
        %v745 = vshra.s32 %v743, 16
        %v746 = vcvt.s32.f32 %v744
        %v747 = vcvt.s32.f32 %v745
        %748 = vmin.xlane.f32.xlu0 %v747
        %v749 = vpop.xlane.xlu0 %748
        %vm750 = vcmp.eq.f32.partialorder %v747, %v749
        %v751 = vsel %vm750, %v746, inf
        %752 = vmin.xlane.f32.xlu0 %v751
        %v753 = vpop.xlane.xlu0 %752
        %v754 = vcvt.f32.s32 %v753
        %v755 = vcvt.f32.s32 %v749
        %v756 = vshll.u32 %v755, 16
        %v757 = vadd.s32 %v756, %v754
        %v758 = vsel %vm667, %v665, 2147483647
        %v759 = vand.u32 %v758, 65535
        %v760 = vshra.s32 %v758, 16
        %v761 = vcvt.s32.f32 %v759
        %v762 = vcvt.s32.f32 %v760
        %763 = vmin.xlane.f32.xlu0 %v762
        %v764 = vpop.xlane.xlu0 %763
        %vm765 = vcmp.eq.f32.partialorder %v762, %v764
        %v766 = vsel %vm765, %v761, inf
        %767 = vmin.xlane.f32.xlu0 %v766
        %v768 = vpop.xlane.xlu0 %767
        %v769 = vcvt.f32.s32 %v768
        %v770 = vcvt.f32.s32 %v764
        %v771 = vshll.u32 %v770, 16
        %v772 = vadd.s32 %v771, %v769
        %v773 = vsel %vm667, %v666, 2147483647
        %v774 = vand.u32 %v773, 65535
        %v775 = vshra.s32 %v773, 16
        %v776 = vcvt.s32.f32 %v774
        %v777 = vcvt.s32.f32 %v775
        %778 = vmin.xlane.f32.xlu0 %v777
        %v779 = vpop.xlane.xlu0 %778
        %vm780 = vcmp.eq.f32.partialorder %v777, %v779
        %v781 = vsel %vm780, %v776, inf
        %782 = vmin.xlane.f32.xlu0 %v781
        %v783 = vpop.xlane.xlu0 %782
        %v784 = vcvt.f32.s32 %v783
        %v785 = vcvt.f32.s32 %v779
        %v786 = vshll.u32 %v785, 16
        %v787 = vadd.s32 %v786, %v784
        %vm788 = vcmp.eq.s32.totalorder %v659, %v682
        %vm789 = vcmp.eq.s32.totalorder %v660, %v697
        %vm790 = vcmp.eq.s32.totalorder %v661, %v712
        %vm791 = vcmp.eq.s32.totalorder %v662, %v727
        %vm792 = vcmp.eq.s32.totalorder %v663, %v742
        %vm793 = vcmp.eq.s32.totalorder %v664, %v757
        %vm794 = vcmp.eq.s32.totalorder %v665, %v772
        %vm795 = vcmp.eq.s32.totalorder %v666, %v787
        %v796 = vsel %vm788, %v633, 0.0
        %v797 = vsel %vm789, %v634, 0.0
        %v798 = vsel %vm790, %v635, 0.0
        %v799 = vsel %vm791, %v636, 0.0
        %v800 = vsel %vm792, %v637, 0.0
        %v801 = vsel %vm793, %v638, 0.0
        %v802 = vsel %vm794, %v639, 0.0
        %v803 = vsel %vm795, %v640, 0.0
        %v804 = vadd.f32 %v796, 0.0
        %v805 = vadd.f32 %v797, 0.0
        %v806 = vadd.f32 %v798, 0.0
        %v807 = vadd.f32 %v799, 0.0
        %v808 = vadd.f32 %v800, 0.0
        %v809 = vadd.f32 %v801, 0.0
        %v810 = vadd.f32 %v802, 0.0
        %v811 = vadd.f32 %v803, 0.0
        %v812 = vsel %vm788, 2147483647, %v659
        %v813 = vsel %vm789, 2147483647, %v660
        %v814 = vsel %vm790, 2147483647, %v661
        %v815 = vsel %vm791, 2147483647, %v662
        %v816 = vsel %vm792, 2147483647, %v663
        %v817 = vsel %vm793, 2147483647, %v664
        %v818 = vsel %vm794, 2147483647, %v665
        %v819 = vsel %vm795, 2147483647, %v666
        %v820 = vsel %vm667, %v812, 2147483647
        %v821 = vand.u32 %v820, 65535
        %v822 = vshra.s32 %v820, 16
        %v823 = vcvt.s32.f32 %v821
        %v824 = vcvt.s32.f32 %v822
        %825 = vmin.xlane.f32.xlu0 %v824
        %v826 = vpop.xlane.xlu0 %825
        %vm827 = vcmp.eq.f32.partialorder %v824, %v826
        %v828 = vsel %vm827, %v823, inf
        %829 = vmin.xlane.f32.xlu0 %v828
        %v830 = vpop.xlane.xlu0 %829
        %v831 = vcvt.f32.s32 %v830
        %v832 = vcvt.f32.s32 %v826
        %v833 = vshll.u32 %v832, 16
        %v834 = vadd.s32 %v833, %v831
        %v835 = vsel %vm667, %v813, 2147483647
        %v836 = vand.u32 %v835, 65535
        %v837 = vshra.s32 %v835, 16
        %v838 = vcvt.s32.f32 %v836
        %v839 = vcvt.s32.f32 %v837
        %840 = vmin.xlane.f32.xlu0 %v839
        %v841 = vpop.xlane.xlu0 %840
        %vm842 = vcmp.eq.f32.partialorder %v839, %v841
        %v843 = vsel %vm842, %v838, inf
        %844 = vmin.xlane.f32.xlu0 %v843
        %v845 = vpop.xlane.xlu0 %844
        %v846 = vcvt.f32.s32 %v845
        %v847 = vcvt.f32.s32 %v841
        %v848 = vshll.u32 %v847, 16
        %v849 = vadd.s32 %v848, %v846
        %v850 = vsel %vm667, %v814, 2147483647
        %v851 = vand.u32 %v850, 65535
        %v852 = vshra.s32 %v850, 16
        %v853 = vcvt.s32.f32 %v851
        %v854 = vcvt.s32.f32 %v852
        %855 = vmin.xlane.f32.xlu0 %v854
        %v856 = vpop.xlane.xlu0 %855
        %vm857 = vcmp.eq.f32.partialorder %v854, %v856
        %v858 = vsel %vm857, %v853, inf
        %859 = vmin.xlane.f32.xlu0 %v858
        %v860 = vpop.xlane.xlu0 %859
        %v861 = vcvt.f32.s32 %v860
        %v862 = vcvt.f32.s32 %v856
        %v863 = vshll.u32 %v862, 16
        %v864 = vadd.s32 %v863, %v861
        %v865 = vsel %vm667, %v815, 2147483647
        %v866 = vand.u32 %v865, 65535
        %v867 = vshra.s32 %v865, 16
        %v868 = vcvt.s32.f32 %v866
        %v869 = vcvt.s32.f32 %v867
        %870 = vmin.xlane.f32.xlu0 %v869
        %v871 = vpop.xlane.xlu0 %870
        %vm872 = vcmp.eq.f32.partialorder %v869, %v871
        %v873 = vsel %vm872, %v868, inf
        %874 = vmin.xlane.f32.xlu0 %v873
        %v875 = vpop.xlane.xlu0 %874
        %v876 = vcvt.f32.s32 %v875
        %v877 = vcvt.f32.s32 %v871
        %v878 = vshll.u32 %v877, 16
        %v879 = vadd.s32 %v878, %v876
        %v880 = vsel %vm667, %v816, 2147483647
        %v881 = vand.u32 %v880, 65535
        %v882 = vshra.s32 %v880, 16
        %v883 = vcvt.s32.f32 %v881
        %v884 = vcvt.s32.f32 %v882
        %885 = vmin.xlane.f32.xlu0 %v884
        %v886 = vpop.xlane.xlu0 %885
        %vm887 = vcmp.eq.f32.partialorder %v884, %v886
        %v888 = vsel %vm887, %v883, inf
        %889 = vmin.xlane.f32.xlu0 %v888
        %v890 = vpop.xlane.xlu0 %889
        %v891 = vcvt.f32.s32 %v890
        %v892 = vcvt.f32.s32 %v886
        %v893 = vshll.u32 %v892, 16
        %v894 = vadd.s32 %v893, %v891
        %v895 = vsel %vm667, %v817, 2147483647
        %v896 = vand.u32 %v895, 65535
        %v897 = vshra.s32 %v895, 16
        %v898 = vcvt.s32.f32 %v896
        %v899 = vcvt.s32.f32 %v897
        %900 = vmin.xlane.f32.xlu0 %v899
        %v901 = vpop.xlane.xlu0 %900
        %vm902 = vcmp.eq.f32.partialorder %v899, %v901
        %v903 = vsel %vm902, %v898, inf
        %904 = vmin.xlane.f32.xlu0 %v903
        %v905 = vpop.xlane.xlu0 %904
        %v906 = vcvt.f32.s32 %v905
        %v907 = vcvt.f32.s32 %v901
        %v908 = vshll.u32 %v907, 16
        %v909 = vadd.s32 %v908, %v906
        %v910 = vsel %vm667, %v818, 2147483647
        %v911 = vand.u32 %v910, 65535
        %v912 = vshra.s32 %v910, 16
        %v913 = vcvt.s32.f32 %v911
        %v914 = vcvt.s32.f32 %v912
        %915 = vmin.xlane.f32.xlu0 %v914
        %v916 = vpop.xlane.xlu0 %915
        %vm917 = vcmp.eq.f32.partialorder %v914, %v916
        %v918 = vsel %vm917, %v913, inf
        %919 = vmin.xlane.f32.xlu0 %v918
        %v920 = vpop.xlane.xlu0 %919
        %v921 = vcvt.f32.s32 %v920
        %v922 = vcvt.f32.s32 %v916
        %v923 = vshll.u32 %v922, 16
        %v924 = vadd.s32 %v923, %v921
        %v925 = vsel %vm667, %v819, 2147483647
        %v926 = vand.u32 %v925, 65535
        %v927 = vshra.s32 %v925, 16
        %v928 = vcvt.s32.f32 %v926
        %v929 = vcvt.s32.f32 %v927
        %930 = vmin.xlane.f32.xlu0 %v929
        %v931 = vpop.xlane.xlu0 %930
        %vm932 = vcmp.eq.f32.partialorder %v929, %v931
        %v933 = vsel %vm932, %v928, inf
        %934 = vmin.xlane.f32.xlu0 %v933
        %v935 = vpop.xlane.xlu0 %934
        %v936 = vcvt.f32.s32 %v935
        %v937 = vcvt.f32.s32 %v931
        %v938 = vshll.u32 %v937, 16
        %v939 = vadd.s32 %v938, %v936
        %vm940 = vcmp.eq.s32.totalorder %v812, %v834
        %vm941 = vcmp.eq.s32.totalorder %v813, %v849
        %vm942 = vcmp.eq.s32.totalorder %v814, %v864
        %vm943 = vcmp.eq.s32.totalorder %v815, %v879
        %vm944 = vcmp.eq.s32.totalorder %v816, %v894
        %vm945 = vcmp.eq.s32.totalorder %v817, %v909
        %vm946 = vcmp.eq.s32.totalorder %v818, %v924
        %vm947 = vcmp.eq.s32.totalorder %v819, %v939
        %v948 = vsel %vm940, %v633, 0.0
        %v949 = vsel %vm941, %v634, 0.0
        %v950 = vsel %vm942, %v635, 0.0
        %v951 = vsel %vm943, %v636, 0.0
        %v952 = vsel %vm944, %v637, 0.0
        %v953 = vsel %vm945, %v638, 0.0
        %v954 = vsel %vm946, %v639, 0.0
        %v955 = vsel %vm947, %v640, 0.0
        %v956 = vadd.f32 %v804, %v948
        %v957 = vadd.f32 %v805, %v949
        %v958 = vadd.f32 %v806, %v950
        %v959 = vadd.f32 %v807, %v951
        %v960 = vadd.f32 %v808, %v952
        %v961 = vadd.f32 %v809, %v953
        %v962 = vadd.f32 %v810, %v954
        %v963 = vadd.f32 %v811, %v955
        %v964 = vsel %vm940, 2147483647, %v812
        %v965 = vsel %vm941, 2147483647, %v813
        %v966 = vsel %vm942, 2147483647, %v814
        %v967 = vsel %vm943, 2147483647, %v815
        %v968 = vsel %vm944, 2147483647, %v816
        %v969 = vsel %vm945, 2147483647, %v817
        %v970 = vsel %vm946, 2147483647, %v818
        %v971 = vsel %vm947, 2147483647, %v819
        %v972 = vsel %vm667, %v964, 2147483647
        %v973 = vand.u32 %v972, 65535
        %v974 = vshra.s32 %v972, 16
        %v975 = vcvt.s32.f32 %v973
        %v976 = vcvt.s32.f32 %v974
        %977 = vmin.xlane.f32.xlu0 %v976
        %v978 = vpop.xlane.xlu0 %977
        %vm979 = vcmp.eq.f32.partialorder %v976, %v978
        %v980 = vsel %vm979, %v975, inf
        %981 = vmin.xlane.f32.xlu0 %v980
        %v982 = vpop.xlane.xlu0 %981
        %v983 = vcvt.f32.s32 %v982
        %v984 = vcvt.f32.s32 %v978
        %v985 = vshll.u32 %v984, 16
        %v986 = vadd.s32 %v985, %v983
        %v987 = vsel %vm667, %v965, 2147483647
        %v988 = vand.u32 %v987, 65535
        %v989 = vshra.s32 %v987, 16
        %v990 = vcvt.s32.f32 %v988
        %v991 = vcvt.s32.f32 %v989
        %992 = vmin.xlane.f32.xlu0 %v991
        %v993 = vpop.xlane.xlu0 %992
        %vm994 = vcmp.eq.f32.partialorder %v991, %v993
        %v995 = vsel %vm994, %v990, inf
        %996 = vmin.xlane.f32.xlu0 %v995
        %v997 = vpop.xlane.xlu0 %996
        %v998 = vcvt.f32.s32 %v997
        %v999 = vcvt.f32.s32 %v993
        %v1000 = vshll.u32 %v999, 16
        %v1001 = vadd.s32 %v1000, %v998
        %v1002 = vsel %vm667, %v966, 2147483647
        %v1003 = vand.u32 %v1002, 65535
        %v1004 = vshra.s32 %v1002, 16
        %v1005 = vcvt.s32.f32 %v1003
        %v1006 = vcvt.s32.f32 %v1004
        %1007 = vmin.xlane.f32.xlu0 %v1006
        %v1008 = vpop.xlane.xlu0 %1007
        %vm1009 = vcmp.eq.f32.partialorder %v1006, %v1008
        %v1010 = vsel %vm1009, %v1005, inf
        %1011 = vmin.xlane.f32.xlu0 %v1010
        %v1012 = vpop.xlane.xlu0 %1011
        %v1013 = vcvt.f32.s32 %v1012
        %v1014 = vcvt.f32.s32 %v1008
        %v1015 = vshll.u32 %v1014, 16
        %v1016 = vadd.s32 %v1015, %v1013
        %v1017 = vsel %vm667, %v967, 2147483647
        %v1018 = vand.u32 %v1017, 65535
        %v1019 = vshra.s32 %v1017, 16
        %v1020 = vcvt.s32.f32 %v1018
        %v1021 = vcvt.s32.f32 %v1019
        %1022 = vmin.xlane.f32.xlu0 %v1021
        %v1023 = vpop.xlane.xlu0 %1022
        %vm1024 = vcmp.eq.f32.partialorder %v1021, %v1023
        %v1025 = vsel %vm1024, %v1020, inf
        %1026 = vmin.xlane.f32.xlu0 %v1025
        %v1027 = vpop.xlane.xlu0 %1026
        %v1028 = vcvt.f32.s32 %v1027
        %v1029 = vcvt.f32.s32 %v1023
        %v1030 = vshll.u32 %v1029, 16
        %v1031 = vadd.s32 %v1030, %v1028
        %v1032 = vsel %vm667, %v968, 2147483647
        %v1033 = vand.u32 %v1032, 65535
        %v1034 = vshra.s32 %v1032, 16
        %v1035 = vcvt.s32.f32 %v1033
        %v1036 = vcvt.s32.f32 %v1034
        %1037 = vmin.xlane.f32.xlu0 %v1036
        %v1038 = vpop.xlane.xlu0 %1037
        %vm1039 = vcmp.eq.f32.partialorder %v1036, %v1038
        %v1040 = vsel %vm1039, %v1035, inf
        %1041 = vmin.xlane.f32.xlu0 %v1040
        %v1042 = vpop.xlane.xlu0 %1041
        %v1043 = vcvt.f32.s32 %v1042
        %v1044 = vcvt.f32.s32 %v1038
        %v1045 = vshll.u32 %v1044, 16
        %v1046 = vadd.s32 %v1045, %v1043
        %v1047 = vsel %vm667, %v969, 2147483647
        %v1048 = vand.u32 %v1047, 65535
        %v1049 = vshra.s32 %v1047, 16
        %v1050 = vcvt.s32.f32 %v1048
        %v1051 = vcvt.s32.f32 %v1049
        %1052 = vmin.xlane.f32.xlu0 %v1051
        %v1053 = vpop.xlane.xlu0 %1052
        %vm1054 = vcmp.eq.f32.partialorder %v1051, %v1053
        %v1055 = vsel %vm1054, %v1050, inf
        %1056 = vmin.xlane.f32.xlu0 %v1055
        %v1057 = vpop.xlane.xlu0 %1056
        %v1058 = vcvt.f32.s32 %v1057
        %v1059 = vcvt.f32.s32 %v1053
        %v1060 = vshll.u32 %v1059, 16
        %v1061 = vadd.s32 %v1060, %v1058
        %v1062 = vsel %vm667, %v970, 2147483647
        %v1063 = vand.u32 %v1062, 65535
        %v1064 = vshra.s32 %v1062, 16
        %v1065 = vcvt.s32.f32 %v1063
        %v1066 = vcvt.s32.f32 %v1064
        %1067 = vmin.xlane.f32.xlu0 %v1066
        %v1068 = vpop.xlane.xlu0 %1067
        %vm1069 = vcmp.eq.f32.partialorder %v1066, %v1068
        %v1070 = vsel %vm1069, %v1065, inf
        %1071 = vmin.xlane.f32.xlu0 %v1070
        %v1072 = vpop.xlane.xlu0 %1071
        %v1073 = vcvt.f32.s32 %v1072
        %v1074 = vcvt.f32.s32 %v1068
        %v1075 = vshll.u32 %v1074, 16
        %v1076 = vadd.s32 %v1075, %v1073
        %v1077 = vsel %vm667, %v971, 2147483647
        %v1078 = vand.u32 %v1077, 65535
        %v1079 = vshra.s32 %v1077, 16
        %v1080 = vcvt.s32.f32 %v1078
        %v1081 = vcvt.s32.f32 %v1079
        %1082 = vmin.xlane.f32.xlu0 %v1081
        %v1083 = vpop.xlane.xlu0 %1082
        %vm1084 = vcmp.eq.f32.partialorder %v1081, %v1083
        %v1085 = vsel %vm1084, %v1080, inf
        %1086 = vmin.xlane.f32.xlu0 %v1085
        %v1087 = vpop.xlane.xlu0 %1086
        %v1088 = vcvt.f32.s32 %v1087
        %v1089 = vcvt.f32.s32 %v1083
        %v1090 = vshll.u32 %v1089, 16
        %v1091 = vadd.s32 %v1090, %v1088
        %vm1092 = vcmp.eq.s32.totalorder %v964, %v986
        %vm1093 = vcmp.eq.s32.totalorder %v965, %v1001
        %vm1094 = vcmp.eq.s32.totalorder %v966, %v1016
        %vm1095 = vcmp.eq.s32.totalorder %v967, %v1031
        %vm1096 = vcmp.eq.s32.totalorder %v968, %v1046
        %vm1097 = vcmp.eq.s32.totalorder %v969, %v1061
        %vm1098 = vcmp.eq.s32.totalorder %v970, %v1076
        %vm1099 = vcmp.eq.s32.totalorder %v971, %v1091
        %v1100 = vsel %vm1092, %v633, 0.0
        %v1101 = vsel %vm1093, %v634, 0.0
        %v1102 = vsel %vm1094, %v635, 0.0
        %v1103 = vsel %vm1095, %v636, 0.0
        %v1104 = vsel %vm1096, %v637, 0.0
        %v1105 = vsel %vm1097, %v638, 0.0
        %v1106 = vsel %vm1098, %v639, 0.0
        %v1107 = vsel %vm1099, %v640, 0.0
        %v1108 = vadd.f32 %v956, %v1100
        %v1109 = vadd.f32 %v957, %v1101
        %v1110 = vadd.f32 %v958, %v1102
        %v1111 = vadd.f32 %v959, %v1103
        %v1112 = vadd.f32 %v960, %v1104
        %v1113 = vadd.f32 %v961, %v1105
        %v1114 = vadd.f32 %v962, %v1106
        %v1115 = vadd.f32 %v963, %v1107
        %v1116 = vsel %vm1092, 2147483647, %v964
        %v1117 = vsel %vm1093, 2147483647, %v965
        %v1118 = vsel %vm1094, 2147483647, %v966
        %v1119 = vsel %vm1095, 2147483647, %v967
        %v1120 = vsel %vm1096, 2147483647, %v968
        %v1121 = vsel %vm1097, 2147483647, %v969
        %v1122 = vsel %vm1098, 2147483647, %v970
        %v1123 = vsel %vm1099, 2147483647, %v971
        %v1124 = vsel %vm667, %v1116, 2147483647
        %v1125 = vand.u32 %v1124, 65535
        %v1126 = vshra.s32 %v1124, 16
        %v1127 = vcvt.s32.f32 %v1125
        %v1128 = vcvt.s32.f32 %v1126
        %1129 = vmin.xlane.f32.xlu0 %v1128
        %v1130 = vpop.xlane.xlu0 %1129
        %vm1131 = vcmp.eq.f32.partialorder %v1128, %v1130
        %v1132 = vsel %vm1131, %v1127, inf
        %1133 = vmin.xlane.f32.xlu0 %v1132
        %v1134 = vpop.xlane.xlu0 %1133
        %v1135 = vcvt.f32.s32 %v1134
        %v1136 = vcvt.f32.s32 %v1130
        %v1137 = vshll.u32 %v1136, 16
        %v1138 = vadd.s32 %v1137, %v1135
        %v1139 = vsel %vm667, %v1117, 2147483647
        %v1140 = vand.u32 %v1139, 65535
        %v1141 = vshra.s32 %v1139, 16
        %v1142 = vcvt.s32.f32 %v1140
        %v1143 = vcvt.s32.f32 %v1141
        %1144 = vmin.xlane.f32.xlu0 %v1143
        %v1145 = vpop.xlane.xlu0 %1144
        %vm1146 = vcmp.eq.f32.partialorder %v1143, %v1145
        %v1147 = vsel %vm1146, %v1142, inf
        %1148 = vmin.xlane.f32.xlu0 %v1147
        %v1149 = vpop.xlane.xlu0 %1148
        %v1150 = vcvt.f32.s32 %v1149
        %v1151 = vcvt.f32.s32 %v1145
        %v1152 = vshll.u32 %v1151, 16
        %v1153 = vadd.s32 %v1152, %v1150
        %v1154 = vsel %vm667, %v1118, 2147483647
        %v1155 = vand.u32 %v1154, 65535
        %v1156 = vshra.s32 %v1154, 16
        %v1157 = vcvt.s32.f32 %v1155
        %v1158 = vcvt.s32.f32 %v1156
        %1159 = vmin.xlane.f32.xlu0 %v1158
        %v1160 = vpop.xlane.xlu0 %1159
        %vm1161 = vcmp.eq.f32.partialorder %v1158, %v1160
        %v1162 = vsel %vm1161, %v1157, inf
        %1163 = vmin.xlane.f32.xlu0 %v1162
        %v1164 = vpop.xlane.xlu0 %1163
        %v1165 = vcvt.f32.s32 %v1164
        %v1166 = vcvt.f32.s32 %v1160
        %v1167 = vshll.u32 %v1166, 16
        %v1168 = vadd.s32 %v1167, %v1165
        %v1169 = vsel %vm667, %v1119, 2147483647
        %v1170 = vand.u32 %v1169, 65535
        %v1171 = vshra.s32 %v1169, 16
        %v1172 = vcvt.s32.f32 %v1170
        %v1173 = vcvt.s32.f32 %v1171
        %1174 = vmin.xlane.f32.xlu0 %v1173
        %v1175 = vpop.xlane.xlu0 %1174
        %vm1176 = vcmp.eq.f32.partialorder %v1173, %v1175
        %v1177 = vsel %vm1176, %v1172, inf
        %1178 = vmin.xlane.f32.xlu0 %v1177
        %v1179 = vpop.xlane.xlu0 %1178
        %v1180 = vcvt.f32.s32 %v1179
        %v1181 = vcvt.f32.s32 %v1175
        %v1182 = vshll.u32 %v1181, 16
        %v1183 = vadd.s32 %v1182, %v1180
        %v1184 = vsel %vm667, %v1120, 2147483647
        %v1185 = vand.u32 %v1184, 65535
        %v1186 = vshra.s32 %v1184, 16
        %v1187 = vcvt.s32.f32 %v1185
        %v1188 = vcvt.s32.f32 %v1186
        %1189 = vmin.xlane.f32.xlu0 %v1188
        %v1190 = vpop.xlane.xlu0 %1189
        %vm1191 = vcmp.eq.f32.partialorder %v1188, %v1190
        %v1192 = vsel %vm1191, %v1187, inf
        %1193 = vmin.xlane.f32.xlu0 %v1192
        %v1194 = vpop.xlane.xlu0 %1193
        %v1195 = vcvt.f32.s32 %v1194
        %v1196 = vcvt.f32.s32 %v1190
        %v1197 = vshll.u32 %v1196, 16
        %v1198 = vadd.s32 %v1197, %v1195
        %v1199 = vsel %vm667, %v1121, 2147483647
        %v1200 = vand.u32 %v1199, 65535
        %v1201 = vshra.s32 %v1199, 16
        %v1202 = vcvt.s32.f32 %v1200
        %v1203 = vcvt.s32.f32 %v1201
        %1204 = vmin.xlane.f32.xlu0 %v1203
        %v1205 = vpop.xlane.xlu0 %1204
        %vm1206 = vcmp.eq.f32.partialorder %v1203, %v1205
        %v1207 = vsel %vm1206, %v1202, inf
        %1208 = vmin.xlane.f32.xlu0 %v1207
        %v1209 = vpop.xlane.xlu0 %1208
        %v1210 = vcvt.f32.s32 %v1209
        %v1211 = vcvt.f32.s32 %v1205
        %v1212 = vshll.u32 %v1211, 16
        %v1213 = vadd.s32 %v1212, %v1210
        %v1214 = vsel %vm667, %v1122, 2147483647
        %v1215 = vand.u32 %v1214, 65535
        %v1216 = vshra.s32 %v1214, 16
        %v1217 = vcvt.s32.f32 %v1215
        %v1218 = vcvt.s32.f32 %v1216
        %1219 = vmin.xlane.f32.xlu0 %v1218
        %v1220 = vpop.xlane.xlu0 %1219
        %vm1221 = vcmp.eq.f32.partialorder %v1218, %v1220
        %v1222 = vsel %vm1221, %v1217, inf
        %1223 = vmin.xlane.f32.xlu0 %v1222
        %v1224 = vpop.xlane.xlu0 %1223
        %v1225 = vcvt.f32.s32 %v1224
        %v1226 = vcvt.f32.s32 %v1220
        %v1227 = vshll.u32 %v1226, 16
        %v1228 = vadd.s32 %v1227, %v1225
        %v1229 = vsel %vm667, %v1123, 2147483647
        %v1230 = vand.u32 %v1229, 65535
        %v1231 = vshra.s32 %v1229, 16
        %v1232 = vcvt.s32.f32 %v1230
        %v1233 = vcvt.s32.f32 %v1231
        %1234 = vmin.xlane.f32.xlu0 %v1233
        %v1235 = vpop.xlane.xlu0 %1234
        %vm1236 = vcmp.eq.f32.partialorder %v1233, %v1235
        %v1237 = vsel %vm1236, %v1232, inf
        %1238 = vmin.xlane.f32.xlu0 %v1237
        %v1239 = vpop.xlane.xlu0 %1238
        %v1240 = vcvt.f32.s32 %v1239
        %v1241 = vcvt.f32.s32 %v1235
        %v1242 = vshll.u32 %v1241, 16
        %v1243 = vadd.s32 %v1242, %v1240
        %vm1244 = vcmp.eq.s32.totalorder %v1116, %v1138
        %vm1245 = vcmp.eq.s32.totalorder %v1117, %v1153
        %vm1246 = vcmp.eq.s32.totalorder %v1118, %v1168
        %vm1247 = vcmp.eq.s32.totalorder %v1119, %v1183
        %vm1248 = vcmp.eq.s32.totalorder %v1120, %v1198
        %vm1249 = vcmp.eq.s32.totalorder %v1121, %v1213
        %vm1250 = vcmp.eq.s32.totalorder %v1122, %v1228
        %vm1251 = vcmp.eq.s32.totalorder %v1123, %v1243
        %v1252 = vsel %vm1244, %v633, 0.0
        %v1253 = vsel %vm1245, %v634, 0.0
        %v1254 = vsel %vm1246, %v635, 0.0
        %v1255 = vsel %vm1247, %v636, 0.0
        %v1256 = vsel %vm1248, %v637, 0.0
        %v1257 = vsel %vm1249, %v638, 0.0
        %v1258 = vsel %vm1250, %v639, 0.0
        %v1259 = vsel %vm1251, %v640, 0.0
        %v1260 = vadd.f32 %v1108, %v1252
        %v1261 = vadd.f32 %v1109, %v1253
        %v1262 = vadd.f32 %v1110, %v1254
        %v1263 = vadd.f32 %v1111, %v1255
        %v1264 = vadd.f32 %v1112, %v1256
        %v1265 = vadd.f32 %v1113, %v1257
        %v1266 = vadd.f32 %v1114, %v1258
        %v1267 = vadd.f32 %v1115, %v1259
        %v1268 = vsel %vm1244, 2147483647, %v1116
        %v1269 = vsel %vm1245, 2147483647, %v1117
        %v1270 = vsel %vm1246, 2147483647, %v1118
        %v1271 = vsel %vm1247, 2147483647, %v1119
        %v1272 = vsel %vm1248, 2147483647, %v1120
        %v1273 = vsel %vm1249, 2147483647, %v1121
        %v1274 = vsel %vm1250, 2147483647, %v1122
        %v1275 = vsel %vm1251, 2147483647, %v1123
        %v1276 = vsel %vm667, %v1268, 2147483647
        %v1277 = vand.u32 %v1276, 65535
        %v1278 = vshra.s32 %v1276, 16
        %v1279 = vcvt.s32.f32 %v1277
        %v1280 = vcvt.s32.f32 %v1278
        %1281 = vmin.xlane.f32.xlu0 %v1280
        %v1282 = vpop.xlane.xlu0 %1281
        %vm1283 = vcmp.eq.f32.partialorder %v1280, %v1282
        %v1284 = vsel %vm1283, %v1279, inf
        %1285 = vmin.xlane.f32.xlu0 %v1284
        %v1286 = vpop.xlane.xlu0 %1285
        %v1287 = vcvt.f32.s32 %v1286
        %v1288 = vcvt.f32.s32 %v1282
        %v1289 = vshll.u32 %v1288, 16
        %v1290 = vadd.s32 %v1289, %v1287
        %v1291 = vsel %vm667, %v1269, 2147483647
        %v1292 = vand.u32 %v1291, 65535
        %v1293 = vshra.s32 %v1291, 16
        %v1294 = vcvt.s32.f32 %v1292
        %v1295 = vcvt.s32.f32 %v1293
        %1296 = vmin.xlane.f32.xlu0 %v1295
        %v1297 = vpop.xlane.xlu0 %1296
        %vm1298 = vcmp.eq.f32.partialorder %v1295, %v1297
        %v1299 = vsel %vm1298, %v1294, inf
        %1300 = vmin.xlane.f32.xlu0 %v1299
        %v1301 = vpop.xlane.xlu0 %1300
        %v1302 = vcvt.f32.s32 %v1301
        %v1303 = vcvt.f32.s32 %v1297
        %v1304 = vshll.u32 %v1303, 16
        %v1305 = vadd.s32 %v1304, %v1302
        %v1306 = vsel %vm667, %v1270, 2147483647
        %v1307 = vand.u32 %v1306, 65535
        %v1308 = vshra.s32 %v1306, 16
        %v1309 = vcvt.s32.f32 %v1307
        %v1310 = vcvt.s32.f32 %v1308
        %1311 = vmin.xlane.f32.xlu0 %v1310
        %v1312 = vpop.xlane.xlu0 %1311
        %vm1313 = vcmp.eq.f32.partialorder %v1310, %v1312
        %v1314 = vsel %vm1313, %v1309, inf
        %1315 = vmin.xlane.f32.xlu0 %v1314
        %v1316 = vpop.xlane.xlu0 %1315
        %v1317 = vcvt.f32.s32 %v1316
        %v1318 = vcvt.f32.s32 %v1312
        %v1319 = vshll.u32 %v1318, 16
        %v1320 = vadd.s32 %v1319, %v1317
        %v1321 = vsel %vm667, %v1271, 2147483647
        %v1322 = vand.u32 %v1321, 65535
        %v1323 = vshra.s32 %v1321, 16
        %v1324 = vcvt.s32.f32 %v1322
        %v1325 = vcvt.s32.f32 %v1323
        %1326 = vmin.xlane.f32.xlu0 %v1325
        %v1327 = vpop.xlane.xlu0 %1326
        %vm1328 = vcmp.eq.f32.partialorder %v1325, %v1327
        %v1329 = vsel %vm1328, %v1324, inf
        %1330 = vmin.xlane.f32.xlu0 %v1329
        %v1331 = vpop.xlane.xlu0 %1330
        %v1332 = vcvt.f32.s32 %v1331
        %v1333 = vcvt.f32.s32 %v1327
        %v1334 = vshll.u32 %v1333, 16
        %v1335 = vadd.s32 %v1334, %v1332
        %v1336 = vsel %vm667, %v1272, 2147483647
        %v1337 = vand.u32 %v1336, 65535
        %v1338 = vshra.s32 %v1336, 16
        %v1339 = vcvt.s32.f32 %v1337
        %v1340 = vcvt.s32.f32 %v1338
        %1341 = vmin.xlane.f32.xlu0 %v1340
        %v1342 = vpop.xlane.xlu0 %1341
        %vm1343 = vcmp.eq.f32.partialorder %v1340, %v1342
        %v1344 = vsel %vm1343, %v1339, inf
        %1345 = vmin.xlane.f32.xlu0 %v1344
        %v1346 = vpop.xlane.xlu0 %1345
        %v1347 = vcvt.f32.s32 %v1346
        %v1348 = vcvt.f32.s32 %v1342
        %v1349 = vshll.u32 %v1348, 16
        %v1350 = vadd.s32 %v1349, %v1347
        %v1351 = vsel %vm667, %v1273, 2147483647
        %v1352 = vand.u32 %v1351, 65535
        %v1353 = vshra.s32 %v1351, 16
        %v1354 = vcvt.s32.f32 %v1352
        %v1355 = vcvt.s32.f32 %v1353
        %1356 = vmin.xlane.f32.xlu0 %v1355
        %v1357 = vpop.xlane.xlu0 %1356
        %vm1358 = vcmp.eq.f32.partialorder %v1355, %v1357
        %v1359 = vsel %vm1358, %v1354, inf
        %1360 = vmin.xlane.f32.xlu0 %v1359
        %v1361 = vpop.xlane.xlu0 %1360
        %v1362 = vcvt.f32.s32 %v1361
        %v1363 = vcvt.f32.s32 %v1357
        %v1364 = vshll.u32 %v1363, 16
        %v1365 = vadd.s32 %v1364, %v1362
        %v1366 = vsel %vm667, %v1274, 2147483647
        %v1367 = vand.u32 %v1366, 65535
        %v1368 = vshra.s32 %v1366, 16
        %v1369 = vcvt.s32.f32 %v1367
        %v1370 = vcvt.s32.f32 %v1368
        %1371 = vmin.xlane.f32.xlu0 %v1370
        %v1372 = vpop.xlane.xlu0 %1371
        %vm1373 = vcmp.eq.f32.partialorder %v1370, %v1372
        %v1374 = vsel %vm1373, %v1369, inf
        %1375 = vmin.xlane.f32.xlu0 %v1374
        %v1376 = vpop.xlane.xlu0 %1375
        %v1377 = vcvt.f32.s32 %v1376
        %v1378 = vcvt.f32.s32 %v1372
        %v1379 = vshll.u32 %v1378, 16
        %v1380 = vadd.s32 %v1379, %v1377
        %v1381 = vsel %vm667, %v1275, 2147483647
        %v1382 = vand.u32 %v1381, 65535
        %v1383 = vshra.s32 %v1381, 16
        %v1384 = vcvt.s32.f32 %v1382
        %v1385 = vcvt.s32.f32 %v1383
        %1386 = vmin.xlane.f32.xlu0 %v1385
        %v1387 = vpop.xlane.xlu0 %1386
        %vm1388 = vcmp.eq.f32.partialorder %v1385, %v1387
        %v1389 = vsel %vm1388, %v1384, inf
        %1390 = vmin.xlane.f32.xlu0 %v1389
        %v1391 = vpop.xlane.xlu0 %1390
        %v1392 = vcvt.f32.s32 %v1391
        %v1393 = vcvt.f32.s32 %v1387
        %v1394 = vshll.u32 %v1393, 16
        %v1395 = vadd.s32 %v1394, %v1392
        %vm1396 = vcmp.eq.s32.totalorder %v1268, %v1290
        %vm1397 = vcmp.eq.s32.totalorder %v1269, %v1305
        %vm1398 = vcmp.eq.s32.totalorder %v1270, %v1320
        %vm1399 = vcmp.eq.s32.totalorder %v1271, %v1335
        %vm1400 = vcmp.eq.s32.totalorder %v1272, %v1350
        %vm1401 = vcmp.eq.s32.totalorder %v1273, %v1365
        %vm1402 = vcmp.eq.s32.totalorder %v1274, %v1380
        %vm1403 = vcmp.eq.s32.totalorder %v1275, %v1395
        %v1404 = vsel %vm1396, %v633, 0.0
        %v1405 = vsel %vm1397, %v634, 0.0
        %v1406 = vsel %vm1398, %v635, 0.0
        %v1407 = vsel %vm1399, %v636, 0.0
        %v1408 = vsel %vm1400, %v637, 0.0
        %v1409 = vsel %vm1401, %v638, 0.0
        %v1410 = vsel %vm1402, %v639, 0.0
        %v1411 = vsel %vm1403, %v640, 0.0
        %v1412 = vadd.f32 %v1260, %v1404
        %v1413 = vadd.f32 %v1261, %v1405
        %v1414 = vadd.f32 %v1262, %v1406
        %v1415 = vadd.f32 %v1263, %v1407
        %v1416 = vadd.f32 %v1264, %v1408
        %v1417 = vadd.f32 %v1265, %v1409
        %v1418 = vadd.f32 %v1266, %v1410
        %v1419 = vadd.f32 %v1267, %v1411
        %v1420 = vsel %vm1396, 2147483647, %v1268
        %v1421 = vsel %vm1397, 2147483647, %v1269
        %v1422 = vsel %vm1398, 2147483647, %v1270
        %v1423 = vsel %vm1399, 2147483647, %v1271
        %v1424 = vsel %vm1400, 2147483647, %v1272
        %v1425 = vsel %vm1401, 2147483647, %v1273
        %v1426 = vsel %vm1402, 2147483647, %v1274
        %v1427 = vsel %vm1403, 2147483647, %v1275
        %v1428 = vsel %vm667, %v1420, 2147483647
        %v1429 = vand.u32 %v1428, 65535
        %v1430 = vshra.s32 %v1428, 16
        %v1431 = vcvt.s32.f32 %v1429
        %v1432 = vcvt.s32.f32 %v1430
        %1433 = vmin.xlane.f32.xlu0 %v1432
        %v1434 = vpop.xlane.xlu0 %1433
        %vm1435 = vcmp.eq.f32.partialorder %v1432, %v1434
        %v1436 = vsel %vm1435, %v1431, inf
        %1437 = vmin.xlane.f32.xlu0 %v1436
        %v1438 = vpop.xlane.xlu0 %1437
        %v1439 = vcvt.f32.s32 %v1438
        %v1440 = vcvt.f32.s32 %v1434
        %v1441 = vshll.u32 %v1440, 16
        %v1442 = vadd.s32 %v1441, %v1439
        %v1443 = vsel %vm667, %v1421, 2147483647
        %v1444 = vand.u32 %v1443, 65535
        %v1445 = vshra.s32 %v1443, 16
        %v1446 = vcvt.s32.f32 %v1444
        %v1447 = vcvt.s32.f32 %v1445
        %1448 = vmin.xlane.f32.xlu0 %v1447
        %v1449 = vpop.xlane.xlu0 %1448
        %vm1450 = vcmp.eq.f32.partialorder %v1447, %v1449
        %v1451 = vsel %vm1450, %v1446, inf
        %1452 = vmin.xlane.f32.xlu0 %v1451
        %v1453 = vpop.xlane.xlu0 %1452
        %v1454 = vcvt.f32.s32 %v1453
        %v1455 = vcvt.f32.s32 %v1449
        %v1456 = vshll.u32 %v1455, 16
        %v1457 = vadd.s32 %v1456, %v1454
        %v1458 = vsel %vm667, %v1422, 2147483647
        %v1459 = vand.u32 %v1458, 65535
        %v1460 = vshra.s32 %v1458, 16
        %v1461 = vcvt.s32.f32 %v1459
        %v1462 = vcvt.s32.f32 %v1460
        %1463 = vmin.xlane.f32.xlu0 %v1462
        %v1464 = vpop.xlane.xlu0 %1463
        %vm1465 = vcmp.eq.f32.partialorder %v1462, %v1464
        %v1466 = vsel %vm1465, %v1461, inf
        %1467 = vmin.xlane.f32.xlu0 %v1466
        %v1468 = vpop.xlane.xlu0 %1467
        %v1469 = vcvt.f32.s32 %v1468
        %v1470 = vcvt.f32.s32 %v1464
        %v1471 = vshll.u32 %v1470, 16
        %v1472 = vadd.s32 %v1471, %v1469
        %v1473 = vsel %vm667, %v1423, 2147483647
        %v1474 = vand.u32 %v1473, 65535
        %v1475 = vshra.s32 %v1473, 16
        %v1476 = vcvt.s32.f32 %v1474
        %v1477 = vcvt.s32.f32 %v1475
        %1478 = vmin.xlane.f32.xlu0 %v1477
        %v1479 = vpop.xlane.xlu0 %1478
        %vm1480 = vcmp.eq.f32.partialorder %v1477, %v1479
        %v1481 = vsel %vm1480, %v1476, inf
        %1482 = vmin.xlane.f32.xlu0 %v1481
        %v1483 = vpop.xlane.xlu0 %1482
        %v1484 = vcvt.f32.s32 %v1483
        %v1485 = vcvt.f32.s32 %v1479
        %v1486 = vshll.u32 %v1485, 16
        %v1487 = vadd.s32 %v1486, %v1484
        %v1488 = vsel %vm667, %v1424, 2147483647
        %v1489 = vand.u32 %v1488, 65535
        %v1490 = vshra.s32 %v1488, 16
        %v1491 = vcvt.s32.f32 %v1489
        %v1492 = vcvt.s32.f32 %v1490
        %1493 = vmin.xlane.f32.xlu0 %v1492
        %v1494 = vpop.xlane.xlu0 %1493
        %vm1495 = vcmp.eq.f32.partialorder %v1492, %v1494
        %v1496 = vsel %vm1495, %v1491, inf
        %1497 = vmin.xlane.f32.xlu0 %v1496
        %v1498 = vpop.xlane.xlu0 %1497
        %v1499 = vcvt.f32.s32 %v1498
        %v1500 = vcvt.f32.s32 %v1494
        %v1501 = vshll.u32 %v1500, 16
        %v1502 = vadd.s32 %v1501, %v1499
        %v1503 = vsel %vm667, %v1425, 2147483647
        %v1504 = vand.u32 %v1503, 65535
        %v1505 = vshra.s32 %v1503, 16
        %v1506 = vcvt.s32.f32 %v1504
        %v1507 = vcvt.s32.f32 %v1505
        %1508 = vmin.xlane.f32.xlu0 %v1507
        %v1509 = vpop.xlane.xlu0 %1508
        %vm1510 = vcmp.eq.f32.partialorder %v1507, %v1509
        %v1511 = vsel %vm1510, %v1506, inf
        %1512 = vmin.xlane.f32.xlu0 %v1511
        %v1513 = vpop.xlane.xlu0 %1512
        %v1514 = vcvt.f32.s32 %v1513
        %v1515 = vcvt.f32.s32 %v1509
        %v1516 = vshll.u32 %v1515, 16
        %v1517 = vadd.s32 %v1516, %v1514
        %v1518 = vsel %vm667, %v1426, 2147483647
        %v1519 = vand.u32 %v1518, 65535
        %v1520 = vshra.s32 %v1518, 16
        %v1521 = vcvt.s32.f32 %v1519
        %v1522 = vcvt.s32.f32 %v1520
        %1523 = vmin.xlane.f32.xlu0 %v1522
        %v1524 = vpop.xlane.xlu0 %1523
        %vm1525 = vcmp.eq.f32.partialorder %v1522, %v1524
        %v1526 = vsel %vm1525, %v1521, inf
        %1527 = vmin.xlane.f32.xlu0 %v1526
        %v1528 = vpop.xlane.xlu0 %1527
        %v1529 = vcvt.f32.s32 %v1528
        %v1530 = vcvt.f32.s32 %v1524
        %v1531 = vshll.u32 %v1530, 16
        %v1532 = vadd.s32 %v1531, %v1529
        %v1533 = vsel %vm667, %v1427, 2147483647
        %v1534 = vand.u32 %v1533, 65535
        %v1535 = vshra.s32 %v1533, 16
        %v1536 = vcvt.s32.f32 %v1534
        %v1537 = vcvt.s32.f32 %v1535
        %1538 = vmin.xlane.f32.xlu0 %v1537
        %v1539 = vpop.xlane.xlu0 %1538
        %vm1540 = vcmp.eq.f32.partialorder %v1537, %v1539
        %v1541 = vsel %vm1540, %v1536, inf
        %1542 = vmin.xlane.f32.xlu0 %v1541
        %v1543 = vpop.xlane.xlu0 %1542
        %v1544 = vcvt.f32.s32 %v1543
        %v1545 = vcvt.f32.s32 %v1539
        %v1546 = vshll.u32 %v1545, 16
        %v1547 = vadd.s32 %v1546, %v1544
        %vm1548 = vcmp.eq.s32.totalorder %v1420, %v1442
        %vm1549 = vcmp.eq.s32.totalorder %v1421, %v1457
        %vm1550 = vcmp.eq.s32.totalorder %v1422, %v1472
        %vm1551 = vcmp.eq.s32.totalorder %v1423, %v1487
        %vm1552 = vcmp.eq.s32.totalorder %v1424, %v1502
        %vm1553 = vcmp.eq.s32.totalorder %v1425, %v1517
        %vm1554 = vcmp.eq.s32.totalorder %v1426, %v1532
        %vm1555 = vcmp.eq.s32.totalorder %v1427, %v1547
        %v1556 = vsel %vm1548, %v633, 0.0
        %v1557 = vsel %vm1549, %v634, 0.0
        %v1558 = vsel %vm1550, %v635, 0.0
        %v1559 = vsel %vm1551, %v636, 0.0
        %v1560 = vsel %vm1552, %v637, 0.0
        %v1561 = vsel %vm1553, %v638, 0.0
        %v1562 = vsel %vm1554, %v639, 0.0
        %v1563 = vsel %vm1555, %v640, 0.0
        %v1564 = vadd.f32 %v1412, %v1556
        %v1565 = vadd.f32 %v1413, %v1557
        %v1566 = vadd.f32 %v1414, %v1558
        %v1567 = vadd.f32 %v1415, %v1559
        %v1568 = vadd.f32 %v1416, %v1560
        %v1569 = vadd.f32 %v1417, %v1561
        %v1570 = vadd.f32 %v1418, %v1562
        %v1571 = vadd.f32 %v1419, %v1563
        %v1572 = vsel %vm1548, 2147483647, %v1420
        %v1573 = vsel %vm1549, 2147483647, %v1421
        %v1574 = vsel %vm1550, 2147483647, %v1422
        %v1575 = vsel %vm1551, 2147483647, %v1423
        %v1576 = vsel %vm1552, 2147483647, %v1424
        %v1577 = vsel %vm1553, 2147483647, %v1425
        %v1578 = vsel %vm1554, 2147483647, %v1426
        %v1579 = vsel %vm1555, 2147483647, %v1427
        %v1580 = vsel %vm667, %v1572, 2147483647
        %v1581 = vand.u32 %v1580, 65535
        %v1582 = vshra.s32 %v1580, 16
        %v1583 = vcvt.s32.f32 %v1581
        %v1584 = vcvt.s32.f32 %v1582
        %1585 = vmin.xlane.f32.xlu0 %v1584
        %v1586 = vpop.xlane.xlu0 %1585
        %vm1587 = vcmp.eq.f32.partialorder %v1584, %v1586
        %v1588 = vsel %vm1587, %v1583, inf
        %1589 = vmin.xlane.f32.xlu0 %v1588
        %v1590 = vpop.xlane.xlu0 %1589
        %v1591 = vcvt.f32.s32 %v1590
        %v1592 = vcvt.f32.s32 %v1586
        %v1593 = vshll.u32 %v1592, 16
        %v1594 = vadd.s32 %v1593, %v1591
        %v1595 = vsel %vm667, %v1573, 2147483647
        %v1596 = vand.u32 %v1595, 65535
        %v1597 = vshra.s32 %v1595, 16
        %v1598 = vcvt.s32.f32 %v1596
        %v1599 = vcvt.s32.f32 %v1597
        %1600 = vmin.xlane.f32.xlu0 %v1599
        %v1601 = vpop.xlane.xlu0 %1600
        %vm1602 = vcmp.eq.f32.partialorder %v1599, %v1601
        %v1603 = vsel %vm1602, %v1598, inf
        %1604 = vmin.xlane.f32.xlu0 %v1603
        %v1605 = vpop.xlane.xlu0 %1604
        %v1606 = vcvt.f32.s32 %v1605
        %v1607 = vcvt.f32.s32 %v1601
        %v1608 = vshll.u32 %v1607, 16
        %v1609 = vadd.s32 %v1608, %v1606
        %v1610 = vsel %vm667, %v1574, 2147483647
        %v1611 = vand.u32 %v1610, 65535
        %v1612 = vshra.s32 %v1610, 16
        %v1613 = vcvt.s32.f32 %v1611
        %v1614 = vcvt.s32.f32 %v1612
        %1615 = vmin.xlane.f32.xlu0 %v1614
        %v1616 = vpop.xlane.xlu0 %1615
        %vm1617 = vcmp.eq.f32.partialorder %v1614, %v1616
        %v1618 = vsel %vm1617, %v1613, inf
        %1619 = vmin.xlane.f32.xlu0 %v1618
        %v1620 = vpop.xlane.xlu0 %1619
        %v1621 = vcvt.f32.s32 %v1620
        %v1622 = vcvt.f32.s32 %v1616
        %v1623 = vshll.u32 %v1622, 16
        %v1624 = vadd.s32 %v1623, %v1621
        %v1625 = vsel %vm667, %v1575, 2147483647
        %v1626 = vand.u32 %v1625, 65535
        %v1627 = vshra.s32 %v1625, 16
        %v1628 = vcvt.s32.f32 %v1626
        %v1629 = vcvt.s32.f32 %v1627
        %1630 = vmin.xlane.f32.xlu0 %v1629
        %v1631 = vpop.xlane.xlu0 %1630
        %vm1632 = vcmp.eq.f32.partialorder %v1629, %v1631
        %v1633 = vsel %vm1632, %v1628, inf
        %1634 = vmin.xlane.f32.xlu0 %v1633
        %v1635 = vpop.xlane.xlu0 %1634
        %v1636 = vcvt.f32.s32 %v1635
        %v1637 = vcvt.f32.s32 %v1631
        %v1638 = vshll.u32 %v1637, 16
        %v1639 = vadd.s32 %v1638, %v1636
        %v1640 = vsel %vm667, %v1576, 2147483647
        %v1641 = vand.u32 %v1640, 65535
        %v1642 = vshra.s32 %v1640, 16
        %v1643 = vcvt.s32.f32 %v1641
        %v1644 = vcvt.s32.f32 %v1642
        %1645 = vmin.xlane.f32.xlu0 %v1644
        %v1646 = vpop.xlane.xlu0 %1645
        %vm1647 = vcmp.eq.f32.partialorder %v1644, %v1646
        %v1648 = vsel %vm1647, %v1643, inf
        %1649 = vmin.xlane.f32.xlu0 %v1648
        %v1650 = vpop.xlane.xlu0 %1649
        %v1651 = vcvt.f32.s32 %v1650
        %v1652 = vcvt.f32.s32 %v1646
        %v1653 = vshll.u32 %v1652, 16
        %v1654 = vadd.s32 %v1653, %v1651
        %v1655 = vsel %vm667, %v1577, 2147483647
        %v1656 = vand.u32 %v1655, 65535
        %v1657 = vshra.s32 %v1655, 16
        %v1658 = vcvt.s32.f32 %v1656
        %v1659 = vcvt.s32.f32 %v1657
        %1660 = vmin.xlane.f32.xlu0 %v1659
        %v1661 = vpop.xlane.xlu0 %1660
        %vm1662 = vcmp.eq.f32.partialorder %v1659, %v1661
        %v1663 = vsel %vm1662, %v1658, inf
        %1664 = vmin.xlane.f32.xlu0 %v1663
        %v1665 = vpop.xlane.xlu0 %1664
        %v1666 = vcvt.f32.s32 %v1665
        %v1667 = vcvt.f32.s32 %v1661
        %v1668 = vshll.u32 %v1667, 16
        %v1669 = vadd.s32 %v1668, %v1666
        %v1670 = vsel %vm667, %v1578, 2147483647
        %v1671 = vand.u32 %v1670, 65535
        %v1672 = vshra.s32 %v1670, 16
        %v1673 = vcvt.s32.f32 %v1671
        %v1674 = vcvt.s32.f32 %v1672
        %1675 = vmin.xlane.f32.xlu0 %v1674
        %v1676 = vpop.xlane.xlu0 %1675
        %vm1677 = vcmp.eq.f32.partialorder %v1674, %v1676
        %v1678 = vsel %vm1677, %v1673, inf
        %1679 = vmin.xlane.f32.xlu0 %v1678
        %v1680 = vpop.xlane.xlu0 %1679
        %v1681 = vcvt.f32.s32 %v1680
        %v1682 = vcvt.f32.s32 %v1676
        %v1683 = vshll.u32 %v1682, 16
        %v1684 = vadd.s32 %v1683, %v1681
        %v1685 = vsel %vm667, %v1579, 2147483647
        %v1686 = vand.u32 %v1685, 65535
        %v1687 = vshra.s32 %v1685, 16
        %v1688 = vcvt.s32.f32 %v1686
        %v1689 = vcvt.s32.f32 %v1687
        %1690 = vmin.xlane.f32.xlu0 %v1689
        %v1691 = vpop.xlane.xlu0 %1690
        %vm1692 = vcmp.eq.f32.partialorder %v1689, %v1691
        %v1693 = vsel %vm1692, %v1688, inf
        %1694 = vmin.xlane.f32.xlu0 %v1693
        %v1695 = vpop.xlane.xlu0 %1694
        %v1696 = vcvt.f32.s32 %v1695
        %v1697 = vcvt.f32.s32 %v1691
        %v1698 = vshll.u32 %v1697, 16
        %v1699 = vadd.s32 %v1698, %v1696
        %vm1700 = vcmp.eq.s32.totalorder %v1572, %v1594
        %vm1701 = vcmp.eq.s32.totalorder %v1573, %v1609
        %vm1702 = vcmp.eq.s32.totalorder %v1574, %v1624
        %vm1703 = vcmp.eq.s32.totalorder %v1575, %v1639
        %vm1704 = vcmp.eq.s32.totalorder %v1576, %v1654
        %vm1705 = vcmp.eq.s32.totalorder %v1577, %v1669
        %vm1706 = vcmp.eq.s32.totalorder %v1578, %v1684
        %vm1707 = vcmp.eq.s32.totalorder %v1579, %v1699
        %v1708 = vsel %vm1700, %v633, 0.0
        %v1709 = vsel %vm1701, %v634, 0.0
        %v1710 = vsel %vm1702, %v635, 0.0
        %v1711 = vsel %vm1703, %v636, 0.0
        %v1712 = vsel %vm1704, %v637, 0.0
        %v1713 = vsel %vm1705, %v638, 0.0
        %v1714 = vsel %vm1706, %v639, 0.0
        %v1715 = vsel %vm1707, %v640, 0.0
        %v1716 = vadd.f32 %v1564, %v1708
        %v1717 = vadd.f32 %v1565, %v1709
        %v1718 = vadd.f32 %v1566, %v1710
        %v1719 = vadd.f32 %v1567, %v1711
        %v1720 = vadd.f32 %v1568, %v1712
        %v1721 = vadd.f32 %v1569, %v1713
        %v1722 = vadd.f32 %v1570, %v1714
        %v1723 = vadd.f32 %v1571, %v1715
        %v1724 = vsel %vm1700, 2147483647, %v1572
        %v1725 = vsel %vm1701, 2147483647, %v1573
        %v1726 = vsel %vm1702, 2147483647, %v1574
        %v1727 = vsel %vm1703, 2147483647, %v1575
        %v1728 = vsel %vm1704, 2147483647, %v1576
        %v1729 = vsel %vm1705, 2147483647, %v1577
        %v1730 = vsel %vm1706, 2147483647, %v1578
        %v1731 = vsel %vm1707, 2147483647, %v1579
        %v1732 = vsel %vm667, %v1724, 2147483647
        %v1733 = vand.u32 %v1732, 65535
        %v1734 = vshra.s32 %v1732, 16
        %v1735 = vcvt.s32.f32 %v1733
        %v1736 = vcvt.s32.f32 %v1734
        %1737 = vmin.xlane.f32.xlu0 %v1736
        %v1738 = vpop.xlane.xlu0 %1737
        %vm1739 = vcmp.eq.f32.partialorder %v1736, %v1738
        %v1740 = vsel %vm1739, %v1735, inf
        %1741 = vmin.xlane.f32.xlu0 %v1740
        %v1742 = vpop.xlane.xlu0 %1741
        %v1743 = vcvt.f32.s32 %v1742
        %v1744 = vcvt.f32.s32 %v1738
        %v1745 = vshll.u32 %v1744, 16
        %v1746 = vadd.s32 %v1745, %v1743
        %v1747 = vsel %vm667, %v1725, 2147483647
        %v1748 = vand.u32 %v1747, 65535
        %v1749 = vshra.s32 %v1747, 16
        %v1750 = vcvt.s32.f32 %v1748
        %v1751 = vcvt.s32.f32 %v1749
        %1752 = vmin.xlane.f32.xlu0 %v1751
        %v1753 = vpop.xlane.xlu0 %1752
        %vm1754 = vcmp.eq.f32.partialorder %v1751, %v1753
        %v1755 = vsel %vm1754, %v1750, inf
        %1756 = vmin.xlane.f32.xlu0 %v1755
        %v1757 = vpop.xlane.xlu0 %1756
        %v1758 = vcvt.f32.s32 %v1757
        %v1759 = vcvt.f32.s32 %v1753
        %v1760 = vshll.u32 %v1759, 16
        %v1761 = vadd.s32 %v1760, %v1758
        %v1762 = vsel %vm667, %v1726, 2147483647
        %v1763 = vand.u32 %v1762, 65535
        %v1764 = vshra.s32 %v1762, 16
        %v1765 = vcvt.s32.f32 %v1763
        %v1766 = vcvt.s32.f32 %v1764
        %1767 = vmin.xlane.f32.xlu0 %v1766
        %v1768 = vpop.xlane.xlu0 %1767
        %vm1769 = vcmp.eq.f32.partialorder %v1766, %v1768
        %v1770 = vsel %vm1769, %v1765, inf
        %1771 = vmin.xlane.f32.xlu0 %v1770
        %v1772 = vpop.xlane.xlu0 %1771
        %v1773 = vcvt.f32.s32 %v1772
        %v1774 = vcvt.f32.s32 %v1768
        %v1775 = vshll.u32 %v1774, 16
        %v1776 = vadd.s32 %v1775, %v1773
        %v1777 = vsel %vm667, %v1727, 2147483647
        %v1778 = vand.u32 %v1777, 65535
        %v1779 = vshra.s32 %v1777, 16
        %v1780 = vcvt.s32.f32 %v1778
        %v1781 = vcvt.s32.f32 %v1779
        %1782 = vmin.xlane.f32.xlu0 %v1781
        %v1783 = vpop.xlane.xlu0 %1782
        %vm1784 = vcmp.eq.f32.partialorder %v1781, %v1783
        %v1785 = vsel %vm1784, %v1780, inf
        %1786 = vmin.xlane.f32.xlu0 %v1785
        %v1787 = vpop.xlane.xlu0 %1786
        %v1788 = vcvt.f32.s32 %v1787
        %v1789 = vcvt.f32.s32 %v1783
        %v1790 = vshll.u32 %v1789, 16
        %v1791 = vadd.s32 %v1790, %v1788
        %v1792 = vsel %vm667, %v1728, 2147483647
        %v1793 = vand.u32 %v1792, 65535
        %v1794 = vshra.s32 %v1792, 16
        %v1795 = vcvt.s32.f32 %v1793
        %v1796 = vcvt.s32.f32 %v1794
        %1797 = vmin.xlane.f32.xlu0 %v1796
        %v1798 = vpop.xlane.xlu0 %1797
        %vm1799 = vcmp.eq.f32.partialorder %v1796, %v1798
        %v1800 = vsel %vm1799, %v1795, inf
        %1801 = vmin.xlane.f32.xlu0 %v1800
        %v1802 = vpop.xlane.xlu0 %1801
        %v1803 = vcvt.f32.s32 %v1802
        %v1804 = vcvt.f32.s32 %v1798
        %v1805 = vshll.u32 %v1804, 16
        %v1806 = vadd.s32 %v1805, %v1803
        %v1807 = vsel %vm667, %v1729, 2147483647
        %v1808 = vand.u32 %v1807, 65535
        %v1809 = vshra.s32 %v1807, 16
        %v1810 = vcvt.s32.f32 %v1808
        %v1811 = vcvt.s32.f32 %v1809
        %1812 = vmin.xlane.f32.xlu0 %v1811
        %v1813 = vpop.xlane.xlu0 %1812
        %vm1814 = vcmp.eq.f32.partialorder %v1811, %v1813
        %v1815 = vsel %vm1814, %v1810, inf
        %1816 = vmin.xlane.f32.xlu0 %v1815
        %v1817 = vpop.xlane.xlu0 %1816
        %v1818 = vcvt.f32.s32 %v1817
        %v1819 = vcvt.f32.s32 %v1813
        %v1820 = vshll.u32 %v1819, 16
        %v1821 = vadd.s32 %v1820, %v1818
        %v1822 = vsel %vm667, %v1730, 2147483647
        %v1823 = vand.u32 %v1822, 65535
        %v1824 = vshra.s32 %v1822, 16
        %v1825 = vcvt.s32.f32 %v1823
        %v1826 = vcvt.s32.f32 %v1824
        %1827 = vmin.xlane.f32.xlu0 %v1826
        %v1828 = vpop.xlane.xlu0 %1827
        %vm1829 = vcmp.eq.f32.partialorder %v1826, %v1828
        %v1830 = vsel %vm1829, %v1825, inf
        %1831 = vmin.xlane.f32.xlu0 %v1830
        %v1832 = vpop.xlane.xlu0 %1831
        %v1833 = vcvt.f32.s32 %v1832
        %v1834 = vcvt.f32.s32 %v1828
        %v1835 = vshll.u32 %v1834, 16
        %v1836 = vadd.s32 %v1835, %v1833
        %v1837 = vsel %vm667, %v1731, 2147483647
        %v1838 = vand.u32 %v1837, 65535
        %v1839 = vshra.s32 %v1837, 16
        %v1840 = vcvt.s32.f32 %v1838
        %v1841 = vcvt.s32.f32 %v1839
        %1842 = vmin.xlane.f32.xlu0 %v1841
        %v1843 = vpop.xlane.xlu0 %1842
        %vm1844 = vcmp.eq.f32.partialorder %v1841, %v1843
        %v1845 = vsel %vm1844, %v1840, inf
        %1846 = vmin.xlane.f32.xlu0 %v1845
        %v1847 = vpop.xlane.xlu0 %1846
        %v1848 = vcvt.f32.s32 %v1847
        %v1849 = vcvt.f32.s32 %v1843
        %v1850 = vshll.u32 %v1849, 16
        %v1851 = vadd.s32 %v1850, %v1848
        %vm1852 = vcmp.eq.s32.totalorder %v1724, %v1746
        %vm1853 = vcmp.eq.s32.totalorder %v1725, %v1761
        %vm1854 = vcmp.eq.s32.totalorder %v1726, %v1776
        %vm1855 = vcmp.eq.s32.totalorder %v1727, %v1791
        %vm1856 = vcmp.eq.s32.totalorder %v1728, %v1806
        %vm1857 = vcmp.eq.s32.totalorder %v1729, %v1821
        %vm1858 = vcmp.eq.s32.totalorder %v1730, %v1836
        %vm1859 = vcmp.eq.s32.totalorder %v1731, %v1851
        %v1860 = vsel %vm1852, %v633, 0.0
        %v1861 = vsel %vm1853, %v634, 0.0
        %v1862 = vsel %vm1854, %v635, 0.0
        %v1863 = vsel %vm1855, %v636, 0.0
        %v1864 = vsel %vm1856, %v637, 0.0
        %v1865 = vsel %vm1857, %v638, 0.0
        %v1866 = vsel %vm1858, %v639, 0.0
        %v1867 = vsel %vm1859, %v640, 0.0
        %v1868 = vadd.f32 %v1716, %v1860
        %v1869 = vadd.f32 %v1717, %v1861
        %v1870 = vadd.f32 %v1718, %v1862
        %v1871 = vadd.f32 %v1719, %v1863
        %v1872 = vadd.f32 %v1720, %v1864
        %v1873 = vadd.f32 %v1721, %v1865
        %v1874 = vadd.f32 %v1722, %v1866
        %v1875 = vadd.f32 %v1723, %v1867
        %v1876 = vsel %vm667, %v1868, 0.0
        %1877 = vadd.xlane.f32.xlu0 %v1876
        %v1878 = vpop.xlane.xlu0 %1877
        %v1879 = vsel %vm667, %v1869, 0.0
        %1880 = vadd.xlane.f32.xlu0 %v1879
        %v1881 = vpop.xlane.xlu0 %1880
        %v1882 = vsel %vm667, %v1870, 0.0
        %1883 = vadd.xlane.f32.xlu0 %v1882
        %v1884 = vpop.xlane.xlu0 %1883
        %v1885 = vsel %vm667, %v1871, 0.0
        %1886 = vadd.xlane.f32.xlu0 %v1885
        %v1887 = vpop.xlane.xlu0 %1886
        %v1888 = vsel %vm667, %v1872, 0.0
        %1889 = vadd.xlane.f32.xlu0 %v1888
        %v1890 = vpop.xlane.xlu0 %1889
        %v1891 = vsel %vm667, %v1873, 0.0
        %1892 = vadd.xlane.f32.xlu0 %v1891
        %v1893 = vpop.xlane.xlu0 %1892
        %v1894 = vsel %vm667, %v1874, 0.0
        %1895 = vadd.xlane.f32.xlu0 %v1894
        %v1896 = vpop.xlane.xlu0 %1895
        %v1897 = vsel %vm667, %v1875, 0.0
        %1898 = vadd.xlane.f32.xlu0 %v1897
        %v1899 = vpop.xlane.xlu0 %1898
        %v1900 = vrcp.pop %v1878
        %v1901 = vrcp.pop %v1881
        %v1902 = vrcp.pop %v1884
        %v1903 = vrcp.pop %v1887
        %v1904 = vrcp.pop %v1890
        %v1905 = vrcp.pop %v1893
        %v1906 = vrcp.pop %v1896
        %v1907 = vrcp.pop %v1899
        %v1908 = vmul.f32 %v1868, %v1900
        %v1909 = vmul.f32 %v1869, %v1901
        %v1910 = vmul.f32 %v1870, %v1902
        %v1911 = vmul.f32 %v1871, %v1903
        %v1912 = vmul.f32 %v1872, %v1904
        %v1913 = vmul.f32 %v1873, %v1905
        %v1914 = vmul.f32 %v1874, %v1906
        %v1915 = vmul.f32 %v1875, %v1907
        %v1916 = vpack.c.bf16 %v1909, %v1908
        %v1917 = vpack.c.bf16 %v1911, %v1910
        %v1918 = vpack.c.bf16 %v1913, %v1912
        %v1919 = vpack.c.bf16 %v1915, %v1914
        %v1920 = vld [vmem:[%s423] sm:$0xff]
        %v1921 = vld [vmem:[%s423 + $0x8] sm:$0xff]
        %v1922 = vld [vmem:[%s423 + $0x10] sm:$0xff]
        %v1923 = vld [vmem:[%s423 + $0x18] sm:$0xff]
        %v1924 = vpack.c.bf16 %v1921, %v1920
        %v1925 = vpack.c.bf16 %v1923, %v1922
        %v1927 = vsel %vm667, %v1916, 0
        %v1930 = vsel %vm667, %v1917, 0
        %v1933 = vsel %vm667, %v1918, 0
        %v1936 = vsel %vm667, %v1919, 0
        %1938 = vmatprep.subr.bf16.mxu0 0
        %1939 = vmatpush1.bf16.msra.mxu0 0
        %1940 = vmatprep.subr.bf16.mxu0 0
        %1941 = vmatpush1.bf16.msra.mxu0 0
        %1942 = vmatprep.subr.bf16.mxu0 0
        %1943 = vmatpush1.bf16.msra.mxu0 0
        %1944 = vmatprep.subr.bf16.mxu0 0
        %1945 = vmatpush1.bf16.msra.mxu0 0
        %1946 = vmatprep.subr.bf16.mxu0 0
        %1947 = vmatpush1.bf16.msra.mxu0 0
        %1948 = vmatprep.subr.bf16.mxu0 0
        %1949 = vmatpush1.bf16.msra.mxu0 0
        %1950 = vmatprep.subr.bf16.mxu0 0
        %1951 = vmatpush1.bf16.msra.mxu0 %v1925
        %1952 = vmatprep.subr.bf16.mxu0 0
        %1953 = vmatpush1.bf16.msra.mxu0 %v1924
        %1954 = vmatprep.subr.bf16.mxu0 0
        %1955 = vmatpush2.bf16.msra.mxu0 0
        %1956 = vmatprep.subr.bf16.mxu0 0
        %1957 = vmatpush2.bf16.msra.mxu0 0
        %1958 = vmatprep.subr.bf16.mxu0 0
        %1959 = vmatpush2.bf16.msra.mxu0 0
        %1960 = vmatprep.subr.bf16.mxu0 0
        %1961 = vmatpush2.bf16.msra.mxu0 0
        %1962 = vmatprep.subr.bf16.mxu0 0
        %1963 = vmatpush2.bf16.msra.mxu0 0
        %1964 = vmatprep.subr.bf16.mxu0 0
        %1965 = vmatpush2.bf16.msra.mxu0 0
        %1966 = vmatprep.subr.bf16.mxu0 0
        %1967 = vmatpush2.bf16.msra.mxu0 0
        %1968 = vmatprep.subr.bf16.mxu0 0
        %1969 = vmatpush2.bf16.msra.mxu0 0
        %1970 = vmatprep.mubr.bf16.mxu0 0
        %1971 = vmatmul.mubr.bf16.gmra.mxu0 %v1927
        %v1972 = vpop.f32.mrf.mxu0
        %v1973 = vadd.f32 0.0, %v1972
        %v1974 = vpop.f32.mrf.mxu0
        %v1975 = vpop.f32.mrf.mxu0
        %v1976 = vadd.f32 0.0, %v1975
        %v1977 = vpop.f32.mrf.mxu0
        %1978 = vmatprep.mubr.bf16.mxu0 0
        %1979 = vmatmul.mubr.bf16.gmra.mxu0 %v1930
        %v1980 = vpop.f32.mrf.mxu0
        %v1981 = vadd.f32 0.0, %v1980
        %v1982 = vpop.f32.mrf.mxu0
        %v1983 = vpop.f32.mrf.mxu0
        %v1984 = vadd.f32 0.0, %v1983
        %v1985 = vpop.f32.mrf.mxu0
        %1986 = vmatprep.mubr.bf16.mxu0 0
        %1987 = vmatmul.mubr.bf16.gmra.mxu0 %v1933
        %v1988 = vpop.f32.mrf.mxu0
        %v1989 = vadd.f32 0.0, %v1988
        %v1990 = vpop.f32.mrf.mxu0
        %v1991 = vpop.f32.mrf.mxu0
        %v1992 = vadd.f32 0.0, %v1991
        %v1993 = vpop.f32.mrf.mxu0
        %1994 = vmatprep.mubr.bf16.mxu0 0
        %1995 = vmatmul.mubr.bf16.gmra.mxu0 %v1936
        %v1996 = vpop.f32.mrf.mxu0
        %v1997 = vadd.f32 0.0, %v1996
        %v1998 = vpop.f32.mrf.mxu0
        %v1999 = vpop.f32.mrf.mxu0
        %v2000 = vadd.f32 0.0, %v1999
        %v2001 = vpop.f32.mrf.mxu0
        %2002 = vdwg.mxu0
        %v2003 = vpack.c.bf16 %v1976, %v1973
        %v2004 = vpack.c.bf16 %v1984, %v1981
        %v2005 = vpack.c.bf16 %v1992, %v1989
        %v2006 = vpack.c.bf16 %v2000, %v1997
        %v2007 = vld [vmem:[%s5] sm:$0xf]
        %v2008 = vld [vmem:[%s432] sm:$0xff]
        %v2009 = vld [vmem:[%s432 + $0x8] sm:$0xff]
        %v2010 = vld [vmem:[%s432 + $0x10] sm:$0xff]
        %v2011 = vld [vmem:[%s432 + $0x18] sm:$0xff]
        %v2012 = vld [vmem:[%s432 + $0x20] sm:$0xff]
        %v2013 = vld [vmem:[%s432 + $0x28] sm:$0xff]
        %v2014 = vld [vmem:[%s432 + $0x30] sm:$0xff]
        %v2015 = vld [vmem:[%s432 + $0x38] sm:$0xff]
        %v2016 = vpack.c.bf16 %v2009, %v2008
        %v2017 = vpack.c.bf16 %v2011, %v2010
        %v2018 = vpack.c.bf16 %v2013, %v2012
        %v2019 = vpack.c.bf16 %v2015, %v2014
        %v2020 = vld [vmem:[%s4] sm:$0xf]
        %vm2021 = vcmask 64512
        %v2023 = vsel %vm2021, %v2016, 0
        %v2026 = vsel %vm2021, %v2017, 0
        %v2029 = vsel %vm2021, %v2018, 0
        %v2032 = vsel %vm2021, %v2019, 0
        %vm2034 = vcmask 1043456
        %v2036 = vsel %vm2034, %v2020, 0
        %2038 = vmatprep.subr.bf16.mxu0 0
        %2039 = vmatpush1.bf16.msra.mxu0 0
        %2040 = vmatprep.subr.bf16.mxu0 0
        %2041 = vmatpush1.bf16.msra.mxu0 0
        %2042 = vmatprep.subr.bf16.mxu0 0
        %2043 = vmatpush1.bf16.msra.mxu0 0
        %2044 = vmatprep.subr.bf16.mxu0 0
        %2045 = vmatpush1.bf16.msra.mxu0 0
        %2046 = vmatprep.subr.bf16.mxu0 0
        %2047 = vmatpush1.bf16.msra.mxu0 0
        %2048 = vmatprep.subr.bf16.mxu0 0
        %2049 = vmatpush1.bf16.msra.mxu0 0
        %2050 = vmatprep.subr.bf16.mxu0 0
        %2051 = vmatpush1.bf16.msra.mxu0 0
        %2052 = vmatprep.subr.bf16.mxu0 0
        %2053 = vmatpush1.bf16.msra.mxu0 %v2036
        %2054 = vmatprep.subr.bf16.mxu0 0
        %2055 = vmatpush2.bf16.msra.mxu0 0
        %2056 = vmatprep.subr.bf16.mxu0 0
        %2057 = vmatpush2.bf16.msra.mxu0 0
        %2058 = vmatprep.subr.bf16.mxu0 0
        %2059 = vmatpush2.bf16.msra.mxu0 0
        %2060 = vmatprep.subr.bf16.mxu0 0
        %2061 = vmatpush2.bf16.msra.mxu0 0
        %2062 = vmatprep.subr.bf16.mxu0 0
        %2063 = vmatpush2.bf16.msra.mxu0 0
        %2064 = vmatprep.subr.bf16.mxu0 0
        %2065 = vmatpush2.bf16.msra.mxu0 0
        %2066 = vmatprep.subr.bf16.mxu0 0
        %2067 = vmatpush2.bf16.msra.mxu0 0
        %2068 = vmatprep.subr.bf16.mxu0 0
        %2069 = vmatpush2.bf16.msra.mxu0 0
        %2070 = vmatprep.mubr.bf16.mxu0 0
        %2071 = vmatmul.mubr.bf16.gmra.mxu0 %v2023
        %v2072 = vpop.f32.mrf.mxu0
        %v2073 = vadd.f32 0.0, %v2072
        %v2074 = vpop.f32.mrf.mxu0
        %v2075 = vpop.f32.mrf.mxu0
        %v2076 = vadd.f32 0.0, %v2075
        %v2077 = vpop.f32.mrf.mxu0
        %2078 = vmatprep.mubr.bf16.mxu0 0
        %2079 = vmatmul.mubr.bf16.gmra.mxu0 %v2026
        %v2080 = vpop.f32.mrf.mxu0
        %v2081 = vadd.f32 0.0, %v2080
        %v2082 = vpop.f32.mrf.mxu0
        %v2083 = vpop.f32.mrf.mxu0
        %v2084 = vadd.f32 0.0, %v2083
        %v2085 = vpop.f32.mrf.mxu0
        %2086 = vmatprep.mubr.bf16.mxu0 0
        %2087 = vmatmul.mubr.bf16.gmra.mxu0 %v2029
        %v2088 = vpop.f32.mrf.mxu0
        %v2089 = vadd.f32 0.0, %v2088
        %v2090 = vpop.f32.mrf.mxu0
        %v2091 = vpop.f32.mrf.mxu0
        %v2092 = vadd.f32 0.0, %v2091
        %v2093 = vpop.f32.mrf.mxu0
        %2094 = vmatprep.mubr.bf16.mxu0 0
        %2095 = vmatmul.mubr.bf16.gmra.mxu0 %v2032
        %v2096 = vpop.f32.mrf.mxu0
        %v2097 = vadd.f32 0.0, %v2096
        %v2098 = vpop.f32.mrf.mxu0
        %v2099 = vpop.f32.mrf.mxu0
        %v2100 = vadd.f32 0.0, %v2099
        %v2101 = vpop.f32.mrf.mxu0
        %2102 = vdwg.mxu0
        %v2104 = vsel %vm2021, %v2003, 0
        %v2107 = vsel %vm2021, %v2004, 0
        %v2110 = vsel %vm2021, %v2005, 0
        %v2113 = vsel %vm2021, %v2006, 0
        %v2116 = vsel %vm2034, %v2007, 0
        %2118 = vmatprep.subr.bf16.mxu0 0
        %2119 = vmatpush1.bf16.msra.mxu0 0
        %2120 = vmatprep.subr.bf16.mxu0 0
        %2121 = vmatpush1.bf16.msra.mxu0 0
        %2122 = vmatprep.subr.bf16.mxu0 0
        %2123 = vmatpush1.bf16.msra.mxu0 0
        %2124 = vmatprep.subr.bf16.mxu0 0
        %2125 = vmatpush1.bf16.msra.mxu0 0
        %2126 = vmatprep.subr.bf16.mxu0 0
        %2127 = vmatpush1.bf16.msra.mxu0 0
        %2128 = vmatprep.subr.bf16.mxu0 0
        %2129 = vmatpush1.bf16.msra.mxu0 0
        %2130 = vmatprep.subr.bf16.mxu0 0
        %2131 = vmatpush1.bf16.msra.mxu0 0
        %2132 = vmatprep.subr.bf16.mxu0 0
        %2133 = vmatpush1.bf16.msra.mxu0 %v2116
        %2134 = vmatprep.subr.bf16.mxu0 0
        %2135 = vmatpush2.bf16.msra.mxu0 0
        %2136 = vmatprep.subr.bf16.mxu0 0
        %2137 = vmatpush2.bf16.msra.mxu0 0
        %2138 = vmatprep.subr.bf16.mxu0 0
        %2139 = vmatpush2.bf16.msra.mxu0 0
        %2140 = vmatprep.subr.bf16.mxu0 0
        %2141 = vmatpush2.bf16.msra.mxu0 0
        %2142 = vmatprep.subr.bf16.mxu0 0
        %2143 = vmatpush2.bf16.msra.mxu0 0
        %2144 = vmatprep.subr.bf16.mxu0 0
        %2145 = vmatpush2.bf16.msra.mxu0 0
        %2146 = vmatprep.subr.bf16.mxu0 0
        %2147 = vmatpush2.bf16.msra.mxu0 0
        %2148 = vmatprep.subr.bf16.mxu0 0
        %2149 = vmatpush2.bf16.msra.mxu0 0
        %2150 = vmatprep.mubr.bf16.mxu0 0
        %2151 = vmatmul.mubr.bf16.gmra.mxu0 %v2104
        %v2152 = vpop.f32.mrf.mxu0
        %v2153 = vadd.f32 %v2073, %v2152
        %v2154 = vpop.f32.mrf.mxu0
        %v2155 = vpop.f32.mrf.mxu0
        %v2156 = vadd.f32 %v2076, %v2155
        %v2157 = vpop.f32.mrf.mxu0
        %2158 = vmatprep.mubr.bf16.mxu0 0
        %2159 = vmatmul.mubr.bf16.gmra.mxu0 %v2107
        %v2160 = vpop.f32.mrf.mxu0
        %v2161 = vadd.f32 %v2081, %v2160
        %v2162 = vpop.f32.mrf.mxu0
        %v2163 = vpop.f32.mrf.mxu0
        %v2164 = vadd.f32 %v2084, %v2163
        %v2165 = vpop.f32.mrf.mxu0
        %2166 = vmatprep.mubr.bf16.mxu0 0
        %2167 = vmatmul.mubr.bf16.gmra.mxu0 %v2110
        %v2168 = vpop.f32.mrf.mxu0
        %v2169 = vadd.f32 %v2089, %v2168
        %v2170 = vpop.f32.mrf.mxu0
        %v2171 = vpop.f32.mrf.mxu0
        %v2172 = vadd.f32 %v2092, %v2171
        %v2173 = vpop.f32.mrf.mxu0
        %2174 = vmatprep.mubr.bf16.mxu0 0
        %2175 = vmatmul.mubr.bf16.gmra.mxu0 %v2113
        %v2176 = vpop.f32.mrf.mxu0
        %v2177 = vadd.f32 %v2097, %v2176
        %v2178 = vpop.f32.mrf.mxu0
        %v2179 = vpop.f32.mrf.mxu0
        %v2180 = vadd.f32 %v2100, %v2179
        %v2181 = vpop.f32.mrf.mxu0
        %2182 = vdwg.mxu0
        %v2183 = vld [vmem:[%s6] sm:$0x1]
        %v2185 = vlaneseq
        %v2186 = vshrl.u32 %v2185, 7
        %v2187 = vsub.s32 0, %v2186
        %v2188 = vrot.slane %v2183, %v2187
        %v2190 = vadd.f32 %v2153, %v2188
        %v2191 = vadd.f32 %v2156, %v2188
        %v2192 = vadd.f32 %v2161, %v2188
        %v2193 = vadd.f32 %v2164, %v2188
        %v2194 = vadd.f32 %v2169, %v2188
        %v2195 = vadd.f32 %v2172, %v2188
        %v2196 = vadd.f32 %v2177, %v2188
        %v2197 = vadd.f32 %v2180, %v2188
        %v2198 = vmax.f32 %v2190, 0.0
        %v2199 = vmax.f32 %v2191, 0.0
        %v2200 = vmax.f32 %v2192, 0.0
        %v2201 = vmax.f32 %v2193, 0.0
        %v2202 = vmax.f32 %v2194, 0.0
        %v2203 = vmax.f32 %v2195, 0.0
        %v2204 = vmax.f32 %v2196, 0.0
        %v2205 = vmax.f32 %v2197, 0.0
        %v2206 = vpack.c.bf16 %v2199, %v2198
        %v2207 = vpack.c.bf16 %v2201, %v2200
        %v2208 = vpack.c.bf16 %v2203, %v2202
        %v2209 = vpack.c.bf16 %v2205, %v2204
        %v2210 = vld [vmem:[%s7] sm:$0xf]
        %v2211 = vld [vmem:[%s7 + $0x4] sm:$0xf]
        %v2212 = vld [vmem:[%s7 + $0x8] sm:$0xf]
        %v2213 = vld [vmem:[%s7 + $0xc] sm:$0xf]
        %v2214 = vld [vmem:[%s7 + $0x10] sm:$0xf]
        %v2215 = vld [vmem:[%s7 + $0x14] sm:$0xf]
        %v2216 = vld [vmem:[%s7 + $0x18] sm:$0xf]
        %v2217 = vld [vmem:[%s7 + $0x1c] sm:$0xf]
        %v2218 = vld [vmem:[%s7 + $0x20] sm:$0xf]
        %v2219 = vld [vmem:[%s7 + $0x24] sm:$0xf]
        %v2220 = vld [vmem:[%s7 + $0x28] sm:$0xf]
        %v2221 = vld [vmem:[%s7 + $0x2c] sm:$0xf]
        %v2222 = vld [vmem:[%s7 + $0x30] sm:$0xf]
        %v2223 = vld [vmem:[%s7 + $0x34] sm:$0xf]
        %v2224 = vld [vmem:[%s7 + $0x38] sm:$0xf]
        %v2225 = vld [vmem:[%s7 + $0x3c] sm:$0xf]
        %v2226 = vld [vmem:[%s8] sm:$0x1]
        %v2228 = vlaneseq
        %v2229 = vshrl.u32 %v2228, 7
        %v2230 = vsub.s32 0, %v2229
        %v2231 = vrot.slane %v2226, %v2230
        %v2249 = vunpack.c.l.b16 %v2210
        %v2250 = vunpack.c.l.b16 %v2211
        %v2251 = vunpack.c.l.b16 %v2212
        %v2252 = vunpack.c.l.b16 %v2213
        %v2253 = vunpack.c.l.b16 %v2214
        %v2254 = vunpack.c.l.b16 %v2215
        %v2255 = vunpack.c.l.b16 %v2216
        %v2256 = vunpack.c.l.b16 %v2217
        %v2257 = vunpack.c.l.b16 %v2218
        %v2258 = vunpack.c.l.b16 %v2219
        %v2259 = vunpack.c.l.b16 %v2220
        %v2260 = vunpack.c.l.b16 %v2221
        %v2261 = vunpack.c.l.b16 %v2222
        %v2262 = vunpack.c.l.b16 %v2223
        %v2263 = vunpack.c.l.b16 %v2224
        %v2264 = vunpack.c.l.b16 %v2225
        %v2265 = vpack.c.b16 %v2250, %v2249
        %v2266 = vpack.c.b16 %v2252, %v2251
        %v2267 = vpack.c.b16 %v2254, %v2253
        %v2268 = vpack.c.b16 %v2256, %v2255
        %v2269 = vpack.c.b16 %v2258, %v2257
        %v2270 = vpack.c.b16 %v2260, %v2259
        %v2271 = vpack.c.b16 %v2262, %v2261
        %v2272 = vpack.c.b16 %v2264, %v2263
        %2281 = vmatprep.subr.bf16.mxu0 0
        %2282 = vmatpush1.bf16.msra.mxu0 %v2272
        %2283 = vmatprep.subr.bf16.mxu0 0
        %2284 = vmatpush1.bf16.msra.mxu0 %v2271
        %2285 = vmatprep.subr.bf16.mxu0 0
        %2286 = vmatpush1.bf16.msra.mxu0 %v2270
        %2287 = vmatprep.subr.bf16.mxu0 0
        %2288 = vmatpush1.bf16.msra.mxu0 %v2269
        %2289 = vmatprep.subr.bf16.mxu0 0
        %2290 = vmatpush1.bf16.msra.mxu0 %v2268
        %2291 = vmatprep.subr.bf16.mxu0 0
        %2292 = vmatpush1.bf16.msra.mxu0 %v2267
        %2293 = vmatprep.subr.bf16.mxu0 0
        %2294 = vmatpush1.bf16.msra.mxu0 %v2266
        %2295 = vmatprep.subr.bf16.mxu0 0
        %2296 = vmatpush1.bf16.msra.mxu0 %v2265
        %2297 = vmatprep.subr.bf16.mxu0 0
        %2298 = vmatpush2.bf16.msra.mxu0 0
        %2299 = vmatprep.subr.bf16.mxu0 0
        %2300 = vmatpush2.bf16.msra.mxu0 0
        %2301 = vmatprep.subr.bf16.mxu0 0
        %2302 = vmatpush2.bf16.msra.mxu0 0
        %2303 = vmatprep.subr.bf16.mxu0 0
        %2304 = vmatpush2.bf16.msra.mxu0 0
        %2305 = vmatprep.subr.bf16.mxu0 0
        %2306 = vmatpush2.bf16.msra.mxu0 0
        %2307 = vmatprep.subr.bf16.mxu0 0
        %2308 = vmatpush2.bf16.msra.mxu0 0
        %2309 = vmatprep.subr.bf16.mxu0 0
        %2310 = vmatpush2.bf16.msra.mxu0 0
        %2311 = vmatprep.subr.bf16.mxu0 0
        %2312 = vmatpush2.bf16.msra.mxu0 0
        %2313 = vmatprep.mubr.bf16.mxu0 0
        %2314 = vmatmul.mubr.bf16.gmra.mxu0 %v2206
        %v2315 = vpop.f32.mrf.mxu0
        %v2316 = vadd.f32 %v2231, %v2315
        %v2317 = vpop.f32.mrf.mxu0
        %v2318 = vpop.f32.mrf.mxu0
        %v2319 = vadd.f32 %v2231, %v2318
        %v2320 = vpop.f32.mrf.mxu0
        %2321 = vmatprep.mubr.bf16.mxu0 0
        %2322 = vmatmul.mubr.bf16.gmra.mxu0 %v2207
        %v2323 = vpop.f32.mrf.mxu0
        %v2324 = vadd.f32 %v2231, %v2323
        %v2325 = vpop.f32.mrf.mxu0
        %v2326 = vpop.f32.mrf.mxu0
        %v2327 = vadd.f32 %v2231, %v2326
        %v2328 = vpop.f32.mrf.mxu0
        %2329 = vmatprep.mubr.bf16.mxu0 0
        %2330 = vmatmul.mubr.bf16.gmra.mxu0 %v2208
        %v2331 = vpop.f32.mrf.mxu0
        %v2332 = vadd.f32 %v2231, %v2331
        %v2333 = vpop.f32.mrf.mxu0
        %v2334 = vpop.f32.mrf.mxu0
        %v2335 = vadd.f32 %v2231, %v2334
        %v2336 = vpop.f32.mrf.mxu0
        %2337 = vmatprep.mubr.bf16.mxu0 0
        %2338 = vmatmul.mubr.bf16.gmra.mxu0 %v2209
        %v2339 = vpop.f32.mrf.mxu0
        %v2340 = vadd.f32 %v2231, %v2339
        %v2341 = vpop.f32.mrf.mxu0
        %v2342 = vpop.f32.mrf.mxu0
        %v2343 = vadd.f32 %v2231, %v2342
        %v2344 = vpop.f32.mrf.mxu0
        %2345 = vdwg.mxu0
        %v2346 = vmax.f32 %v2316, 0.0
        %v2347 = vmax.f32 %v2319, 0.0
        %v2348 = vmax.f32 %v2324, 0.0
        %v2349 = vmax.f32 %v2327, 0.0
        %v2350 = vmax.f32 %v2332, 0.0
        %v2351 = vmax.f32 %v2335, 0.0
        %v2352 = vmax.f32 %v2340, 0.0
        %v2353 = vmax.f32 %v2343, 0.0
        %2354 = vst [vmem:[%s404] sm:$0xff] %v2346
        %2355 = vst [vmem:[%s404 + $0x8] sm:$0xff] %v2347
        %2356 = vst [vmem:[%s404 + $0x10] sm:$0xff] %v2348
        %2357 = vst [vmem:[%s404 + $0x18] sm:$0xff] %v2349
        %2358 = vst [vmem:[%s404 + $0x20] sm:$0xff] %v2350
        %2359 = vst [vmem:[%s404 + $0x28] sm:$0xff] %v2351
        %2360 = vst [vmem:[%s404 + $0x30] sm:$0xff] %v2352
        %2361 = vst [vmem:[%s404 + $0x38] sm:$0xff] %v2353
        %s2362 = sand.u32 %s258, 1
        %s2363 = scalar_lea.sflag [#allocation3], %s2362
        %s2364 = sand.u32 %s258, 1
        %s2365 = smul.addr %s2364, 64
        %s2366 = scalar_lea.vmem [#allocation2], %s2365
        // Predicated region
        $region57: #{tpu_custom_call.1} parent=55 // pred_check
          %p2367 = pneg %p268
        $region58: #{tpu_custom_call.1} parent=55 // pred_check_branch
          %2369 = sbr.rel (%p2367) target = $region60
        $region59: #{tpu_custom_call.1} parent=55 // pred_region
          %s2370 = smul.u32 8, %s28
          %s2372 = ssub.s32 1024, 1024
          %2373 = vsyncadd %s2363, %s2372
          %s2374 = smul.addr %s27, 8
          %s2375 = sadd.s32 %s2370, %s2374
          %s2376 = smul.addr %s2375, 128
          %s2377 = scalar_lea.hbm %s9, %s2376
          %s2378 = sshll.u32 %s2366, 4
          %s2379 = int_to_ptr.vmem [resolvable:$true] %s2378
          %2384 = dma.vmem_to_hbm [thread:$0]  %s2379, 1024, %s2377, %s2363, 128, 128, 8
        $region60: #{tpu_custom_call.1} parent=55 // pred_fallthru
          _
      $region56: #{tpu_custom_call.1} parent=5 // pred_fallthru
        _
      %p2385 = scmp.le.s32.totalorder 2, %s18
      // Predicated region
      $region61: #{tpu_custom_call.1} parent=5 // pred_check
        %p2386 = pneg %p2385
      $region62: #{tpu_custom_call.1} parent=5 // pred_check_branch
        %2388 = sbr.rel (%p2386) target = $region64
      $region63: #{tpu_custom_call.1} parent=5 // pred_region
        %s2389 = ssub.s32 %s18, 2
        // Predicated region
        $region65: #{tpu_custom_call.1} parent=63 // pred_check
          %p2390 = pneg %p274
        $region66: #{tpu_custom_call.1} parent=63 // pred_check_branch
          %2392 = sbr.rel (%p2390) target = $region68
        $region67: #{tpu_custom_call.1} parent=63 // pred_region
          %s2393 = sand.u32 %s259, 1
          %s2394 = scalar_lea.sflag [#allocation3], %s2393
          %s2395 = sand.u32 %s259, 1
          %s2396 = smul.addr %s2395, 64
          %s2397 = scalar_lea.vmem [#allocation2], %s2396
          %2398 = dma.done %s2394, 1024
        $region68: #{tpu_custom_call.1} parent=63 // pred_fallthru
          _
      $region64: #{tpu_custom_call.1} parent=5 // pred_fallthru
        _
    $region6: #{tpu_custom_call.1} parent=1 // loop_footer
      %s22 = sadd.s32 1, %s18
    $region7: #{tpu_custom_call.1} parent=1 // loop_footer_branch
      %17 = sbr.rel target = $region3
    $region8: #{tpu_custom_call.1} parent=1 // loop_exit
      _
    %2399 = vsyncpa [#allocation3], 1
    %s2400 = scalar_lea.sflag [#allocation3], 1
    %2401 = vsyncpa %s2400, 1

// kernel: tpu_custom_call.1
$region0: #{tpu_custom_call.1}
  #allocation0 [shape = 'u32[]', space=smem, size = 0x4, offset = 0x4, fixed_abs, tag = 'smem constant byte address 0x4 - core index']
  #allocation1 [shape = 'u32[144,128]{1,0:T(1,128)}', space=vmem, size = 0x12000, scoped, tag = 'internal scratch']
  %s0 = inlined_call_operand.vmem [shape: f32[2,64,3], index: 0, kind: input, shape index: {}]
  %s1 = inlined_call_operand.vmem [shape: f32[2,3,32], index: 1, kind: input, shape index: {}]
  %s2 = inlined_call_operand.vmem [shape: f32[2,32,8], index: 2, kind: input, shape index: {}]
  %s3 = inlined_call_operand.vmem [shape: f32[2,64,8], index: 3, kind: input, shape index: {}]
  %s4 = inlined_call_operand.vmem [shape: bf16[8,128], index: 4, kind: input, shape index: {}]
  %s5 = inlined_call_operand.vmem [shape: bf16[8,128], index: 5, kind: input, shape index: {}]
  %s6 = inlined_call_operand.vmem [shape: f32[1,128], index: 6, kind: input, shape index: {}]
  %s7 = inlined_call_operand.vmem [shape: bf16[128,128], index: 7, kind: input, shape index: {}]
  %s8 = inlined_call_operand.vmem [shape: f32[1,128], index: 8, kind: input, shape index: {}]
  %s9 = inlined_call_operand.hbm [shape: f32[2,64,128], index: 9, kind: output, shape index: {}]
  %s10 = sld [smem:[#allocation0]]
  $region69: #{tpu_custom_call.1} parent=0
    _
  %s12 = ssub.s32 1, %s10
  %s13 = scalar_select 0, %s12, %s10
  $region1: #{tpu_custom_call.1} parent=0
    #allocation2 [shape = 'u8[65536]{0}', space=vmem, size = 0x10000, scoped, tag = 'output window, operand 0']
    #allocation3 [shape = 's32[2]{0}', space=sflag, size = 0x8, scoped, tag = 'scoped memory for tpu_custom_call.1']
    %14 = vsyncpa [#allocation3], 0
    %s15 = scalar_lea.sflag [#allocation3], 1
    %16 = vsyncpa %s15, 0
    loop: start=0, step=1, limit=4
    $region2: #{tpu_custom_call.1} parent=1 // loop_pre_header
      _
    $region3: #{tpu_custom_call.1} parent=1 // loop_header
      %s18 = sphi 0, %s22
      %p19 = scmp.ge.s32.totalorder %s18, 4
      %s25 = sphi 0, %s37
      %s26 = sphi 0, %s33
      %s27 = sphi 0, %s25
      %s28 = sphi 0, %s26
      %s29 = sphi 0, %s27
      %s30 = sphi 0, %s28
      %s42 = sphi 0, %s44
      %s45 = sphi 0, %s42
      %s46 = sphi 0, %s45
      %s62 = sphi 0, %s46
      %s68 = sphi 0, %s70
      %s71 = sphi 0, %s68
      %s72 = sphi 0, %s71
      %s88 = sphi 0, %s72
      %s94 = sphi 0, %s96
      %s97 = sphi 0, %s94
      %s98 = sphi 0, %s97
      %s114 = sphi 0, %s98
      %s122 = sphi 0, %s124
      %s125 = sphi 0, %s122
      %s126 = sphi 0, %s125
      %s142 = sphi 0, %s126
      %s146 = sphi 0, %s146
      %s148 = sphi 0, %s146
      %s149 = sphi 0, %s148
      %s163 = sphi 0, %s149
      %s167 = sphi 0, %s167
      %s169 = sphi 0, %s167
      %s170 = sphi 0, %s169
      %s184 = sphi 0, %s170
      %s188 = sphi 0, %s188
      %s190 = sphi 0, %s188
      %s191 = sphi 0, %s190
      %s205 = sphi 0, %s191
      %s209 = sphi 0, %s209
      %s211 = sphi 0, %s209
      %s212 = sphi 0, %s211
      %s226 = sphi 0, %s212
      %s230 = sphi 0, %s230
      %s232 = sphi 0, %s230
      %s233 = sphi 0, %s232
      %s247 = sphi 0, %s233
      %s255 = sphi 0, %s257
      %s258 = sphi 0, %s255
      %s259 = sphi 0, %s258
      %s275 = sphi 0, %s259
    $region4: #{tpu_custom_call.1} parent=1 // loop_header_branch
      %21 = sbr.rel (%p19) target = $region8
    $region5: #{tpu_custom_call.1} parent=1 // loop_body
      %s23 = ssub.s32 %s18, 1
      %s24 = ssub.s32 %s18, 2
      %s31 = sadd.s32 1, %s26
      %p32 = scmp.ge.s32.totalorder %s31, 1
      %s33 = scalar_select %p32, 0, %s31
      %s34 = sadd.s32 1, %s25
      %s35 = scalar_select %p32, %s34, %s25
      %p36 = scmp.ge.s32.totalorder %s35, 2
      %s37 = scalar_select %p36, 0, %s35
      %s38 = ssub.s32 %s25, %s37
      %s39 = ssub.s32 %s26, %s33
      %s40 = sor.u32 %s38, %s39
      %p41 = scmp.eq.s32.totalorder %s40, 0
      %s43 = sadd.s32 %s42, 1
      %s44 = scalar_select %p41, %s42, %s43
      %p47 = pneg %p41
      %p48 = scmp.eq.s32.totalorder %s18, 1
      %p49 = por %p47, %p48
      %p50 = scmp.ne.s32.totalorder %s42, %s45
      %p51 = scmp.eq.s32.totalorder %s18, 0
      %p52 = por %p50, %p51
      %p53 = scmp.ne.s32.totalorder %s42, %s45
      %p54 = scmp.eq.s32.totalorder %s23, 1
      %p55 = por %p53, %p54
      %p56 = scmp.ne.s32.totalorder %s45, %s46
      %p57 = scmp.eq.s32.totalorder %s23, 0
      %p58 = por %p56, %p57
      %p59 = scmp.ne.s32.totalorder %s45, %s46
      %p60 = scmp.eq.s32.totalorder %s24, 1
      %p61 = por %p59, %p60
      %p63 = scmp.ne.s32.totalorder %s46, %s62
      %p64 = scmp.eq.s32.totalorder %s24, 0
      %p65 = por %p63, %p64
      %s66 = ssub.s32 %s25, %s37
      %p67 = scmp.eq.s32.totalorder %s66, 0
      %s69 = sadd.s32 %s68, 1
      %s70 = scalar_select %p67, %s68, %s69
      %p73 = pneg %p67
      %p74 = scmp.eq.s32.totalorder %s18, 1
      %p75 = por %p73, %p74
      %p76 = scmp.ne.s32.totalorder %s68, %s71
      %p77 = scmp.eq.s32.totalorder %s18, 0
      %p78 = por %p76, %p77
      %p79 = scmp.ne.s32.totalorder %s68, %s71
      %p80 = scmp.eq.s32.totalorder %s23, 1
      %p81 = por %p79, %p80
      %p82 = scmp.ne.s32.totalorder %s71, %s72
      %p83 = scmp.eq.s32.totalorder %s23, 0
      %p84 = por %p82, %p83
      %p85 = scmp.ne.s32.totalorder %s71, %s72
      %p86 = scmp.eq.s32.totalorder %s24, 1
      %p87 = por %p85, %p86
      %p89 = scmp.ne.s32.totalorder %s72, %s88
      %p90 = scmp.eq.s32.totalorder %s24, 0
      %p91 = por %p89, %p90
      %s92 = ssub.s32 %s25, %s37
      %p93 = scmp.eq.s32.totalorder %s92, 0
      %s95 = sadd.s32 %s94, 1
      %s96 = scalar_select %p93, %s94, %s95
      %p99 = pneg %p93
      %p100 = scmp.eq.s32.totalorder %s18, 1
      %p101 = por %p99, %p100
      %p102 = scmp.ne.s32.totalorder %s94, %s97
      %p103 = scmp.eq.s32.totalorder %s18, 0
      %p104 = por %p102, %p103
      %p105 = scmp.ne.s32.totalorder %s94, %s97
      %p106 = scmp.eq.s32.totalorder %s23, 1
      %p107 = por %p105, %p106
      %p108 = scmp.ne.s32.totalorder %s97, %s98
      %p109 = scmp.eq.s32.totalorder %s23, 0
      %p110 = por %p108, %p109
      %p111 = scmp.ne.s32.totalorder %s97, %s98
      %p112 = scmp.eq.s32.totalorder %s24, 1
      %p113 = por %p111, %p112
      %p115 = scmp.ne.s32.totalorder %s98, %s114
      %p116 = scmp.eq.s32.totalorder %s24, 0
      %p117 = por %p115, %p116
      %s118 = ssub.s32 %s25, %s37
      %s119 = ssub.s32 %s26, %s33
      %s120 = sor.u32 %s118, %s119
      %p121 = scmp.eq.s32.totalorder %s120, 0
      %s123 = sadd.s32 %s122, 1
      %s124 = scalar_select %p121, %s122, %s123
      %p127 = pneg %p121
      %p128 = scmp.eq.s32.totalorder %s18, 1
      %p129 = por %p127, %p128
      %p130 = scmp.ne.s32.totalorder %s122, %s125
      %p131 = scmp.eq.s32.totalorder %s18, 0
      %p132 = por %p130, %p131
      %p133 = scmp.ne.s32.totalorder %s122, %s125
      %p134 = scmp.eq.s32.totalorder %s23, 1
      %p135 = por %p133, %p134
      %p136 = scmp.ne.s32.totalorder %s125, %s126
      %p137 = scmp.eq.s32.totalorder %s23, 0
      %p138 = por %p136, %p137
      %p139 = scmp.ne.s32.totalorder %s125, %s126
      %p140 = scmp.eq.s32.totalorder %s24, 1
      %p141 = por %p139, %p140
      %p143 = scmp.ne.s32.totalorder %s126, %s142
      %p144 = scmp.eq.s32.totalorder %s24, 0
      %p145 = por %p143, %p144
      %s147 = sadd.s32 %s146, 1
      %p150 = scmp.eq.s32.totalorder %s18, 1
      %p151 = scmp.ne.s32.totalorder %s146, %s148
      %p152 = scmp.eq.s32.totalorder %s18, 0
      %p153 = por %p151, %p152
      %p154 = scmp.ne.s32.totalorder %s146, %s148
      %p155 = scmp.eq.s32.totalorder %s23, 1
      %p156 = por %p154, %p155
      %p157 = scmp.ne.s32.totalorder %s148, %s149
      %p158 = scmp.eq.s32.totalorder %s23, 0
      %p159 = por %p157, %p158
      %p160 = scmp.ne.s32.totalorder %s148, %s149
      %p161 = scmp.eq.s32.totalorder %s24, 1
      %p162 = por %p160, %p161
      %p164 = scmp.ne.s32.totalorder %s149, %s163
      %p165 = scmp.eq.s32.totalorder %s24, 0
      %p166 = por %p164, %p165
      %s168 = sadd.s32 %s167, 1
      %p171 = scmp.eq.s32.totalorder %s18, 1
      %p172 = scmp.ne.s32.totalorder %s167, %s169
      %p173 = scmp.eq.s32.totalorder %s18, 0
      %p174 = por %p172, %p173
      %p175 = scmp.ne.s32.totalorder %s167, %s169
      %p176 = scmp.eq.s32.totalorder %s23, 1
      %p177 = por %p175, %p176
      %p178 = scmp.ne.s32.totalorder %s169, %s170
      %p179 = scmp.eq.s32.totalorder %s23, 0
      %p180 = por %p178, %p179
      %p181 = scmp.ne.s32.totalorder %s169, %s170
      %p182 = scmp.eq.s32.totalorder %s24, 1
      %p183 = por %p181, %p182
      %p185 = scmp.ne.s32.totalorder %s170, %s184
      %p186 = scmp.eq.s32.totalorder %s24, 0
      %p187 = por %p185, %p186
      %s189 = sadd.s32 %s188, 1
      %p192 = scmp.eq.s32.totalorder %s18, 1
      %p193 = scmp.ne.s32.totalorder %s188, %s190
      %p194 = scmp.eq.s32.totalorder %s18, 0
      %p195 = por %p193, %p194
      %p196 = scmp.ne.s32.totalorder %s188, %s190
      %p197 = scmp.eq.s32.totalorder %s23, 1
      %p198 = por %p196, %p197
      %p199 = scmp.ne.s32.totalorder %s190, %s191
      %p200 = scmp.eq.s32.totalorder %s23, 0
      %p201 = por %p199, %p200
      %p202 = scmp.ne.s32.totalorder %s190, %s191
      %p203 = scmp.eq.s32.totalorder %s24, 1
      %p204 = por %p202, %p203
      %p206 = scmp.ne.s32.totalorder %s191, %s205
      %p207 = scmp.eq.s32.totalorder %s24, 0
      %p208 = por %p206, %p207
      %s210 = sadd.s32 %s209, 1
      %p213 = scmp.eq.s32.totalorder %s18, 1
      %p214 = scmp.ne.s32.totalorder %s209, %s211
      %p215 = scmp.eq.s32.totalorder %s18, 0
      %p216 = por %p214, %p215
      %p217 = scmp.ne.s32.totalorder %s209, %s211
      %p218 = scmp.eq.s32.totalorder %s23, 1
      %p219 = por %p217, %p218
      %p220 = scmp.ne.s32.totalorder %s211, %s212
      %p221 = scmp.eq.s32.totalorder %s23, 0
      %p222 = por %p220, %p221
      %p223 = scmp.ne.s32.totalorder %s211, %s212
      %p224 = scmp.eq.s32.totalorder %s24, 1
      %p225 = por %p223, %p224
      %p227 = scmp.ne.s32.totalorder %s212, %s226
      %p228 = scmp.eq.s32.totalorder %s24, 0
      %p229 = por %p227, %p228
      %s231 = sadd.s32 %s230, 1
      %p234 = scmp.eq.s32.totalorder %s18, 1
      %p235 = scmp.ne.s32.totalorder %s230, %s232
      %p236 = scmp.eq.s32.totalorder %s18, 0
      %p237 = por %p235, %p236
      %p238 = scmp.ne.s32.totalorder %s230, %s232
      %p239 = scmp.eq.s32.totalorder %s23, 1
      %p240 = por %p238, %p239
      %p241 = scmp.ne.s32.totalorder %s232, %s233
      %p242 = scmp.eq.s32.totalorder %s23, 0
      %p243 = por %p241, %p242
      %p244 = scmp.ne.s32.totalorder %s232, %s233
      %p245 = scmp.eq.s32.totalorder %s24, 1
      %p246 = por %p244, %p245
      %p248 = scmp.ne.s32.totalorder %s233, %s247
      %p249 = scmp.eq.s32.totalorder %s24, 0
      %p250 = por %p248, %p249
      %s251 = ssub.s32 %s25, %s37
      %s252 = ssub.s32 %s26, %s33
      %s253 = sor.u32 %s251, %s252
      %p254 = scmp.eq.s32.totalorder %s253, 0
      %s256 = sadd.s32 %s255, 1
      %s257 = scalar_select %p254, %s255, %s256
      %p260 = pneg %p254
      %p261 = scmp.eq.s32.totalorder %s18, 1
      %p262 = por %p260, %p261
      %p263 = scmp.ne.s32.totalorder %s255, %s258
      %p264 = scmp.eq.s32.totalorder %s18, 0
      %p265 = por %p263, %p264
      %p266 = scmp.ne.s32.totalorder %s255, %s258
      %p267 = scmp.eq.s32.totalorder %s23, 1
      %p268 = por %p266, %p267
      %p269 = scmp.ne.s32.totalorder %s258, %s259
      %p270 = scmp.eq.s32.totalorder %s23, 0
      %p271 = por %p269, %p270
      %p272 = scmp.ne.s32.totalorder %s258, %s259
      %p273 = scmp.eq.s32.totalorder %s24, 1
      %p274 = por %p272, %p273
      %p276 = scmp.ne.s32.totalorder %s259, %s275
      %p277 = scmp.eq.s32.totalorder %s24, 0
      %p278 = por %p276, %p277
      %p279 = scmp.le.s32.totalorder 1, %s18
      %p280 = scmp.lt.s32.totalorder %s18, 3
      %p281 = pnand %p279, %p280
      %p282 = pneg %p281
      // Predicated region
      $region9: #{tpu_custom_call.1} parent=5 // pred_check
        _
      $region10: #{tpu_custom_call.1} parent=5 // pred_check_branch
        %284 = sbr.rel (%p281) target = $region12
      $region11: #{tpu_custom_call.1} parent=5 // pred_region
        %s285 = ssub.s32 %s18, 1
        // Predicated region
        $region13: #{tpu_custom_call.1} parent=11 // pred_check
          %p286 = pneg %p159
        $region14: #{tpu_custom_call.1} parent=11 // pred_check_branch
          %288 = sbr.rel (%p286) target = $region16
        $region15: #{tpu_custom_call.1} parent=11 // pred_region
          _
        $region16: #{tpu_custom_call.1} parent=11 // pred_fallthru
          _
        // Predicated region
        $region17: #{tpu_custom_call.1} parent=11 // pred_check
          %p289 = pneg %p180
        $region18: #{tpu_custom_call.1} parent=11 // pred_check_branch
          %291 = sbr.rel (%p289) target = $region20
        $region19: #{tpu_custom_call.1} parent=11 // pred_region
          _
        $region20: #{tpu_custom_call.1} parent=11 // pred_fallthru
          _
        // Predicated region
        $region21: #{tpu_custom_call.1} parent=11 // pred_check
          %p292 = pneg %p201
        $region22: #{tpu_custom_call.1} parent=11 // pred_check_branch
          %294 = sbr.rel (%p292) target = $region24
        $region23: #{tpu_custom_call.1} parent=11 // pred_region
          _
        $region24: #{tpu_custom_call.1} parent=11 // pred_fallthru
          _
        // Predicated region
        $region25: #{tpu_custom_call.1} parent=11 // pred_check
          %p295 = pneg %p222
        $region26: #{tpu_custom_call.1} parent=11 // pred_check_branch
          %297 = sbr.rel (%p295) target = $region28
        $region27: #{tpu_custom_call.1} parent=11 // pred_region
          _
        $region28: #{tpu_custom_call.1} parent=11 // pred_fallthru
          _
        // Predicated region
        $region29: #{tpu_custom_call.1} parent=11 // pred_check
          %p298 = pneg %p243
        $region30: #{tpu_custom_call.1} parent=11 // pred_check_branch
          %300 = sbr.rel (%p298) target = $region32
        $region31: #{tpu_custom_call.1} parent=11 // pred_region
          _
        $region32: #{tpu_custom_call.1} parent=11 // pred_fallthru
          _
      $region12: #{tpu_custom_call.1} parent=5 // pred_fallthru
        _
      %p301 = scmp.lt.s32.totalorder %s18, 2
      // Predicated region
      $region33: #{tpu_custom_call.1} parent=5 // pred_check
        %p302 = pneg %p301
      $region34: #{tpu_custom_call.1} parent=5 // pred_check_branch
        %304 = sbr.rel (%p302) target = $region36
      $region35: #{tpu_custom_call.1} parent=5 // pred_region
        // Predicated region
        $region37: #{tpu_custom_call.1} parent=35 // pred_check
          %p305 = pneg %p52
        $region38: #{tpu_custom_call.1} parent=35 // pred_check_branch
          %307 = sbr.rel (%p305) target = $region40
        $region39: #{tpu_custom_call.1} parent=35 // pred_region
          %s308 = smul.u32 8, %s26
          %p309 = scmp.lt.s32.totalorder %s25, 1
          %s310 = scalar_select %p309, %s25, 1
          %p311 = scmp.lt.s32.totalorder %s308, 7
          %s312 = scalar_select %p311, %s308, 7
          %s313 = smul.addr %s310, 8
          %s314 = sadd.s32 %s312, %s313
          %s315 = smul.addr %s314, 8
          %s316 = scalar_lea.vmem %s0, %s315
          %s317 = smul.u32 8, %s26
        $region40: #{tpu_custom_call.1} parent=35 // pred_fallthru
          _
        // Predicated region
        $region41: #{tpu_custom_call.1} parent=35 // pred_check
          %p318 = pneg %p78
        $region42: #{tpu_custom_call.1} parent=35 // pred_check_branch
          %320 = sbr.rel (%p318) target = $region44
        $region43: #{tpu_custom_call.1} parent=35 // pred_region
          %p321 = scmp.lt.s32.totalorder %s25, 1
          %s322 = scalar_select %p321, %s25, 1
          %s323 = smul.addr %s322, 4
          %s324 = scalar_lea.vmem %s1, %s323
        $region44: #{tpu_custom_call.1} parent=35 // pred_fallthru
          _
        // Predicated region
        $region45: #{tpu_custom_call.1} parent=35 // pred_check
          %p325 = pneg %p104
        $region46: #{tpu_custom_call.1} parent=35 // pred_check_branch
          %327 = sbr.rel (%p325) target = $region48
        $region47: #{tpu_custom_call.1} parent=35 // pred_region
          %p328 = scmp.lt.s32.totalorder %s25, 1
          %s329 = scalar_select %p328, %s25, 1
          %s330 = smul.addr %s329, 4
          %s331 = smul.addr %s330, 8
          %s332 = scalar_lea.vmem %s2, %s331
        $region48: #{tpu_custom_call.1} parent=35 // pred_fallthru
          _
        // Predicated region
        $region49: #{tpu_custom_call.1} parent=35 // pred_check
          %p333 = pneg %p132
        $region50: #{tpu_custom_call.1} parent=35 // pred_check_branch
          %335 = sbr.rel (%p333) target = $region52
        $region51: #{tpu_custom_call.1} parent=35 // pred_region
          %s336 = smul.u32 8, %s26
          %p337 = scmp.lt.s32.totalorder %s25, 1
          %s338 = scalar_select %p337, %s25, 1
          %p339 = scmp.lt.s32.totalorder %s336, 7
          %s340 = scalar_select %p339, %s336, 7
          %s341 = smul.addr %s338, 8
          %s342 = sadd.s32 %s340, %s341
          %s343 = smul.addr %s342, 8
          %s344 = scalar_lea.vmem %s3, %s343
          %s345 = smul.u32 8, %s26
        $region52: #{tpu_custom_call.1} parent=35 // pred_fallthru
          _
      $region36: #{tpu_custom_call.1} parent=5 // pred_fallthru
        _
      %p346 = scmp.le.s32.totalorder 1, %s18
      %p347 = scmp.lt.s32.totalorder %s18, 3
      %p348 = pnand %p346, %p347
      %p349 = pneg %p348
      // Predicated region
      $region53: #{tpu_custom_call.1} parent=5 // pred_check
        _
      $region54: #{tpu_custom_call.1} parent=5 // pred_check_branch
        %351 = sbr.rel (%p348) target = $region56
      $region55: #{tpu_custom_call.1} parent=5 // pred_region
        %s352 = ssub.s32 %s18, 1
        %s353 = smul.u32 8, %s28
        %p354 = scmp.lt.s32.totalorder %s27, 1
        %s355 = scalar_select %p354, %s27, 1
        %p356 = scmp.lt.s32.totalorder %s353, 7
        %s357 = scalar_select %p356, %s353, 7
        %s358 = smul.addr %s355, 8
        %s359 = sadd.s32 %s357, %s358
        %s360 = smul.addr %s359, 8
        %s361 = scalar_lea.vmem %s0, %s360
        %p362 = pneg %p58
        %p363 = pneg %p55
        %p364 = scmp.lt.s32.totalorder %s27, 1
        %s365 = scalar_select %p364, %s27, 1
        %s366 = smul.addr %s365, 4
        %s367 = scalar_lea.vmem %s1, %s366
        %p368 = pneg %p84
        %p369 = pneg %p81
        %p370 = scmp.lt.s32.totalorder %s27, 1
        %s371 = scalar_select %p370, %s27, 1
        %s372 = smul.addr %s371, 4
        %s373 = smul.addr %s372, 8
        %s374 = scalar_lea.vmem %s2, %s373
        %p375 = pneg %p110
        %p376 = pneg %p107
        %s377 = smul.u32 8, %s28
        %p378 = scmp.lt.s32.totalorder %s27, 1
        %s379 = scalar_select %p378, %s27, 1
        %p380 = scmp.lt.s32.totalorder %s377, 7
        %s381 = scalar_select %p380, %s377, 7
        %s382 = smul.addr %s379, 8
        %s383 = sadd.s32 %s381, %s382
        %s384 = smul.addr %s383, 8
        %s385 = scalar_lea.vmem %s3, %s384
        %p386 = pneg %p138
        %p387 = pneg %p135
        %p388 = pneg %p159
        %p389 = pneg %p156
        %p390 = pneg %p180
        %p391 = pneg %p177
        %p392 = pneg %p201
        %p393 = pneg %p198
        %p394 = pneg %p222
        %p395 = pneg %p219
        %p396 = pneg %p243
        %p397 = pneg %p240
        %p398 = pneg %p271
        %p399 = pneg %p268
        %s400 = sand.u32 %s258, 1
        %s401 = scalar_lea.sflag [#allocation3], %s400
        %s402 = sand.u32 %s258, 1
        %s403 = smul.addr %s402, 64
        %s404 = scalar_lea.vmem [#allocation2], %s403
        %s405 = smul.u32 8, %s28
        %p406 = scmp.lt.s32.totalorder %s27, 1
        %s407 = scalar_select %p406, %s27, 1
        %p408 = scmp.lt.s32.totalorder %s405, 7
        %s409 = scalar_select %p408, %s405, 7
        %s410 = smul.addr %s407, 8
        %s411 = sadd.s32 %s409, %s410
        %s412 = smul.addr %s411, 8
        %s413 = scalar_lea.vmem %s0, %s412
        %s414 = smul.u32 8, %s28
        %p415 = scmp.lt.s32.totalorder %s27, 1
        %s416 = scalar_select %p415, %s27, 1
        %s417 = smul.addr %s416, 4
        %s418 = scalar_lea.vmem %s1, %s417
        %p419 = scmp.lt.s32.totalorder %s27, 1
        %s420 = scalar_select %p419, %s27, 1
        %s421 = smul.addr %s420, 4
        %s422 = smul.addr %s421, 8
        %s423 = scalar_lea.vmem %s2, %s422
        %s424 = smul.u32 8, %s28
        %p425 = scmp.lt.s32.totalorder %s27, 1
        %s426 = scalar_select %p425, %s27, 1
        %p427 = scmp.lt.s32.totalorder %s424, 7
        %s428 = scalar_select %p427, %s424, 7
        %s429 = smul.addr %s426, 8
        %s430 = sadd.s32 %s428, %s429
        %s431 = smul.addr %s430, 8
        %s432 = scalar_lea.vmem %s3, %s431
        %s433 = smul.u32 8, %s28
        %s434 = smul.u32 8, %s28
        %v436 = vld [vmem:[%s413] sm:$0xff]
        %v437 = vld [vmem:[%s413 + $0x8] sm:$0xff]
        %v438 = vld [vmem:[%s413 + $0x10] sm:$0xff]
        %v439 = vld [vmem:[%s413 + $0x18] sm:$0xff]
        %v440 = vld [vmem:[%s413 + $0x20] sm:$0xff]
        %v441 = vld [vmem:[%s413 + $0x28] sm:$0xff]
        %v442 = vld [vmem:[%s413 + $0x30] sm:$0xff]
        %v443 = vld [vmem:[%s413 + $0x38] sm:$0xff]
        %v444 = vld [vmem:[%s418] sm:$0x7]
        %446 = vset.pattern.permute.xlu0 0
        %447 = vperm.xlu0 %446, %v436
        %v448 = vpop.permute.xlu0 %447
        %451 = vset.pattern.permute.xlu0 0
        %452 = vperm.xlu0 %451, %v437
        %v453 = vpop.permute.xlu0 %452
        %456 = vset.pattern.permute.xlu0 0
        %457 = vperm.xlu0 %456, %v438
        %v458 = vpop.permute.xlu0 %457
        %461 = vset.pattern.permute.xlu0 0
        %462 = vperm.xlu0 %461, %v439
        %v463 = vpop.permute.xlu0 %462
        %466 = vset.pattern.permute.xlu0 0
        %467 = vperm.xlu0 %466, %v440
        %v468 = vpop.permute.xlu0 %467
        %471 = vset.pattern.permute.xlu0 0
        %472 = vperm.xlu0 %471, %v441
        %v473 = vpop.permute.xlu0 %472
        %476 = vset.pattern.permute.xlu0 0
        %477 = vperm.xlu0 %476, %v442
        %v478 = vpop.permute.xlu0 %477
        %481 = vset.pattern.permute.xlu0 0
        %482 = vperm.xlu0 %481, %v443
        %v483 = vpop.permute.xlu0 %482
        %v485 = vlaneseq
        %v486 = vshrl.u32 %v485, 7
        %v487 = vsub.s32 0, %v486
        %v488 = vrot.slane %v444, %v487
        %v489 = vsub.f32 %v448, %v488
        %v490 = vsub.f32 %v453, %v488
        %v491 = vsub.f32 %v458, %v488
        %v492 = vsub.f32 %v463, %v488
        %v493 = vsub.f32 %v468, %v488
        %v494 = vsub.f32 %v473, %v488
        %v495 = vsub.f32 %v478, %v488
        %v496 = vsub.f32 %v483, %v488
        %v497 = vmul.f32 %v489, %v489
        %v498 = vmul.f32 %v490, %v490
        %v499 = vmul.f32 %v491, %v491
        %v500 = vmul.f32 %v492, %v492
        %v501 = vmul.f32 %v493, %v493
        %v502 = vmul.f32 %v494, %v494
        %v503 = vmul.f32 %v495, %v495
        %v504 = vmul.f32 %v496, %v496
        %505 = vset.pattern.permute.xlu0 1
        %506 = vperm.xlu0 %505, %v436
        %v507 = vpop.permute.xlu0 %506
        %509 = vset.pattern.permute.xlu0 1
        %510 = vperm.xlu0 %509, %v437
        %v511 = vpop.permute.xlu0 %510
        %513 = vset.pattern.permute.xlu0 1
        %514 = vperm.xlu0 %513, %v438
        %v515 = vpop.permute.xlu0 %514
        %517 = vset.pattern.permute.xlu0 1
        %518 = vperm.xlu0 %517, %v439
        %v519 = vpop.permute.xlu0 %518
        %521 = vset.pattern.permute.xlu0 1
        %522 = vperm.xlu0 %521, %v440
        %v523 = vpop.permute.xlu0 %522
        %525 = vset.pattern.permute.xlu0 1
        %526 = vperm.xlu0 %525, %v441
        %v527 = vpop.permute.xlu0 %526
        %529 = vset.pattern.permute.xlu0 1
        %530 = vperm.xlu0 %529, %v442
        %v531 = vpop.permute.xlu0 %530
        %533 = vset.pattern.permute.xlu0 1
        %534 = vperm.xlu0 %533, %v443
        %v535 = vpop.permute.xlu0 %534
        %v537 = vlaneseq
        %v538 = vshrl.u32 %v537, 7
        %v539 = vsub.s32 1, %v538
        %v540 = vrot.slane %v444, %v539
        %v541 = vsub.f32 %v507, %v540
        %v542 = vsub.f32 %v511, %v540
        %v543 = vsub.f32 %v515, %v540
        %v544 = vsub.f32 %v519, %v540
        %v545 = vsub.f32 %v523, %v540
        %v546 = vsub.f32 %v527, %v540
        %v547 = vsub.f32 %v531, %v540
        %v548 = vsub.f32 %v535, %v540
        %v549 = vmul.f32 %v541, %v541
        %v550 = vmul.f32 %v542, %v542
        %v551 = vmul.f32 %v543, %v543
        %v552 = vmul.f32 %v544, %v544
        %v553 = vmul.f32 %v545, %v545
        %v554 = vmul.f32 %v546, %v546
        %v555 = vmul.f32 %v547, %v547
        %v556 = vmul.f32 %v548, %v548
        %v557 = vadd.f32 %v497, %v549
        %v558 = vadd.f32 %v498, %v550
        %v559 = vadd.f32 %v499, %v551
        %v560 = vadd.f32 %v500, %v552
        %v561 = vadd.f32 %v501, %v553
        %v562 = vadd.f32 %v502, %v554
        %v563 = vadd.f32 %v503, %v555
        %v564 = vadd.f32 %v504, %v556
        %565 = vset.pattern.permute.xlu0 2
        %566 = vperm.xlu0 %565, %v436
        %v567 = vpop.permute.xlu0 %566
        %569 = vset.pattern.permute.xlu0 2
        %570 = vperm.xlu0 %569, %v437
        %v571 = vpop.permute.xlu0 %570
        %573 = vset.pattern.permute.xlu0 2
        %574 = vperm.xlu0 %573, %v438
        %v575 = vpop.permute.xlu0 %574
        %577 = vset.pattern.permute.xlu0 2
        %578 = vperm.xlu0 %577, %v439
        %v579 = vpop.permute.xlu0 %578
        %581 = vset.pattern.permute.xlu0 2
        %582 = vperm.xlu0 %581, %v440
        %v583 = vpop.permute.xlu0 %582
        %585 = vset.pattern.permute.xlu0 2
        %586 = vperm.xlu0 %585, %v441
        %v587 = vpop.permute.xlu0 %586
        %589 = vset.pattern.permute.xlu0 2
        %590 = vperm.xlu0 %589, %v442
        %v591 = vpop.permute.xlu0 %590
        %593 = vset.pattern.permute.xlu0 2
        %594 = vperm.xlu0 %593, %v443
        %v595 = vpop.permute.xlu0 %594
        %v597 = vlaneseq
        %v598 = vshrl.u32 %v597, 7
        %v599 = vsub.s32 2, %v598
        %v600 = vrot.slane %v444, %v599
        %v601 = vsub.f32 %v567, %v600
        %v602 = vsub.f32 %v571, %v600
        %v603 = vsub.f32 %v575, %v600
        %v604 = vsub.f32 %v579, %v600
        %v605 = vsub.f32 %v583, %v600
        %v606 = vsub.f32 %v587, %v600
        %v607 = vsub.f32 %v591, %v600
        %v608 = vsub.f32 %v595, %v600
        %v609 = vmul.f32 %v601, %v601
        %v610 = vmul.f32 %v602, %v602
        %v611 = vmul.f32 %v603, %v603
        %v612 = vmul.f32 %v604, %v604
        %v613 = vmul.f32 %v605, %v605
        %v614 = vmul.f32 %v606, %v606
        %v615 = vmul.f32 %v607, %v607
        %v616 = vmul.f32 %v608, %v608
        %v617 = vadd.f32 %v557, %v609
        %v618 = vadd.f32 %v558, %v610
        %v619 = vadd.f32 %v559, %v611
        %v620 = vadd.f32 %v560, %v612
        %v621 = vadd.f32 %v561, %v613
        %v622 = vadd.f32 %v562, %v614
        %v623 = vadd.f32 %v563, %v615
        %v624 = vadd.f32 %v564, %v616
        %v625 = vadd.f32 %v617, 0.0001
        %v626 = vadd.f32 %v618, 0.0001
        %v627 = vadd.f32 %v619, 0.0001
        %v628 = vadd.f32 %v620, 0.0001
        %v629 = vadd.f32 %v621, 0.0001
        %v630 = vadd.f32 %v622, 0.0001
        %v631 = vadd.f32 %v623, 0.0001
        %v632 = vadd.f32 %v624, 0.0001
        %v633 = vrcp.pop %v625
        %v634 = vrcp.pop %v626
        %v635 = vrcp.pop %v627
        %v636 = vrcp.pop %v628
        %v637 = vrcp.pop %v629
        %v638 = vrcp.pop %v630
        %v639 = vrcp.pop %v631
        %v640 = vrcp.pop %v632
        %v641 = vlaneseq
        %v642 = vand.u32 %v641, 127
        %v651 = vand.u32 %v617, 4294967264
        %v652 = vand.u32 %v618, 4294967264
        %v653 = vand.u32 %v619, 4294967264
        %v654 = vand.u32 %v620, 4294967264
        %v655 = vand.u32 %v621, 4294967264
        %v656 = vand.u32 %v622, 4294967264
        %v657 = vand.u32 %v623, 4294967264
        %v658 = vand.u32 %v624, 4294967264
        %v659 = vor.u32 %v651, %v642
        %v660 = vor.u32 %v652, %v642
        %v661 = vor.u32 %v653, %v642
        %v662 = vor.u32 %v654, %v642
        %v663 = vor.u32 %v655, %v642
        %v664 = vor.u32 %v656, %v642
        %v665 = vor.u32 %v657, %v642
        %v666 = vor.u32 %v658, %v642
        %vm667 = vcmask 261120
        %v668 = vsel %vm667, %v659, 2147483647
        %v669 = vand.u32 %v668, 65535
        %v670 = vshra.s32 %v668, 16
        %v671 = vcvt.s32.f32 %v669
        %v672 = vcvt.s32.f32 %v670
        %673 = vmin.xlane.f32.xlu0 %v672
        %v674 = vpop.xlane.xlu0 %673
        %vm675 = vcmp.eq.f32.partialorder %v672, %v674
        %v676 = vsel %vm675, %v671, inf
        %677 = vmin.xlane.f32.xlu0 %v676
        %v678 = vpop.xlane.xlu0 %677
        %v679 = vcvt.f32.s32 %v678
        %v680 = vcvt.f32.s32 %v674
        %v681 = vshll.u32 %v680, 16
        %v682 = vadd.s32 %v681, %v679
        %v683 = vsel %vm667, %v660, 2147483647
        %v684 = vand.u32 %v683, 65535
        %v685 = vshra.s32 %v683, 16
        %v686 = vcvt.s32.f32 %v684
        %v687 = vcvt.s32.f32 %v685
        %688 = vmin.xlane.f32.xlu0 %v687
        %v689 = vpop.xlane.xlu0 %688
        %vm690 = vcmp.eq.f32.partialorder %v687, %v689
        %v691 = vsel %vm690, %v686, inf
        %692 = vmin.xlane.f32.xlu0 %v691
        %v693 = vpop.xlane.xlu0 %692
        %v694 = vcvt.f32.s32 %v693
        %v695 = vcvt.f32.s32 %v689
        %v696 = vshll.u32 %v695, 16
        %v697 = vadd.s32 %v696, %v694
        %v698 = vsel %vm667, %v661, 2147483647
        %v699 = vand.u32 %v698, 65535
        %v700 = vshra.s32 %v698, 16
        %v701 = vcvt.s32.f32 %v699
        %v702 = vcvt.s32.f32 %v700
        %703 = vmin.xlane.f32.xlu0 %v702
        %v704 = vpop.xlane.xlu0 %703
        %vm705 = vcmp.eq.f32.partialorder %v702, %v704
        %v706 = vsel %vm705, %v701, inf
        %707 = vmin.xlane.f32.xlu0 %v706
        %v708 = vpop.xlane.xlu0 %707
        %v709 = vcvt.f32.s32 %v708
        %v710 = vcvt.f32.s32 %v704
        %v711 = vshll.u32 %v710, 16
        %v712 = vadd.s32 %v711, %v709
        %v713 = vsel %vm667, %v662, 2147483647
        %v714 = vand.u32 %v713, 65535
        %v715 = vshra.s32 %v713, 16
        %v716 = vcvt.s32.f32 %v714
        %v717 = vcvt.s32.f32 %v715
        %718 = vmin.xlane.f32.xlu0 %v717
        %v719 = vpop.xlane.xlu0 %718
        %vm720 = vcmp.eq.f32.partialorder %v717, %v719
        %v721 = vsel %vm720, %v716, inf
        %722 = vmin.xlane.f32.xlu0 %v721
        %v723 = vpop.xlane.xlu0 %722
        %v724 = vcvt.f32.s32 %v723
        %v725 = vcvt.f32.s32 %v719
        %v726 = vshll.u32 %v725, 16
        %v727 = vadd.s32 %v726, %v724
        %v728 = vsel %vm667, %v663, 2147483647
        %v729 = vand.u32 %v728, 65535
        %v730 = vshra.s32 %v728, 16
        %v731 = vcvt.s32.f32 %v729
        %v732 = vcvt.s32.f32 %v730
        %733 = vmin.xlane.f32.xlu0 %v732
        %v734 = vpop.xlane.xlu0 %733
        %vm735 = vcmp.eq.f32.partialorder %v732, %v734
        %v736 = vsel %vm735, %v731, inf
        %737 = vmin.xlane.f32.xlu0 %v736
        %v738 = vpop.xlane.xlu0 %737
        %v739 = vcvt.f32.s32 %v738
        %v740 = vcvt.f32.s32 %v734
        %v741 = vshll.u32 %v740, 16
        %v742 = vadd.s32 %v741, %v739
        %v743 = vsel %vm667, %v664, 2147483647
        %v744 = vand.u32 %v743, 65535
        %v745 = vshra.s32 %v743, 16
        %v746 = vcvt.s32.f32 %v744
        %v747 = vcvt.s32.f32 %v745
        %748 = vmin.xlane.f32.xlu0 %v747
        %v749 = vpop.xlane.xlu0 %748
        %vm750 = vcmp.eq.f32.partialorder %v747, %v749
        %v751 = vsel %vm750, %v746, inf
        %752 = vmin.xlane.f32.xlu0 %v751
        %v753 = vpop.xlane.xlu0 %752
        %v754 = vcvt.f32.s32 %v753
        %v755 = vcvt.f32.s32 %v749
        %v756 = vshll.u32 %v755, 16
        %v757 = vadd.s32 %v756, %v754
        %v758 = vsel %vm667, %v665, 2147483647
        %v759 = vand.u32 %v758, 65535
        %v760 = vshra.s32 %v758, 16
        %v761 = vcvt.s32.f32 %v759
        %v762 = vcvt.s32.f32 %v760
        %763 = vmin.xlane.f32.xlu0 %v762
        %v764 = vpop.xlane.xlu0 %763
        %vm765 = vcmp.eq.f32.partialorder %v762, %v764
        %v766 = vsel %vm765, %v761, inf
        %767 = vmin.xlane.f32.xlu0 %v766
        %v768 = vpop.xlane.xlu0 %767
        %v769 = vcvt.f32.s32 %v768
        %v770 = vcvt.f32.s32 %v764
        %v771 = vshll.u32 %v770, 16
        %v772 = vadd.s32 %v771, %v769
        %v773 = vsel %vm667, %v666, 2147483647
        %v774 = vand.u32 %v773, 65535
        %v775 = vshra.s32 %v773, 16
        %v776 = vcvt.s32.f32 %v774
        %v777 = vcvt.s32.f32 %v775
        %778 = vmin.xlane.f32.xlu0 %v777
        %v779 = vpop.xlane.xlu0 %778
        %vm780 = vcmp.eq.f32.partialorder %v777, %v779
        %v781 = vsel %vm780, %v776, inf
        %782 = vmin.xlane.f32.xlu0 %v781
        %v783 = vpop.xlane.xlu0 %782
        %v784 = vcvt.f32.s32 %v783
        %v785 = vcvt.f32.s32 %v779
        %v786 = vshll.u32 %v785, 16
        %v787 = vadd.s32 %v786, %v784
        %vm788 = vcmp.eq.s32.totalorder %v659, %v682
        %vm789 = vcmp.eq.s32.totalorder %v660, %v697
        %vm790 = vcmp.eq.s32.totalorder %v661, %v712
        %vm791 = vcmp.eq.s32.totalorder %v662, %v727
        %vm792 = vcmp.eq.s32.totalorder %v663, %v742
        %vm793 = vcmp.eq.s32.totalorder %v664, %v757
        %vm794 = vcmp.eq.s32.totalorder %v665, %v772
        %vm795 = vcmp.eq.s32.totalorder %v666, %v787
        %v796 = vsel %vm788, %v633, 0.0
        %v797 = vsel %vm789, %v634, 0.0
        %v798 = vsel %vm790, %v635, 0.0
        %v799 = vsel %vm791, %v636, 0.0
        %v800 = vsel %vm792, %v637, 0.0
        %v801 = vsel %vm793, %v638, 0.0
        %v802 = vsel %vm794, %v639, 0.0
        %v803 = vsel %vm795, %v640, 0.0
        %v804 = vadd.f32 %v796, 0.0
        %v805 = vadd.f32 %v797, 0.0
        %v806 = vadd.f32 %v798, 0.0
        %v807 = vadd.f32 %v799, 0.0
        %v808 = vadd.f32 %v800, 0.0
        %v809 = vadd.f32 %v801, 0.0
        %v810 = vadd.f32 %v802, 0.0
        %v811 = vadd.f32 %v803, 0.0
        %v812 = vsel %vm788, 2147483647, %v659
        %v813 = vsel %vm789, 2147483647, %v660
        %v814 = vsel %vm790, 2147483647, %v661
        %v815 = vsel %vm791, 2147483647, %v662
        %v816 = vsel %vm792, 2147483647, %v663
        %v817 = vsel %vm793, 2147483647, %v664
        %v818 = vsel %vm794, 2147483647, %v665
        %v819 = vsel %vm795, 2147483647, %v666
        %v820 = vsel %vm667, %v812, 2147483647
        %v821 = vand.u32 %v820, 65535
        %v822 = vshra.s32 %v820, 16
        %v823 = vcvt.s32.f32 %v821
        %v824 = vcvt.s32.f32 %v822
        %825 = vmin.xlane.f32.xlu0 %v824
        %v826 = vpop.xlane.xlu0 %825
        %vm827 = vcmp.eq.f32.partialorder %v824, %v826
        %v828 = vsel %vm827, %v823, inf
        %829 = vmin.xlane.f32.xlu0 %v828
        %v830 = vpop.xlane.xlu0 %829
        %v831 = vcvt.f32.s32 %v830
        %v832 = vcvt.f32.s32 %v826
        %v833 = vshll.u32 %v832, 16
        %v834 = vadd.s32 %v833, %v831
        %v835 = vsel %vm667, %v813, 2147483647
        %v836 = vand.u32 %v835, 65535
        %v837 = vshra.s32 %v835, 16
        %v838 = vcvt.s32.f32 %v836
        %v839 = vcvt.s32.f32 %v837
        %840 = vmin.xlane.f32.xlu0 %v839
        %v841 = vpop.xlane.xlu0 %840
        %vm842 = vcmp.eq.f32.partialorder %v839, %v841
        %v843 = vsel %vm842, %v838, inf
        %844 = vmin.xlane.f32.xlu0 %v843
        %v845 = vpop.xlane.xlu0 %844
        %v846 = vcvt.f32.s32 %v845
        %v847 = vcvt.f32.s32 %v841
        %v848 = vshll.u32 %v847, 16
        %v849 = vadd.s32 %v848, %v846
        %v850 = vsel %vm667, %v814, 2147483647
        %v851 = vand.u32 %v850, 65535
        %v852 = vshra.s32 %v850, 16
        %v853 = vcvt.s32.f32 %v851
        %v854 = vcvt.s32.f32 %v852
        %855 = vmin.xlane.f32.xlu0 %v854
        %v856 = vpop.xlane.xlu0 %855
        %vm857 = vcmp.eq.f32.partialorder %v854, %v856
        %v858 = vsel %vm857, %v853, inf
        %859 = vmin.xlane.f32.xlu0 %v858
        %v860 = vpop.xlane.xlu0 %859
        %v861 = vcvt.f32.s32 %v860
        %v862 = vcvt.f32.s32 %v856
        %v863 = vshll.u32 %v862, 16
        %v864 = vadd.s32 %v863, %v861
        %v865 = vsel %vm667, %v815, 2147483647
        %v866 = vand.u32 %v865, 65535
        %v867 = vshra.s32 %v865, 16
        %v868 = vcvt.s32.f32 %v866
        %v869 = vcvt.s32.f32 %v867
        %870 = vmin.xlane.f32.xlu0 %v869
        %v871 = vpop.xlane.xlu0 %870
        %vm872 = vcmp.eq.f32.partialorder %v869, %v871
        %v873 = vsel %vm872, %v868, inf
        %874 = vmin.xlane.f32.xlu0 %v873
        %v875 = vpop.xlane.xlu0 %874
        %v876 = vcvt.f32.s32 %v875
        %v877 = vcvt.f32.s32 %v871
        %v878 = vshll.u32 %v877, 16
        %v879 = vadd.s32 %v878, %v876
        %v880 = vsel %vm667, %v816, 2147483647
        %v881 = vand.u32 %v880, 65535
        %v882 = vshra.s32 %v880, 16
        %v883 = vcvt.s32.f32 %v881
        %v884 = vcvt.s32.f32 %v882
        %885 = vmin.xlane.f32.xlu0 %v884
        %v886 = vpop.xlane.xlu0 %885
        %vm887 = vcmp.eq.f32.partialorder %v884, %v886
        %v888 = vsel %vm887, %v883, inf
        %889 = vmin.xlane.f32.xlu0 %v888
        %v890 = vpop.xlane.xlu0 %889
        %v891 = vcvt.f32.s32 %v890
        %v892 = vcvt.f32.s32 %v886
        %v893 = vshll.u32 %v892, 16
        %v894 = vadd.s32 %v893, %v891
        %v895 = vsel %vm667, %v817, 2147483647
        %v896 = vand.u32 %v895, 65535
        %v897 = vshra.s32 %v895, 16
        %v898 = vcvt.s32.f32 %v896
        %v899 = vcvt.s32.f32 %v897
        %900 = vmin.xlane.f32.xlu0 %v899
        %v901 = vpop.xlane.xlu0 %900
        %vm902 = vcmp.eq.f32.partialorder %v899, %v901
        %v903 = vsel %vm902, %v898, inf
        %904 = vmin.xlane.f32.xlu0 %v903
        %v905 = vpop.xlane.xlu0 %904
        %v906 = vcvt.f32.s32 %v905
        %v907 = vcvt.f32.s32 %v901
        %v908 = vshll.u32 %v907, 16
        %v909 = vadd.s32 %v908, %v906
        %v910 = vsel %vm667, %v818, 2147483647
        %v911 = vand.u32 %v910, 65535
        %v912 = vshra.s32 %v910, 16
        %v913 = vcvt.s32.f32 %v911
        %v914 = vcvt.s32.f32 %v912
        %915 = vmin.xlane.f32.xlu0 %v914
        %v916 = vpop.xlane.xlu0 %915
        %vm917 = vcmp.eq.f32.partialorder %v914, %v916
        %v918 = vsel %vm917, %v913, inf
        %919 = vmin.xlane.f32.xlu0 %v918
        %v920 = vpop.xlane.xlu0 %919
        %v921 = vcvt.f32.s32 %v920
        %v922 = vcvt.f32.s32 %v916
        %v923 = vshll.u32 %v922, 16
        %v924 = vadd.s32 %v923, %v921
        %v925 = vsel %vm667, %v819, 2147483647
        %v926 = vand.u32 %v925, 65535
        %v927 = vshra.s32 %v925, 16
        %v928 = vcvt.s32.f32 %v926
        %v929 = vcvt.s32.f32 %v927
        %930 = vmin.xlane.f32.xlu0 %v929
        %v931 = vpop.xlane.xlu0 %930
        %vm932 = vcmp.eq.f32.partialorder %v929, %v931
        %v933 = vsel %vm932, %v928, inf
        %934 = vmin.xlane.f32.xlu0 %v933
        %v935 = vpop.xlane.xlu0 %934
        %v936 = vcvt.f32.s32 %v935
        %v937 = vcvt.f32.s32 %v931
        %v938 = vshll.u32 %v937, 16
        %v939 = vadd.s32 %v938, %v936
        %vm940 = vcmp.eq.s32.totalorder %v812, %v834
        %vm941 = vcmp.eq.s32.totalorder %v813, %v849
        %vm942 = vcmp.eq.s32.totalorder %v814, %v864
        %vm943 = vcmp.eq.s32.totalorder %v815, %v879
        %vm944 = vcmp.eq.s32.totalorder %v816, %v894
        %vm945 = vcmp.eq.s32.totalorder %v817, %v909
        %vm946 = vcmp.eq.s32.totalorder %v818, %v924
        %vm947 = vcmp.eq.s32.totalorder %v819, %v939
        %v948 = vsel %vm940, %v633, 0.0
        %v949 = vsel %vm941, %v634, 0.0
        %v950 = vsel %vm942, %v635, 0.0
        %v951 = vsel %vm943, %v636, 0.0
        %v952 = vsel %vm944, %v637, 0.0
        %v953 = vsel %vm945, %v638, 0.0
        %v954 = vsel %vm946, %v639, 0.0
        %v955 = vsel %vm947, %v640, 0.0
        %v956 = vadd.f32 %v804, %v948
        %v957 = vadd.f32 %v805, %v949
        %v958 = vadd.f32 %v806, %v950
        %v959 = vadd.f32 %v807, %v951
        %v960 = vadd.f32 %v808, %v952
        %v961 = vadd.f32 %v809, %v953
        %v962 = vadd.f32 %v810, %v954
        %v963 = vadd.f32 %v811, %v955
        %v964 = vsel %vm940, 2147483647, %v812
        %v965 = vsel %vm941, 2147483647, %v813
        %v966 = vsel %vm942, 2147483647, %v814
        %v967 = vsel %vm943, 2147483647, %v815
        %v968 = vsel %vm944, 2147483647, %v816
        %v969 = vsel %vm945, 2147483647, %v817
        %v970 = vsel %vm946, 2147483647, %v818
        %v971 = vsel %vm947, 2147483647, %v819
        %v972 = vsel %vm667, %v964, 2147483647
        %v973 = vand.u32 %v972, 65535
        %v974 = vshra.s32 %v972, 16
        %v975 = vcvt.s32.f32 %v973
        %v976 = vcvt.s32.f32 %v974
        %977 = vmin.xlane.f32.xlu0 %v976
        %v978 = vpop.xlane.xlu0 %977
        %vm979 = vcmp.eq.f32.partialorder %v976, %v978
        %v980 = vsel %vm979, %v975, inf
        %981 = vmin.xlane.f32.xlu0 %v980
        %v982 = vpop.xlane.xlu0 %981
        %v983 = vcvt.f32.s32 %v982
        %v984 = vcvt.f32.s32 %v978
        %v985 = vshll.u32 %v984, 16
        %v986 = vadd.s32 %v985, %v983
        %v987 = vsel %vm667, %v965, 2147483647
        %v988 = vand.u32 %v987, 65535
        %v989 = vshra.s32 %v987, 16
        %v990 = vcvt.s32.f32 %v988
        %v991 = vcvt.s32.f32 %v989
        %992 = vmin.xlane.f32.xlu0 %v991
        %v993 = vpop.xlane.xlu0 %992
        %vm994 = vcmp.eq.f32.partialorder %v991, %v993
        %v995 = vsel %vm994, %v990, inf
        %996 = vmin.xlane.f32.xlu0 %v995
        %v997 = vpop.xlane.xlu0 %996
        %v998 = vcvt.f32.s32 %v997
        %v999 = vcvt.f32.s32 %v993
        %v1000 = vshll.u32 %v999, 16
        %v1001 = vadd.s32 %v1000, %v998
        %v1002 = vsel %vm667, %v966, 2147483647
        %v1003 = vand.u32 %v1002, 65535
        %v1004 = vshra.s32 %v1002, 16
        %v1005 = vcvt.s32.f32 %v1003
        %v1006 = vcvt.s32.f32 %v1004
        %1007 = vmin.xlane.f32.xlu0 %v1006
        %v1008 = vpop.xlane.xlu0 %1007
        %vm1009 = vcmp.eq.f32.partialorder %v1006, %v1008
        %v1010 = vsel %vm1009, %v1005, inf
        %1011 = vmin.xlane.f32.xlu0 %v1010
        %v1012 = vpop.xlane.xlu0 %1011
        %v1013 = vcvt.f32.s32 %v1012
        %v1014 = vcvt.f32.s32 %v1008
        %v1015 = vshll.u32 %v1014, 16
        %v1016 = vadd.s32 %v1015, %v1013
        %v1017 = vsel %vm667, %v967, 2147483647
        %v1018 = vand.u32 %v1017, 65535
        %v1019 = vshra.s32 %v1017, 16
        %v1020 = vcvt.s32.f32 %v1018
        %v1021 = vcvt.s32.f32 %v1019
        %1022 = vmin.xlane.f32.xlu0 %v1021
        %v1023 = vpop.xlane.xlu0 %1022
        %vm1024 = vcmp.eq.f32.partialorder %v1021, %v1023
        %v1025 = vsel %vm1024, %v1020, inf
        %1026 = vmin.xlane.f32.xlu0 %v1025
        %v1027 = vpop.xlane.xlu0 %1026
        %v1028 = vcvt.f32.s32 %v1027
        %v1029 = vcvt.f32.s32 %v1023
        %v1030 = vshll.u32 %v1029, 16
        %v1031 = vadd.s32 %v1030, %v1028
        %v1032 = vsel %vm667, %v968, 2147483647
        %v1033 = vand.u32 %v1032, 65535
        %v1034 = vshra.s32 %v1032, 16
        %v1035 = vcvt.s32.f32 %v1033
        %v1036 = vcvt.s32.f32 %v1034
        %1037 = vmin.xlane.f32.xlu0 %v1036
        %v1038 = vpop.xlane.xlu0 %1037
        %vm1039 = vcmp.eq.f32.partialorder %v1036, %v1038
        %v1040 = vsel %vm1039, %v1035, inf
        %1041 = vmin.xlane.f32.xlu0 %v1040
        %v1042 = vpop.xlane.xlu0 %1041
        %v1043 = vcvt.f32.s32 %v1042
        %v1044 = vcvt.f32.s32 %v1038
        %v1045 = vshll.u32 %v1044, 16
        %v1046 = vadd.s32 %v1045, %v1043
        %v1047 = vsel %vm667, %v969, 2147483647
        %v1048 = vand.u32 %v1047, 65535
        %v1049 = vshra.s32 %v1047, 16
        %v1050 = vcvt.s32.f32 %v1048
        %v1051 = vcvt.s32.f32 %v1049
        %1052 = vmin.xlane.f32.xlu0 %v1051
        %v1053 = vpop.xlane.xlu0 %1052
        %vm1054 = vcmp.eq.f32.partialorder %v1051, %v1053
        %v1055 = vsel %vm1054, %v1050, inf
        %1056 = vmin.xlane.f32.xlu0 %v1055
        %v1057 = vpop.xlane.xlu0 %1056
        %v1058 = vcvt.f32.s32 %v1057
        %v1059 = vcvt.f32.s32 %v1053
        %v1060 = vshll.u32 %v1059, 16
        %v1061 = vadd.s32 %v1060, %v1058
        %v1062 = vsel %vm667, %v970, 2147483647
        %v1063 = vand.u32 %v1062, 65535
        %v1064 = vshra.s32 %v1062, 16
        %v1065 = vcvt.s32.f32 %v1063
        %v1066 = vcvt.s32.f32 %v1064
        %1067 = vmin.xlane.f32.xlu0 %v1066
        %v1068 = vpop.xlane.xlu0 %1067
        %vm1069 = vcmp.eq.f32.partialorder %v1066, %v1068
        %v1070 = vsel %vm1069, %v1065, inf
        %1071 = vmin.xlane.f32.xlu0 %v1070
        %v1072 = vpop.xlane.xlu0 %1071
        %v1073 = vcvt.f32.s32 %v1072
        %v1074 = vcvt.f32.s32 %v1068
        %v1075 = vshll.u32 %v1074, 16
        %v1076 = vadd.s32 %v1075, %v1073
        %v1077 = vsel %vm667, %v971, 2147483647
        %v1078 = vand.u32 %v1077, 65535
        %v1079 = vshra.s32 %v1077, 16
        %v1080 = vcvt.s32.f32 %v1078
        %v1081 = vcvt.s32.f32 %v1079
        %1082 = vmin.xlane.f32.xlu0 %v1081
        %v1083 = vpop.xlane.xlu0 %1082
        %vm1084 = vcmp.eq.f32.partialorder %v1081, %v1083
        %v1085 = vsel %vm1084, %v1080, inf
        %1086 = vmin.xlane.f32.xlu0 %v1085
        %v1087 = vpop.xlane.xlu0 %1086
        %v1088 = vcvt.f32.s32 %v1087
        %v1089 = vcvt.f32.s32 %v1083
        %v1090 = vshll.u32 %v1089, 16
        %v1091 = vadd.s32 %v1090, %v1088
        %vm1092 = vcmp.eq.s32.totalorder %v964, %v986
        %vm1093 = vcmp.eq.s32.totalorder %v965, %v1001
        %vm1094 = vcmp.eq.s32.totalorder %v966, %v1016
        %vm1095 = vcmp.eq.s32.totalorder %v967, %v1031
        %vm1096 = vcmp.eq.s32.totalorder %v968, %v1046
        %vm1097 = vcmp.eq.s32.totalorder %v969, %v1061
        %vm1098 = vcmp.eq.s32.totalorder %v970, %v1076
        %vm1099 = vcmp.eq.s32.totalorder %v971, %v1091
        %v1100 = vsel %vm1092, %v633, 0.0
        %v1101 = vsel %vm1093, %v634, 0.0
        %v1102 = vsel %vm1094, %v635, 0.0
        %v1103 = vsel %vm1095, %v636, 0.0
        %v1104 = vsel %vm1096, %v637, 0.0
        %v1105 = vsel %vm1097, %v638, 0.0
        %v1106 = vsel %vm1098, %v639, 0.0
        %v1107 = vsel %vm1099, %v640, 0.0
        %v1108 = vadd.f32 %v956, %v1100
        %v1109 = vadd.f32 %v957, %v1101
        %v1110 = vadd.f32 %v958, %v1102
        %v1111 = vadd.f32 %v959, %v1103
        %v1112 = vadd.f32 %v960, %v1104
        %v1113 = vadd.f32 %v961, %v1105
        %v1114 = vadd.f32 %v962, %v1106
        %v1115 = vadd.f32 %v963, %v1107
        %v1116 = vsel %vm1092, 2147483647, %v964
        %v1117 = vsel %vm1093, 2147483647, %v965
        %v1118 = vsel %vm1094, 2147483647, %v966
        %v1119 = vsel %vm1095, 2147483647, %v967
        %v1120 = vsel %vm1096, 2147483647, %v968
        %v1121 = vsel %vm1097, 2147483647, %v969
        %v1122 = vsel %vm1098, 2147483647, %v970
        %v1123 = vsel %vm1099, 2147483647, %v971
        %v1124 = vsel %vm667, %v1116, 2147483647
        %v1125 = vand.u32 %v1124, 65535
        %v1126 = vshra.s32 %v1124, 16
        %v1127 = vcvt.s32.f32 %v1125
        %v1128 = vcvt.s32.f32 %v1126
        %1129 = vmin.xlane.f32.xlu0 %v1128
        %v1130 = vpop.xlane.xlu0 %1129
        %vm1131 = vcmp.eq.f32.partialorder %v1128, %v1130
        %v1132 = vsel %vm1131, %v1127, inf
        %1133 = vmin.xlane.f32.xlu0 %v1132
        %v1134 = vpop.xlane.xlu0 %1133
        %v1135 = vcvt.f32.s32 %v1134
        %v1136 = vcvt.f32.s32 %v1130
        %v1137 = vshll.u32 %v1136, 16
        %v1138 = vadd.s32 %v1137, %v1135
        %v1139 = vsel %vm667, %v1117, 2147483647
        %v1140 = vand.u32 %v1139, 65535
        %v1141 = vshra.s32 %v1139, 16
        %v1142 = vcvt.s32.f32 %v1140
        %v1143 = vcvt.s32.f32 %v1141
        %1144 = vmin.xlane.f32.xlu0 %v1143
        %v1145 = vpop.xlane.xlu0 %1144
        %vm1146 = vcmp.eq.f32.partialorder %v1143, %v1145
        %v1147 = vsel %vm1146, %v1142, inf
        %1148 = vmin.xlane.f32.xlu0 %v1147
        %v1149 = vpop.xlane.xlu0 %1148
        %v1150 = vcvt.f32.s32 %v1149
        %v1151 = vcvt.f32.s32 %v1145
        %v1152 = vshll.u32 %v1151, 16
        %v1153 = vadd.s32 %v1152, %v1150
        %v1154 = vsel %vm667, %v1118, 2147483647
        %v1155 = vand.u32 %v1154, 65535
        %v1156 = vshra.s32 %v1154, 16
        %v1157 = vcvt.s32.f32 %v1155
        %v1158 = vcvt.s32.f32 %v1156
        %1159 = vmin.xlane.f32.xlu0 %v1158
        %v1160 = vpop.xlane.xlu0 %1159
        %vm1161 = vcmp.eq.f32.partialorder %v1158, %v1160
        %v1162 = vsel %vm1161, %v1157, inf
        %1163 = vmin.xlane.f32.xlu0 %v1162
        %v1164 = vpop.xlane.xlu0 %1163
        %v1165 = vcvt.f32.s32 %v1164
        %v1166 = vcvt.f32.s32 %v1160
        %v1167 = vshll.u32 %v1166, 16
        %v1168 = vadd.s32 %v1167, %v1165
        %v1169 = vsel %vm667, %v1119, 2147483647
        %v1170 = vand.u32 %v1169, 65535
        %v1171 = vshra.s32 %v1169, 16
        %v1172 = vcvt.s32.f32 %v1170
        %v1173 = vcvt.s32.f32 %v1171
        %1174 = vmin.xlane.f32.xlu0 %v1173
        %v1175 = vpop.xlane.xlu0 %1174
        %vm1176 = vcmp.eq.f32.partialorder %v1173, %v1175
        %v1177 = vsel %vm1176, %v1172, inf
        %1178 = vmin.xlane.f32.xlu0 %v1177
        %v1179 = vpop.xlane.xlu0 %1178
        %v1180 = vcvt.f32.s32 %v1179
        %v1181 = vcvt.f32.s32 %v1175
        %v1182 = vshll.u32 %v1181, 16
        %v1183 = vadd.s32 %v1182, %v1180
        %v1184 = vsel %vm667, %v1120, 2147483647
        %v1185 = vand.u32 %v1184, 65535
        %v1186 = vshra.s32 %v1184, 16
        %v1187 = vcvt.s32.f32 %v1185
        %v1188 = vcvt.s32.f32 %v1186
        %1189 = vmin.xlane.f32.xlu0 %v1188
        %v1190 = vpop.xlane.xlu0 %1189
        %vm1191 = vcmp.eq.f32.partialorder %v1188, %v1190
        %v1192 = vsel %vm1191, %v1187, inf
        %1193 = vmin.xlane.f32.xlu0 %v1192
        %v1194 = vpop.xlane.xlu0 %1193
        %v1195 = vcvt.f32.s32 %v1194
        %v1196 = vcvt.f32.s32 %v1190
        %v1197 = vshll.u32 %v1196, 16
        %v1198 = vadd.s32 %v1197, %v1195
        %v1199 = vsel %vm667, %v1121, 2147483647
        %v1200 = vand.u32 %v1199, 65535
        %v1201 = vshra.s32 %v1199, 16
        %v1202 = vcvt.s32.f32 %v1200
        %v1203 = vcvt.s32.f32 %v1201
        %1204 = vmin.xlane.f32.xlu0 %v1203
        %v1205 = vpop.xlane.xlu0 %1204
        %vm1206 = vcmp.eq.f32.partialorder %v1203, %v1205
        %v1207 = vsel %vm1206, %v1202, inf
        %1208 = vmin.xlane.f32.xlu0 %v1207
        %v1209 = vpop.xlane.xlu0 %1208
        %v1210 = vcvt.f32.s32 %v1209
        %v1211 = vcvt.f32.s32 %v1205
        %v1212 = vshll.u32 %v1211, 16
        %v1213 = vadd.s32 %v1212, %v1210
        %v1214 = vsel %vm667, %v1122, 2147483647
        %v1215 = vand.u32 %v1214, 65535
        %v1216 = vshra.s32 %v1214, 16
        %v1217 = vcvt.s32.f32 %v1215
        %v1218 = vcvt.s32.f32 %v1216
        %1219 = vmin.xlane.f32.xlu0 %v1218
        %v1220 = vpop.xlane.xlu0 %1219
        %vm1221 = vcmp.eq.f32.partialorder %v1218, %v1220
        %v1222 = vsel %vm1221, %v1217, inf
        %1223 = vmin.xlane.f32.xlu0 %v1222
        %v1224 = vpop.xlane.xlu0 %1223
        %v1225 = vcvt.f32.s32 %v1224
        %v1226 = vcvt.f32.s32 %v1220
        %v1227 = vshll.u32 %v1226, 16
        %v1228 = vadd.s32 %v1227, %v1225
        %v1229 = vsel %vm667, %v1123, 2147483647
        %v1230 = vand.u32 %v1229, 65535
        %v1231 = vshra.s32 %v1229, 16
        %v1232 = vcvt.s32.f32 %v1230
        %v1233 = vcvt.s32.f32 %v1231
        %1234 = vmin.xlane.f32.xlu0 %v1233
        %v1235 = vpop.xlane.xlu0 %1234
        %vm1236 = vcmp.eq.f32.partialorder %v1233, %v1235
        %v1237 = vsel %vm1236, %v1232, inf
        %1238 = vmin.xlane.f32.xlu0 %v1237
        %v1239 = vpop.xlane.xlu0 %1238
        %v1240 = vcvt.f32.s32 %v1239
        %v1241 = vcvt.f32.s32 %v1235
        %v1242 = vshll.u32 %v1241, 16
        %v1243 = vadd.s32 %v1242, %v1240
        %vm1244 = vcmp.eq.s32.totalorder %v1116, %v1138
        %vm1245 = vcmp.eq.s32.totalorder %v1117, %v1153
        %vm1246 = vcmp.eq.s32.totalorder %v1118, %v1168
        %vm1247 = vcmp.eq.s32.totalorder %v1119, %v1183
        %vm1248 = vcmp.eq.s32.totalorder %v1120, %v1198
        %vm1249 = vcmp.eq.s32.totalorder %v1121, %v1213
        %vm1250 = vcmp.eq.s32.totalorder %v1122, %v1228
        %vm1251 = vcmp.eq.s32.totalorder %v1123, %v1243
        %v1252 = vsel %vm1244, %v633, 0.0
        %v1253 = vsel %vm1245, %v634, 0.0
        %v1254 = vsel %vm1246, %v635, 0.0
        %v1255 = vsel %vm1247, %v636, 0.0
        %v1256 = vsel %vm1248, %v637, 0.0
        %v1257 = vsel %vm1249, %v638, 0.0
        %v1258 = vsel %vm1250, %v639, 0.0
        %v1259 = vsel %vm1251, %v640, 0.0
        %v1260 = vadd.f32 %v1108, %v1252
        %v1261 = vadd.f32 %v1109, %v1253
        %v1262 = vadd.f32 %v1110, %v1254
        %v1263 = vadd.f32 %v1111, %v1255
        %v1264 = vadd.f32 %v1112, %v1256
        %v1265 = vadd.f32 %v1113, %v1257
        %v1266 = vadd.f32 %v1114, %v1258
        %v1267 = vadd.f32 %v1115, %v1259
        %v1268 = vsel %vm1244, 2147483647, %v1116
        %v1269 = vsel %vm1245, 2147483647, %v1117
        %v1270 = vsel %vm1246, 2147483647, %v1118
        %v1271 = vsel %vm1247, 2147483647, %v1119
        %v1272 = vsel %vm1248, 2147483647, %v1120
        %v1273 = vsel %vm1249, 2147483647, %v1121
        %v1274 = vsel %vm1250, 2147483647, %v1122
        %v1275 = vsel %vm1251, 2147483647, %v1123
        %v1276 = vsel %vm667, %v1268, 2147483647
        %v1277 = vand.u32 %v1276, 65535
        %v1278 = vshra.s32 %v1276, 16
        %v1279 = vcvt.s32.f32 %v1277
        %v1280 = vcvt.s32.f32 %v1278
        %1281 = vmin.xlane.f32.xlu0 %v1280
        %v1282 = vpop.xlane.xlu0 %1281
        %vm1283 = vcmp.eq.f32.partialorder %v1280, %v1282
        %v1284 = vsel %vm1283, %v1279, inf
        %1285 = vmin.xlane.f32.xlu0 %v1284
        %v1286 = vpop.xlane.xlu0 %1285
        %v1287 = vcvt.f32.s32 %v1286
        %v1288 = vcvt.f32.s32 %v1282
        %v1289 = vshll.u32 %v1288, 16
        %v1290 = vadd.s32 %v1289, %v1287
        %v1291 = vsel %vm667, %v1269, 2147483647
        %v1292 = vand.u32 %v1291, 65535
        %v1293 = vshra.s32 %v1291, 16
        %v1294 = vcvt.s32.f32 %v1292
        %v1295 = vcvt.s32.f32 %v1293
        %1296 = vmin.xlane.f32.xlu0 %v1295
        %v1297 = vpop.xlane.xlu0 %1296
        %vm1298 = vcmp.eq.f32.partialorder %v1295, %v1297
        %v1299 = vsel %vm1298, %v1294, inf
        %1300 = vmin.xlane.f32.xlu0 %v1299
        %v1301 = vpop.xlane.xlu0 %1300
        %v1302 = vcvt.f32.s32 %v1301
        %v1303 = vcvt.f32.s32 %v1297
        %v1304 = vshll.u32 %v1303, 16
        %v1305 = vadd.s32 %v1304, %v1302
        %v1306 = vsel %vm667, %v1270, 2147483647
        %v1307 = vand.u32 %v1306, 65535
        %v1308 = vshra.s32 %v1306, 16
        %v1309 = vcvt.s32.f32 %v1307
        %v1310 = vcvt.s32.f32 %v1308
        %1311 = vmin.xlane.f32.xlu0 %v1310
        %v1312 = vpop.xlane.xlu0 %1311
        %vm1313 = vcmp.eq.f32.partialorder %v1310, %v1312
        %v1314 = vsel %vm1313, %v1309, inf
        %1315 = vmin.xlane.f32.xlu0 %v1314
        %v1316 = vpop.xlane.xlu0 %1315
        %v1317 = vcvt.f32.s32 %v1316
        %v1318 = vcvt.f32.s32 %v1312
        %v1319 = vshll.u32 %v1318, 16
        %v1320 = vadd.s32 %v1319, %v1317
        %v1321 = vsel %vm667, %v1271, 2147483647
        %v1322 = vand.u32 %v1321, 65535
        %v1323 = vshra.s32 %v1321, 16
        %v1324 = vcvt.s32.f32 %v1322
        %v1325 = vcvt.s32.f32 %v1323
        %1326 = vmin.xlane.f32.xlu0 %v1325
        %v1327 = vpop.xlane.xlu0 %1326
        %vm1328 = vcmp.eq.f32.partialorder %v1325, %v1327
        %v1329 = vsel %vm1328, %v1324, inf
        %1330 = vmin.xlane.f32.xlu0 %v1329
        %v1331 = vpop.xlane.xlu0 %1330
        %v1332 = vcvt.f32.s32 %v1331
        %v1333 = vcvt.f32.s32 %v1327
        %v1334 = vshll.u32 %v1333, 16
        %v1335 = vadd.s32 %v1334, %v1332
        %v1336 = vsel %vm667, %v1272, 2147483647
        %v1337 = vand.u32 %v1336, 65535
        %v1338 = vshra.s32 %v1336, 16
        %v1339 = vcvt.s32.f32 %v1337
        %v1340 = vcvt.s32.f32 %v1338
        %1341 = vmin.xlane.f32.xlu0 %v1340
        %v1342 = vpop.xlane.xlu0 %1341
        %vm1343 = vcmp.eq.f32.partialorder %v1340, %v1342
        %v1344 = vsel %vm1343, %v1339, inf
        %1345 = vmin.xlane.f32.xlu0 %v1344
        %v1346 = vpop.xlane.xlu0 %1345
        %v1347 = vcvt.f32.s32 %v1346
        %v1348 = vcvt.f32.s32 %v1342
        %v1349 = vshll.u32 %v1348, 16
        %v1350 = vadd.s32 %v1349, %v1347
        %v1351 = vsel %vm667, %v1273, 2147483647
        %v1352 = vand.u32 %v1351, 65535
        %v1353 = vshra.s32 %v1351, 16
        %v1354 = vcvt.s32.f32 %v1352
        %v1355 = vcvt.s32.f32 %v1353
        %1356 = vmin.xlane.f32.xlu0 %v1355
        %v1357 = vpop.xlane.xlu0 %1356
        %vm1358 = vcmp.eq.f32.partialorder %v1355, %v1357
        %v1359 = vsel %vm1358, %v1354, inf
        %1360 = vmin.xlane.f32.xlu0 %v1359
        %v1361 = vpop.xlane.xlu0 %1360
        %v1362 = vcvt.f32.s32 %v1361
        %v1363 = vcvt.f32.s32 %v1357
        %v1364 = vshll.u32 %v1363, 16
        %v1365 = vadd.s32 %v1364, %v1362
        %v1366 = vsel %vm667, %v1274, 2147483647
        %v1367 = vand.u32 %v1366, 65535
        %v1368 = vshra.s32 %v1366, 16
        %v1369 = vcvt.s32.f32 %v1367
        %v1370 = vcvt.s32.f32 %v1368
        %1371 = vmin.xlane.f32.xlu0 %v1370
        %v1372 = vpop.xlane.xlu0 %1371
        %vm1373 = vcmp.eq.f32.partialorder %v1370, %v1372
        %v1374 = vsel %vm1373, %v1369, inf
        %1375 = vmin.xlane.f32.xlu0 %v1374
        %v1376 = vpop.xlane.xlu0 %1375
        %v1377 = vcvt.f32.s32 %v1376
        %v1378 = vcvt.f32.s32 %v1372
        %v1379 = vshll.u32 %v1378, 16
        %v1380 = vadd.s32 %v1379, %v1377
        %v1381 = vsel %vm667, %v1275, 2147483647
        %v1382 = vand.u32 %v1381, 65535
        %v1383 = vshra.s32 %v1381, 16
        %v1384 = vcvt.s32.f32 %v1382
        %v1385 = vcvt.s32.f32 %v1383
        %1386 = vmin.xlane.f32.xlu0 %v1385
        %v1387 = vpop.xlane.xlu0 %1386
        %vm1388 = vcmp.eq.f32.partialorder %v1385, %v1387
        %v1389 = vsel %vm1388, %v1384, inf
        %1390 = vmin.xlane.f32.xlu0 %v1389
        %v1391 = vpop.xlane.xlu0 %1390
        %v1392 = vcvt.f32.s32 %v1391
        %v1393 = vcvt.f32.s32 %v1387
        %v1394 = vshll.u32 %v1393, 16
        %v1395 = vadd.s32 %v1394, %v1392
        %vm1396 = vcmp.eq.s32.totalorder %v1268, %v1290
        %vm1397 = vcmp.eq.s32.totalorder %v1269, %v1305
        %vm1398 = vcmp.eq.s32.totalorder %v1270, %v1320
        %vm1399 = vcmp.eq.s32.totalorder %v1271, %v1335
        %vm1400 = vcmp.eq.s32.totalorder %v1272, %v1350
        %vm1401 = vcmp.eq.s32.totalorder %v1273, %v1365
        %vm1402 = vcmp.eq.s32.totalorder %v1274, %v1380
        %vm1403 = vcmp.eq.s32.totalorder %v1275, %v1395
        %v1404 = vsel %vm1396, %v633, 0.0
        %v1405 = vsel %vm1397, %v634, 0.0
        %v1406 = vsel %vm1398, %v635, 0.0
        %v1407 = vsel %vm1399, %v636, 0.0
        %v1408 = vsel %vm1400, %v637, 0.0
        %v1409 = vsel %vm1401, %v638, 0.0
        %v1410 = vsel %vm1402, %v639, 0.0
        %v1411 = vsel %vm1403, %v640, 0.0
        %v1412 = vadd.f32 %v1260, %v1404
        %v1413 = vadd.f32 %v1261, %v1405
        %v1414 = vadd.f32 %v1262, %v1406
        %v1415 = vadd.f32 %v1263, %v1407
        %v1416 = vadd.f32 %v1264, %v1408
        %v1417 = vadd.f32 %v1265, %v1409
        %v1418 = vadd.f32 %v1266, %v1410
        %v1419 = vadd.f32 %v1267, %v1411
        %v1420 = vsel %vm1396, 2147483647, %v1268
        %v1421 = vsel %vm1397, 2147483647, %v1269
        %v1422 = vsel %vm1398, 2147483647, %v1270
        %v1423 = vsel %vm1399, 2147483647, %v1271
        %v1424 = vsel %vm1400, 2147483647, %v1272
        %v1425 = vsel %vm1401, 2147483647, %v1273
        %v1426 = vsel %vm1402, 2147483647, %v1274
        %v1427 = vsel %vm1403, 2147483647, %v1275
        %v1428 = vsel %vm667, %v1420, 2147483647
        %v1429 = vand.u32 %v1428, 65535
        %v1430 = vshra.s32 %v1428, 16
        %v1431 = vcvt.s32.f32 %v1429
        %v1432 = vcvt.s32.f32 %v1430
        %1433 = vmin.xlane.f32.xlu0 %v1432
        %v1434 = vpop.xlane.xlu0 %1433
        %vm1435 = vcmp.eq.f32.partialorder %v1432, %v1434
        %v1436 = vsel %vm1435, %v1431, inf
        %1437 = vmin.xlane.f32.xlu0 %v1436
        %v1438 = vpop.xlane.xlu0 %1437
        %v1439 = vcvt.f32.s32 %v1438
        %v1440 = vcvt.f32.s32 %v1434
        %v1441 = vshll.u32 %v1440, 16
        %v1442 = vadd.s32 %v1441, %v1439
        %v1443 = vsel %vm667, %v1421, 2147483647
        %v1444 = vand.u32 %v1443, 65535
        %v1445 = vshra.s32 %v1443, 16
        %v1446 = vcvt.s32.f32 %v1444
        %v1447 = vcvt.s32.f32 %v1445
        %1448 = vmin.xlane.f32.xlu0 %v1447
        %v1449 = vpop.xlane.xlu0 %1448
        %vm1450 = vcmp.eq.f32.partialorder %v1447, %v1449
        %v1451 = vsel %vm1450, %v1446, inf
        %1452 = vmin.xlane.f32.xlu0 %v1451
        %v1453 = vpop.xlane.xlu0 %1452
        %v1454 = vcvt.f32.s32 %v1453
        %v1455 = vcvt.f32.s32 %v1449
        %v1456 = vshll.u32 %v1455, 16
        %v1457 = vadd.s32 %v1456, %v1454
        %v1458 = vsel %vm667, %v1422, 2147483647
        %v1459 = vand.u32 %v1458, 65535
        %v1460 = vshra.s32 %v1458, 16
        %v1461 = vcvt.s32.f32 %v1459
        %v1462 = vcvt.s32.f32 %v1460
        %1463 = vmin.xlane.f32.xlu0 %v1462
        %v1464 = vpop.xlane.xlu0 %1463
        %vm1465 = vcmp.eq.f32.partialorder %v1462, %v1464
        %v1466 = vsel %vm1465, %v1461, inf
        %1467 = vmin.xlane.f32.xlu0 %v1466
        %v1468 = vpop.xlane.xlu0 %1467
        %v1469 = vcvt.f32.s32 %v1468
        %v1470 = vcvt.f32.s32 %v1464
        %v1471 = vshll.u32 %v1470, 16
        %v1472 = vadd.s32 %v1471, %v1469
        %v1473 = vsel %vm667, %v1423, 2147483647
        %v1474 = vand.u32 %v1473, 65535
        %v1475 = vshra.s32 %v1473, 16
        %v1476 = vcvt.s32.f32 %v1474
        %v1477 = vcvt.s32.f32 %v1475
        %1478 = vmin.xlane.f32.xlu0 %v1477
        %v1479 = vpop.xlane.xlu0 %1478
        %vm1480 = vcmp.eq.f32.partialorder %v1477, %v1479
        %v1481 = vsel %vm1480, %v1476, inf
        %1482 = vmin.xlane.f32.xlu0 %v1481
        %v1483 = vpop.xlane.xlu0 %1482
        %v1484 = vcvt.f32.s32 %v1483
        %v1485 = vcvt.f32.s32 %v1479
        %v1486 = vshll.u32 %v1485, 16
        %v1487 = vadd.s32 %v1486, %v1484
        %v1488 = vsel %vm667, %v1424, 2147483647
        %v1489 = vand.u32 %v1488, 65535
        %v1490 = vshra.s32 %v1488, 16
        %v1491 = vcvt.s32.f32 %v1489
        %v1492 = vcvt.s32.f32 %v1490
        %1493 = vmin.xlane.f32.xlu0 %v1492
        %v1494 = vpop.xlane.xlu0 %1493
        %vm1495 = vcmp.eq.f32.partialorder %v1492, %v1494
        %v1496 = vsel %vm1495, %v1491, inf
        %1497 = vmin.xlane.f32.xlu0 %v1496
        %v1498 = vpop.xlane.xlu0 %1497
        %v1499 = vcvt.f32.s32 %v1498
        %v1500 = vcvt.f32.s32 %v1494
        %v1501 = vshll.u32 %v1500, 16
        %v1502 = vadd.s32 %v1501, %v1499
        %v1503 = vsel %vm667, %v1425, 2147483647
        %v1504 = vand.u32 %v1503, 65535
        %v1505 = vshra.s32 %v1503, 16
        %v1506 = vcvt.s32.f32 %v1504
        %v1507 = vcvt.s32.f32 %v1505
        %1508 = vmin.xlane.f32.xlu0 %v1507
        %v1509 = vpop.xlane.xlu0 %1508
        %vm1510 = vcmp.eq.f32.partialorder %v1507, %v1509
        %v1511 = vsel %vm1510, %v1506, inf
        %1512 = vmin.xlane.f32.xlu0 %v1511
        %v1513 = vpop.xlane.xlu0 %1512
        %v1514 = vcvt.f32.s32 %v1513
        %v1515 = vcvt.f32.s32 %v1509
        %v1516 = vshll.u32 %v1515, 16
        %v1517 = vadd.s32 %v1516, %v1514
        %v1518 = vsel %vm667, %v1426, 2147483647
        %v1519 = vand.u32 %v1518, 65535
        %v1520 = vshra.s32 %v1518, 16
        %v1521 = vcvt.s32.f32 %v1519
        %v1522 = vcvt.s32.f32 %v1520
        %1523 = vmin.xlane.f32.xlu0 %v1522
        %v1524 = vpop.xlane.xlu0 %1523
        %vm1525 = vcmp.eq.f32.partialorder %v1522, %v1524
        %v1526 = vsel %vm1525, %v1521, inf
        %1527 = vmin.xlane.f32.xlu0 %v1526
        %v1528 = vpop.xlane.xlu0 %1527
        %v1529 = vcvt.f32.s32 %v1528
        %v1530 = vcvt.f32.s32 %v1524
        %v1531 = vshll.u32 %v1530, 16
        %v1532 = vadd.s32 %v1531, %v1529
        %v1533 = vsel %vm667, %v1427, 2147483647
        %v1534 = vand.u32 %v1533, 65535
        %v1535 = vshra.s32 %v1533, 16
        %v1536 = vcvt.s32.f32 %v1534
        %v1537 = vcvt.s32.f32 %v1535
        %1538 = vmin.xlane.f32.xlu0 %v1537
        %v1539 = vpop.xlane.xlu0 %1538
        %vm1540 = vcmp.eq.f32.partialorder %v1537, %v1539
        %v1541 = vsel %vm1540, %v1536, inf
        %1542 = vmin.xlane.f32.xlu0 %v1541
        %v1543 = vpop.xlane.xlu0 %1542
        %v1544 = vcvt.f32.s32 %v1543
        %v1545 = vcvt.f32.s32 %v1539
        %v1546 = vshll.u32 %v1545, 16
        %v1547 = vadd.s32 %v1546, %v1544
        %vm1548 = vcmp.eq.s32.totalorder %v1420, %v1442
        %vm1549 = vcmp.eq.s32.totalorder %v1421, %v1457
        %vm1550 = vcmp.eq.s32.totalorder %v1422, %v1472
        %vm1551 = vcmp.eq.s32.totalorder %v1423, %v1487
        %vm1552 = vcmp.eq.s32.totalorder %v1424, %v1502
        %vm1553 = vcmp.eq.s32.totalorder %v1425, %v1517
        %vm1554 = vcmp.eq.s32.totalorder %v1426, %v1532
        %vm1555 = vcmp.eq.s32.totalorder %v1427, %v1547
        %v1556 = vsel %vm1548, %v633, 0.0
        %v1557 = vsel %vm1549, %v634, 0.0
        %v1558 = vsel %vm1550, %v635, 0.0
        %v1559 = vsel %vm1551, %v636, 0.0
        %v1560 = vsel %vm1552, %v637, 0.0
        %v1561 = vsel %vm1553, %v638, 0.0
        %v1562 = vsel %vm1554, %v639, 0.0
        %v1563 = vsel %vm1555, %v640, 0.0
        %v1564 = vadd.f32 %v1412, %v1556
        %v1565 = vadd.f32 %v1413, %v1557
        %v1566 = vadd.f32 %v1414, %v1558
        %v1567 = vadd.f32 %v1415, %v1559
        %v1568 = vadd.f32 %v1416, %v1560
        %v1569 = vadd.f32 %v1417, %v1561
        %v1570 = vadd.f32 %v1418, %v1562
        %v1571 = vadd.f32 %v1419, %v1563
        %v1572 = vsel %vm1548, 2147483647, %v1420
        %v1573 = vsel %vm1549, 2147483647, %v1421
        %v1574 = vsel %vm1550, 2147483647, %v1422
        %v1575 = vsel %vm1551, 2147483647, %v1423
        %v1576 = vsel %vm1552, 2147483647, %v1424
        %v1577 = vsel %vm1553, 2147483647, %v1425
        %v1578 = vsel %vm1554, 2147483647, %v1426
        %v1579 = vsel %vm1555, 2147483647, %v1427
        %v1580 = vsel %vm667, %v1572, 2147483647
        %v1581 = vand.u32 %v1580, 65535
        %v1582 = vshra.s32 %v1580, 16
        %v1583 = vcvt.s32.f32 %v1581
        %v1584 = vcvt.s32.f32 %v1582
        %1585 = vmin.xlane.f32.xlu0 %v1584
        %v1586 = vpop.xlane.xlu0 %1585
        %vm1587 = vcmp.eq.f32.partialorder %v1584, %v1586
        %v1588 = vsel %vm1587, %v1583, inf
        %1589 = vmin.xlane.f32.xlu0 %v1588
        %v1590 = vpop.xlane.xlu0 %1589
        %v1591 = vcvt.f32.s32 %v1590
        %v1592 = vcvt.f32.s32 %v1586
        %v1593 = vshll.u32 %v1592, 16
        %v1594 = vadd.s32 %v1593, %v1591
        %v1595 = vsel %vm667, %v1573, 2147483647
        %v1596 = vand.u32 %v1595, 65535
        %v1597 = vshra.s32 %v1595, 16
        %v1598 = vcvt.s32.f32 %v1596
        %v1599 = vcvt.s32.f32 %v1597
        %1600 = vmin.xlane.f32.xlu0 %v1599
        %v1601 = vpop.xlane.xlu0 %1600
        %vm1602 = vcmp.eq.f32.partialorder %v1599, %v1601
        %v1603 = vsel %vm1602, %v1598, inf
        %1604 = vmin.xlane.f32.xlu0 %v1603
        %v1605 = vpop.xlane.xlu0 %1604
        %v1606 = vcvt.f32.s32 %v1605
        %v1607 = vcvt.f32.s32 %v1601
        %v1608 = vshll.u32 %v1607, 16
        %v1609 = vadd.s32 %v1608, %v1606
        %v1610 = vsel %vm667, %v1574, 2147483647
        %v1611 = vand.u32 %v1610, 65535
        %v1612 = vshra.s32 %v1610, 16
        %v1613 = vcvt.s32.f32 %v1611
        %v1614 = vcvt.s32.f32 %v1612
        %1615 = vmin.xlane.f32.xlu0 %v1614
        %v1616 = vpop.xlane.xlu0 %1615
        %vm1617 = vcmp.eq.f32.partialorder %v1614, %v1616
        %v1618 = vsel %vm1617, %v1613, inf
        %1619 = vmin.xlane.f32.xlu0 %v1618
        %v1620 = vpop.xlane.xlu0 %1619
        %v1621 = vcvt.f32.s32 %v1620
        %v1622 = vcvt.f32.s32 %v1616
        %v1623 = vshll.u32 %v1622, 16
        %v1624 = vadd.s32 %v1623, %v1621
        %v1625 = vsel %vm667, %v1575, 2147483647
        %v1626 = vand.u32 %v1625, 65535
        %v1627 = vshra.s32 %v1625, 16
        %v1628 = vcvt.s32.f32 %v1626
        %v1629 = vcvt.s32.f32 %v1627
        %1630 = vmin.xlane.f32.xlu0 %v1629
        %v1631 = vpop.xlane.xlu0 %1630
        %vm1632 = vcmp.eq.f32.partialorder %v1629, %v1631
        %v1633 = vsel %vm1632, %v1628, inf
        %1634 = vmin.xlane.f32.xlu0 %v1633
        %v1635 = vpop.xlane.xlu0 %1634
        %v1636 = vcvt.f32.s32 %v1635
        %v1637 = vcvt.f32.s32 %v1631
        %v1638 = vshll.u32 %v1637, 16
        %v1639 = vadd.s32 %v1638, %v1636
        %v1640 = vsel %vm667, %v1576, 2147483647
        %v1641 = vand.u32 %v1640, 65535
        %v1642 = vshra.s32 %v1640, 16
        %v1643 = vcvt.s32.f32 %v1641
        %v1644 = vcvt.s32.f32 %v1642
        %1645 = vmin.xlane.f32.xlu0 %v1644
        %v1646 = vpop.xlane.xlu0 %1645
        %vm1647 = vcmp.eq.f32.partialorder %v1644, %v1646
        %v1648 = vsel %vm1647, %v1643, inf
        %1649 = vmin.xlane.f32.xlu0 %v1648
        %v1650 = vpop.xlane.xlu0 %1649
        %v1651 = vcvt.f32.s32 %v1650
        %v1652 = vcvt.f32.s32 %v1646
        %v1653 = vshll.u32 %v1652, 16
        %v1654 = vadd.s32 %v1653, %v1651
        %v1655 = vsel %vm667, %v1577, 2147483647
        %v1656 = vand.u32 %v1655, 65535
        %v1657 = vshra.s32 %v1655, 16
        %v1658 = vcvt.s32.f32 %v1656
        %v1659 = vcvt.s32.f32 %v1657
        %1660 = vmin.xlane.f32.xlu0 %v1659
        %v1661 = vpop.xlane.xlu0 %1660
        %vm1662 = vcmp.eq.f32.partialorder %v1659, %v1661
        %v1663 = vsel %vm1662, %v1658, inf
        %1664 = vmin.xlane.f32.xlu0 %v1663
        %v1665 = vpop.xlane.xlu0 %1664
        %v1666 = vcvt.f32.s32 %v1665
        %v1667 = vcvt.f32.s32 %v1661
        %v1668 = vshll.u32 %v1667, 16
        %v1669 = vadd.s32 %v1668, %v1666
        %v1670 = vsel %vm667, %v1578, 2147483647
        %v1671 = vand.u32 %v1670, 65535
        %v1672 = vshra.s32 %v1670, 16
        %v1673 = vcvt.s32.f32 %v1671
        %v1674 = vcvt.s32.f32 %v1672
        %1675 = vmin.xlane.f32.xlu0 %v1674
        %v1676 = vpop.xlane.xlu0 %1675
        %vm1677 = vcmp.eq.f32.partialorder %v1674, %v1676
        %v1678 = vsel %vm1677, %v1673, inf
        %1679 = vmin.xlane.f32.xlu0 %v1678
        %v1680 = vpop.xlane.xlu0 %1679
        %v1681 = vcvt.f32.s32 %v1680
        %v1682 = vcvt.f32.s32 %v1676
        %v1683 = vshll.u32 %v1682, 16
        %v1684 = vadd.s32 %v1683, %v1681
        %v1685 = vsel %vm667, %v1579, 2147483647
        %v1686 = vand.u32 %v1685, 65535
        %v1687 = vshra.s32 %v1685, 16
        %v1688 = vcvt.s32.f32 %v1686
        %v1689 = vcvt.s32.f32 %v1687
        %1690 = vmin.xlane.f32.xlu0 %v1689
        %v1691 = vpop.xlane.xlu0 %1690
        %vm1692 = vcmp.eq.f32.partialorder %v1689, %v1691
        %v1693 = vsel %vm1692, %v1688, inf
        %1694 = vmin.xlane.f32.xlu0 %v1693
        %v1695 = vpop.xlane.xlu0 %1694
        %v1696 = vcvt.f32.s32 %v1695
        %v1697 = vcvt.f32.s32 %v1691
        %v1698 = vshll.u32 %v1697, 16
        %v1699 = vadd.s32 %v1698, %v1696
        %vm1700 = vcmp.eq.s32.totalorder %v1572, %v1594
        %vm1701 = vcmp.eq.s32.totalorder %v1573, %v1609
        %vm1702 = vcmp.eq.s32.totalorder %v1574, %v1624
        %vm1703 = vcmp.eq.s32.totalorder %v1575, %v1639
        %vm1704 = vcmp.eq.s32.totalorder %v1576, %v1654
        %vm1705 = vcmp.eq.s32.totalorder %v1577, %v1669
        %vm1706 = vcmp.eq.s32.totalorder %v1578, %v1684
        %vm1707 = vcmp.eq.s32.totalorder %v1579, %v1699
        %v1708 = vsel %vm1700, %v633, 0.0
        %v1709 = vsel %vm1701, %v634, 0.0
        %v1710 = vsel %vm1702, %v635, 0.0
        %v1711 = vsel %vm1703, %v636, 0.0
        %v1712 = vsel %vm1704, %v637, 0.0
        %v1713 = vsel %vm1705, %v638, 0.0
        %v1714 = vsel %vm1706, %v639, 0.0
        %v1715 = vsel %vm1707, %v640, 0.0
        %v1716 = vadd.f32 %v1564, %v1708
        %v1717 = vadd.f32 %v1565, %v1709
        %v1718 = vadd.f32 %v1566, %v1710
        %v1719 = vadd.f32 %v1567, %v1711
        %v1720 = vadd.f32 %v1568, %v1712
        %v1721 = vadd.f32 %v1569, %v1713
        %v1722 = vadd.f32 %v1570, %v1714
        %v1723 = vadd.f32 %v1571, %v1715
        %v1724 = vsel %vm1700, 2147483647, %v1572
        %v1725 = vsel %vm1701, 2147483647, %v1573
        %v1726 = vsel %vm1702, 2147483647, %v1574
        %v1727 = vsel %vm1703, 2147483647, %v1575
        %v1728 = vsel %vm1704, 2147483647, %v1576
        %v1729 = vsel %vm1705, 2147483647, %v1577
        %v1730 = vsel %vm1706, 2147483647, %v1578
        %v1731 = vsel %vm1707, 2147483647, %v1579
        %v1732 = vsel %vm667, %v1724, 2147483647
        %v1733 = vand.u32 %v1732, 65535
        %v1734 = vshra.s32 %v1732, 16
        %v1735 = vcvt.s32.f32 %v1733
        %v1736 = vcvt.s32.f32 %v1734
        %1737 = vmin.xlane.f32.xlu0 %v1736
        %v1738 = vpop.xlane.xlu0 %1737
        %vm1739 = vcmp.eq.f32.partialorder %v1736, %v1738
        %v1740 = vsel %vm1739, %v1735, inf
        %1741 = vmin.xlane.f32.xlu0 %v1740
        %v1742 = vpop.xlane.xlu0 %1741
        %v1743 = vcvt.f32.s32 %v1742
        %v1744 = vcvt.f32.s32 %v1738
        %v1745 = vshll.u32 %v1744, 16
        %v1746 = vadd.s32 %v1745, %v1743
        %v1747 = vsel %vm667, %v1725, 2147483647
        %v1748 = vand.u32 %v1747, 65535
        %v1749 = vshra.s32 %v1747, 16
        %v1750 = vcvt.s32.f32 %v1748
        %v1751 = vcvt.s32.f32 %v1749
        %1752 = vmin.xlane.f32.xlu0 %v1751
        %v1753 = vpop.xlane.xlu0 %1752
        %vm1754 = vcmp.eq.f32.partialorder %v1751, %v1753
        %v1755 = vsel %vm1754, %v1750, inf
        %1756 = vmin.xlane.f32.xlu0 %v1755
        %v1757 = vpop.xlane.xlu0 %1756
        %v1758 = vcvt.f32.s32 %v1757
        %v1759 = vcvt.f32.s32 %v1753
        %v1760 = vshll.u32 %v1759, 16
        %v1761 = vadd.s32 %v1760, %v1758
        %v1762 = vsel %vm667, %v1726, 2147483647
        %v1763 = vand.u32 %v1762, 65535
        %v1764 = vshra.s32 %v1762, 16
        %v1765 = vcvt.s32.f32 %v1763
        %v1766 = vcvt.s32.f32 %v1764
        %1767 = vmin.xlane.f32.xlu0 %v1766
        %v1768 = vpop.xlane.xlu0 %1767
        %vm1769 = vcmp.eq.f32.partialorder %v1766, %v1768
        %v1770 = vsel %vm1769, %v1765, inf
        %1771 = vmin.xlane.f32.xlu0 %v1770
        %v1772 = vpop.xlane.xlu0 %1771
        %v1773 = vcvt.f32.s32 %v1772
        %v1774 = vcvt.f32.s32 %v1768
        %v1775 = vshll.u32 %v1774, 16
        %v1776 = vadd.s32 %v1775, %v1773
        %v1777 = vsel %vm667, %v1727, 2147483647
        %v1778 = vand.u32 %v1777, 65535
        %v1779 = vshra.s32 %v1777, 16
        %v1780 = vcvt.s32.f32 %v1778
        %v1781 = vcvt.s32.f32 %v1779
        %1782 = vmin.xlane.f32.xlu0 %v1781
        %v1783 = vpop.xlane.xlu0 %1782
        %vm1784 = vcmp.eq.f32.partialorder %v1781, %v1783
        %v1785 = vsel %vm1784, %v1780, inf
        %1786 = vmin.xlane.f32.xlu0 %v1785
        %v1787 = vpop.xlane.xlu0 %1786
        %v1788 = vcvt.f32.s32 %v1787
        %v1789 = vcvt.f32.s32 %v1783
        %v1790 = vshll.u32 %v1789, 16
        %v1791 = vadd.s32 %v1790, %v1788
        %v1792 = vsel %vm667, %v1728, 2147483647
        %v1793 = vand.u32 %v1792, 65535
        %v1794 = vshra.s32 %v1792, 16
        %v1795 = vcvt.s32.f32 %v1793
        %v1796 = vcvt.s32.f32 %v1794
        %1797 = vmin.xlane.f32.xlu0 %v1796
        %v1798 = vpop.xlane.xlu0 %1797
        %vm1799 = vcmp.eq.f32.partialorder %v1796, %v1798
        %v1800 = vsel %vm1799, %v1795, inf
        %1801 = vmin.xlane.f32.xlu0 %v1800
        %v1802 = vpop.xlane.xlu0 %1801
        %v1803 = vcvt.f32.s32 %v1802
        %v1804 = vcvt.f32.s32 %v1798
        %v1805 = vshll.u32 %v1804, 16
        %v1806 = vadd.s32 %v1805, %v1803
        %v1807 = vsel %vm667, %v1729, 2147483647
        %v1808 = vand.u32 %v1807, 65535
        %v1809 = vshra.s32 %v1807, 16
        %v1810 = vcvt.s32.f32 %v1808
        %v1811 = vcvt.s32.f32 %v1809
        %1812 = vmin.xlane.f32.xlu0 %v1811
        %v1813 = vpop.xlane.xlu0 %1812
        %vm1814 = vcmp.eq.f32.partialorder %v1811, %v1813
        %v1815 = vsel %vm1814, %v1810, inf
        %1816 = vmin.xlane.f32.xlu0 %v1815
        %v1817 = vpop.xlane.xlu0 %1816
        %v1818 = vcvt.f32.s32 %v1817
        %v1819 = vcvt.f32.s32 %v1813
        %v1820 = vshll.u32 %v1819, 16
        %v1821 = vadd.s32 %v1820, %v1818
        %v1822 = vsel %vm667, %v1730, 2147483647
        %v1823 = vand.u32 %v1822, 65535
        %v1824 = vshra.s32 %v1822, 16
        %v1825 = vcvt.s32.f32 %v1823
        %v1826 = vcvt.s32.f32 %v1824
        %1827 = vmin.xlane.f32.xlu0 %v1826
        %v1828 = vpop.xlane.xlu0 %1827
        %vm1829 = vcmp.eq.f32.partialorder %v1826, %v1828
        %v1830 = vsel %vm1829, %v1825, inf
        %1831 = vmin.xlane.f32.xlu0 %v1830
        %v1832 = vpop.xlane.xlu0 %1831
        %v1833 = vcvt.f32.s32 %v1832
        %v1834 = vcvt.f32.s32 %v1828
        %v1835 = vshll.u32 %v1834, 16
        %v1836 = vadd.s32 %v1835, %v1833
        %v1837 = vsel %vm667, %v1731, 2147483647
        %v1838 = vand.u32 %v1837, 65535
        %v1839 = vshra.s32 %v1837, 16
        %v1840 = vcvt.s32.f32 %v1838
        %v1841 = vcvt.s32.f32 %v1839
        %1842 = vmin.xlane.f32.xlu0 %v1841
        %v1843 = vpop.xlane.xlu0 %1842
        %vm1844 = vcmp.eq.f32.partialorder %v1841, %v1843
        %v1845 = vsel %vm1844, %v1840, inf
        %1846 = vmin.xlane.f32.xlu0 %v1845
        %v1847 = vpop.xlane.xlu0 %1846
        %v1848 = vcvt.f32.s32 %v1847
        %v1849 = vcvt.f32.s32 %v1843
        %v1850 = vshll.u32 %v1849, 16
        %v1851 = vadd.s32 %v1850, %v1848
        %vm1852 = vcmp.eq.s32.totalorder %v1724, %v1746
        %vm1853 = vcmp.eq.s32.totalorder %v1725, %v1761
        %vm1854 = vcmp.eq.s32.totalorder %v1726, %v1776
        %vm1855 = vcmp.eq.s32.totalorder %v1727, %v1791
        %vm1856 = vcmp.eq.s32.totalorder %v1728, %v1806
        %vm1857 = vcmp.eq.s32.totalorder %v1729, %v1821
        %vm1858 = vcmp.eq.s32.totalorder %v1730, %v1836
        %vm1859 = vcmp.eq.s32.totalorder %v1731, %v1851
        %v1860 = vsel %vm1852, %v633, 0.0
        %v1861 = vsel %vm1853, %v634, 0.0
        %v1862 = vsel %vm1854, %v635, 0.0
        %v1863 = vsel %vm1855, %v636, 0.0
        %v1864 = vsel %vm1856, %v637, 0.0
        %v1865 = vsel %vm1857, %v638, 0.0
        %v1866 = vsel %vm1858, %v639, 0.0
        %v1867 = vsel %vm1859, %v640, 0.0
        %v1868 = vadd.f32 %v1716, %v1860
        %v1869 = vadd.f32 %v1717, %v1861
        %v1870 = vadd.f32 %v1718, %v1862
        %v1871 = vadd.f32 %v1719, %v1863
        %v1872 = vadd.f32 %v1720, %v1864
        %v1873 = vadd.f32 %v1721, %v1865
        %v1874 = vadd.f32 %v1722, %v1866
        %v1875 = vadd.f32 %v1723, %v1867
        %v1876 = vsel %vm667, %v1868, 0.0
        %1877 = vadd.xlane.f32.xlu0 %v1876
        %v1878 = vpop.xlane.xlu0 %1877
        %v1879 = vsel %vm667, %v1869, 0.0
        %1880 = vadd.xlane.f32.xlu0 %v1879
        %v1881 = vpop.xlane.xlu0 %1880
        %v1882 = vsel %vm667, %v1870, 0.0
        %1883 = vadd.xlane.f32.xlu0 %v1882
        %v1884 = vpop.xlane.xlu0 %1883
        %v1885 = vsel %vm667, %v1871, 0.0
        %1886 = vadd.xlane.f32.xlu0 %v1885
        %v1887 = vpop.xlane.xlu0 %1886
        %v1888 = vsel %vm667, %v1872, 0.0
        %1889 = vadd.xlane.f32.xlu0 %v1888
        %v1890 = vpop.xlane.xlu0 %1889
        %v1891 = vsel %vm667, %v1873, 0.0
        %1892 = vadd.xlane.f32.xlu0 %v1891
        %v1893 = vpop.xlane.xlu0 %1892
        %v1894 = vsel %vm667, %v1874, 0.0
        %1895 = vadd.xlane.f32.xlu0 %v1894
        %v1896 = vpop.xlane.xlu0 %1895
        %v1897 = vsel %vm667, %v1875, 0.0
        %1898 = vadd.xlane.f32.xlu0 %v1897
        %v1899 = vpop.xlane.xlu0 %1898
        %v1900 = vrcp.pop %v1878
        %v1901 = vrcp.pop %v1881
        %v1902 = vrcp.pop %v1884
        %v1903 = vrcp.pop %v1887
        %v1904 = vrcp.pop %v1890
        %v1905 = vrcp.pop %v1893
        %v1906 = vrcp.pop %v1896
        %v1907 = vrcp.pop %v1899
        %v1908 = vmul.f32 %v1868, %v1900
        %v1909 = vmul.f32 %v1869, %v1901
        %v1910 = vmul.f32 %v1870, %v1902
        %v1911 = vmul.f32 %v1871, %v1903
        %v1912 = vmul.f32 %v1872, %v1904
        %v1913 = vmul.f32 %v1873, %v1905
        %v1914 = vmul.f32 %v1874, %v1906
        %v1915 = vmul.f32 %v1875, %v1907
        %v1916 = vpack.c.bf16 %v1909, %v1908
        %v1917 = vpack.c.bf16 %v1911, %v1910
        %v1918 = vpack.c.bf16 %v1913, %v1912
        %v1919 = vpack.c.bf16 %v1915, %v1914
        %v1920 = vld [vmem:[%s423] sm:$0xff]
        %v1921 = vld [vmem:[%s423 + $0x8] sm:$0xff]
        %v1922 = vld [vmem:[%s423 + $0x10] sm:$0xff]
        %v1923 = vld [vmem:[%s423 + $0x18] sm:$0xff]
        %v1924 = vpack.c.bf16 %v1921, %v1920
        %v1925 = vpack.c.bf16 %v1923, %v1922
        %v1927 = vsel %vm667, %v1916, 0
        %v1930 = vsel %vm667, %v1917, 0
        %v1933 = vsel %vm667, %v1918, 0
        %v1936 = vsel %vm667, %v1919, 0
        %1938 = vmatprep.subr.bf16.mxu0 0
        %1939 = vmatpush1.bf16.msra.mxu0 0
        %1940 = vmatprep.subr.bf16.mxu0 0
        %1941 = vmatpush1.bf16.msra.mxu0 0
        %1942 = vmatprep.subr.bf16.mxu0 0
        %1943 = vmatpush1.bf16.msra.mxu0 0
        %1944 = vmatprep.subr.bf16.mxu0 0
        %1945 = vmatpush1.bf16.msra.mxu0 0
        %1946 = vmatprep.subr.bf16.mxu0 0
        %1947 = vmatpush1.bf16.msra.mxu0 0
        %1948 = vmatprep.subr.bf16.mxu0 0
        %1949 = vmatpush1.bf16.msra.mxu0 0
        %1950 = vmatprep.subr.bf16.mxu0 0
        %1951 = vmatpush1.bf16.msra.mxu0 %v1925
        %1952 = vmatprep.subr.bf16.mxu0 0
        %1953 = vmatpush1.bf16.msra.mxu0 %v1924
        %1954 = vmatprep.subr.bf16.mxu0 0
        %1955 = vmatpush2.bf16.msra.mxu0 0
        %1956 = vmatprep.subr.bf16.mxu0 0
        %1957 = vmatpush2.bf16.msra.mxu0 0
        %1958 = vmatprep.subr.bf16.mxu0 0
        %1959 = vmatpush2.bf16.msra.mxu0 0
        %1960 = vmatprep.subr.bf16.mxu0 0
        %1961 = vmatpush2.bf16.msra.mxu0 0
        %1962 = vmatprep.subr.bf16.mxu0 0
        %1963 = vmatpush2.bf16.msra.mxu0 0
        %1964 = vmatprep.subr.bf16.mxu0 0
        %1965 = vmatpush2.bf16.msra.mxu0 0
        %1966 = vmatprep.subr.bf16.mxu0 0
        %1967 = vmatpush2.bf16.msra.mxu0 0
        %1968 = vmatprep.subr.bf16.mxu0 0
        %1969 = vmatpush2.bf16.msra.mxu0 0
        %1970 = vmatprep.mubr.bf16.mxu0 0
        %1971 = vmatmul.mubr.bf16.gmra.mxu0 %v1927
        %v1972 = vpop.f32.mrf.mxu0
        %v1973 = vadd.f32 0.0, %v1972
        %v1974 = vpop.f32.mrf.mxu0
        %v1975 = vpop.f32.mrf.mxu0
        %v1976 = vadd.f32 0.0, %v1975
        %v1977 = vpop.f32.mrf.mxu0
        %1978 = vmatprep.mubr.bf16.mxu0 0
        %1979 = vmatmul.mubr.bf16.gmra.mxu0 %v1930
        %v1980 = vpop.f32.mrf.mxu0
        %v1981 = vadd.f32 0.0, %v1980
        %v1982 = vpop.f32.mrf.mxu0
        %v1983 = vpop.f32.mrf.mxu0
        %v1984 = vadd.f32 0.0, %v1983
        %v1985 = vpop.f32.mrf.mxu0
        %1986 = vmatprep.mubr.bf16.mxu0 0
        %1987 = vmatmul.mubr.bf16.gmra.mxu0 %v1933
        %v1988 = vpop.f32.mrf.mxu0
        %v1989 = vadd.f32 0.0, %v1988
        %v1990 = vpop.f32.mrf.mxu0
        %v1991 = vpop.f32.mrf.mxu0
        %v1992 = vadd.f32 0.0, %v1991
        %v1993 = vpop.f32.mrf.mxu0
        %1994 = vmatprep.mubr.bf16.mxu0 0
        %1995 = vmatmul.mubr.bf16.gmra.mxu0 %v1936
        %v1996 = vpop.f32.mrf.mxu0
        %v1997 = vadd.f32 0.0, %v1996
        %v1998 = vpop.f32.mrf.mxu0
        %v1999 = vpop.f32.mrf.mxu0
        %v2000 = vadd.f32 0.0, %v1999
        %v2001 = vpop.f32.mrf.mxu0
        %2002 = vdwg.mxu0
        %v2003 = vpack.c.bf16 %v1976, %v1973
        %v2004 = vpack.c.bf16 %v1984, %v1981
        %v2005 = vpack.c.bf16 %v1992, %v1989
        %v2006 = vpack.c.bf16 %v2000, %v1997
        %v2007 = vld [vmem:[%s5] sm:$0xf]
        %v2008 = vld [vmem:[%s432] sm:$0xff]
        %v2009 = vld [vmem:[%s432 + $0x8] sm:$0xff]
        %v2010 = vld [vmem:[%s432 + $0x10] sm:$0xff]
        %v2011 = vld [vmem:[%s432 + $0x18] sm:$0xff]
        %v2012 = vld [vmem:[%s432 + $0x20] sm:$0xff]
        %v2013 = vld [vmem:[%s432 + $0x28] sm:$0xff]
        %v2014 = vld [vmem:[%s432 + $0x30] sm:$0xff]
        %v2015 = vld [vmem:[%s432 + $0x38] sm:$0xff]
        %v2016 = vpack.c.bf16 %v2009, %v2008
        %v2017 = vpack.c.bf16 %v2011, %v2010
        %v2018 = vpack.c.bf16 %v2013, %v2012
        %v2019 = vpack.c.bf16 %v2015, %v2014
        %v2020 = vld [vmem:[%s4] sm:$0xf]
        %vm2021 = vcmask 64512
        %v2023 = vsel %vm2021, %v2016, 0
        %v2026 = vsel %vm2021, %v2017, 0
        %v2029 = vsel %vm2021, %v2018, 0
        %v2032 = vsel %vm2021, %v2019, 0
        %vm2034 = vcmask 1043456
        %v2036 = vsel %vm2034, %v2020, 0
        %2038 = vmatprep.subr.bf16.mxu0 0
        %2039 = vmatpush1.bf16.msra.mxu0 0
        %2040 = vmatprep.subr.bf16.mxu0 0
        %2041 = vmatpush1.bf16.msra.mxu0 0
        %2042 = vmatprep.subr.bf16.mxu0 0
        %2043 = vmatpush1.bf16.msra.mxu0 0
        %2044 = vmatprep.subr.bf16.mxu0 0
        %2045 = vmatpush1.bf16.msra.mxu0 0
        %2046 = vmatprep.subr.bf16.mxu0 0
        %2047 = vmatpush1.bf16.msra.mxu0 0
        %2048 = vmatprep.subr.bf16.mxu0 0
        %2049 = vmatpush1.bf16.msra.mxu0 0
        %2050 = vmatprep.subr.bf16.mxu0 0
        %2051 = vmatpush1.bf16.msra.mxu0 0
        %2052 = vmatprep.subr.bf16.mxu0 0
        %2053 = vmatpush1.bf16.msra.mxu0 %v2036
        %2054 = vmatprep.subr.bf16.mxu0 0
        %2055 = vmatpush2.bf16.msra.mxu0 0
        %2056 = vmatprep.subr.bf16.mxu0 0
        %2057 = vmatpush2.bf16.msra.mxu0 0
        %2058 = vmatprep.subr.bf16.mxu0 0
        %2059 = vmatpush2.bf16.msra.mxu0 0
        %2060 = vmatprep.subr.bf16.mxu0 0
        %2061 = vmatpush2.bf16.msra.mxu0 0
        %2062 = vmatprep.subr.bf16.mxu0 0
        %2063 = vmatpush2.bf16.msra.mxu0 0
        %2064 = vmatprep.subr.bf16.mxu0 0
        %2065 = vmatpush2.bf16.msra.mxu0 0
        %2066 = vmatprep.subr.bf16.mxu0 0
        %2067 = vmatpush2.bf16.msra.mxu0 0
        %2068 = vmatprep.subr.bf16.mxu0 0
        %2069 = vmatpush2.bf16.msra.mxu0 0
        %2070 = vmatprep.mubr.bf16.mxu0 0
        %2071 = vmatmul.mubr.bf16.gmra.mxu0 %v2023
        %v2072 = vpop.f32.mrf.mxu0
        %v2073 = vadd.f32 0.0, %v2072
        %v2074 = vpop.f32.mrf.mxu0
        %v2075 = vpop.f32.mrf.mxu0
        %v2076 = vadd.f32 0.0, %v2075
        %v2077 = vpop.f32.mrf.mxu0
        %2078 = vmatprep.mubr.bf16.mxu0 0
        %2079 = vmatmul.mubr.bf16.gmra.mxu0 %v2026
        %v2080 = vpop.f32.mrf.mxu0
        %v2081 = vadd.f32 0.0, %v2080
        %v2082 = vpop.f32.mrf.mxu0
        %v2083 = vpop.f32.mrf.mxu0
        %v2084 = vadd.f32 0.0, %v2083
        %v2085 = vpop.f32.mrf.mxu0
        %2086 = vmatprep.mubr.bf16.mxu0 0
        %2087 = vmatmul.mubr.bf16.gmra.mxu0 %v2029
        %v2088 = vpop.f32.mrf.mxu0
        %v2089 = vadd.f32 0.0, %v2088
        %v2090 = vpop.f32.mrf.mxu0
        %v2091 = vpop.f32.mrf.mxu0
        %v2092 = vadd.f32 0.0, %v2091
        %v2093 = vpop.f32.mrf.mxu0
        %2094 = vmatprep.mubr.bf16.mxu0 0
        %2095 = vmatmul.mubr.bf16.gmra.mxu0 %v2032
        %v2096 = vpop.f32.mrf.mxu0
        %v2097 = vadd.f32 0.0, %v2096
        %v2098 = vpop.f32.mrf.mxu0
        %v2099 = vpop.f32.mrf.mxu0
        %v2100 = vadd.f32 0.0, %v2099
        %v2101 = vpop.f32.mrf.mxu0
        %2102 = vdwg.mxu0
        %v2104 = vsel %vm2021, %v2003, 0
        %v2107 = vsel %vm2021, %v2004, 0
        %v2110 = vsel %vm2021, %v2005, 0
        %v2113 = vsel %vm2021, %v2006, 0
        %v2116 = vsel %vm2034, %v2007, 0
        %2118 = vmatprep.subr.bf16.mxu0 0
        %2119 = vmatpush1.bf16.msra.mxu0 0
        %2120 = vmatprep.subr.bf16.mxu0 0
        %2121 = vmatpush1.bf16.msra.mxu0 0
        %2122 = vmatprep.subr.bf16.mxu0 0
        %2123 = vmatpush1.bf16.msra.mxu0 0
        %2124 = vmatprep.subr.bf16.mxu0 0
        %2125 = vmatpush1.bf16.msra.mxu0 0
        %2126 = vmatprep.subr.bf16.mxu0 0
        %2127 = vmatpush1.bf16.msra.mxu0 0
        %2128 = vmatprep.subr.bf16.mxu0 0
        %2129 = vmatpush1.bf16.msra.mxu0 0
        %2130 = vmatprep.subr.bf16.mxu0 0
        %2131 = vmatpush1.bf16.msra.mxu0 0
        %2132 = vmatprep.subr.bf16.mxu0 0
        %2133 = vmatpush1.bf16.msra.mxu0 %v2116
        %2134 = vmatprep.subr.bf16.mxu0 0
        %2135 = vmatpush2.bf16.msra.mxu0 0
        %2136 = vmatprep.subr.bf16.mxu0 0
        %2137 = vmatpush2.bf16.msra.mxu0 0
        %2138 = vmatprep.subr.bf16.mxu0 0
        %2139 = vmatpush2.bf16.msra.mxu0 0
        %2140 = vmatprep.subr.bf16.mxu0 0
        %2141 = vmatpush2.bf16.msra.mxu0 0
        %2142 = vmatprep.subr.bf16.mxu0 0
        %2143 = vmatpush2.bf16.msra.mxu0 0
        %2144 = vmatprep.subr.bf16.mxu0 0
        %2145 = vmatpush2.bf16.msra.mxu0 0
        %2146 = vmatprep.subr.bf16.mxu0 0
        %2147 = vmatpush2.bf16.msra.mxu0 0
        %2148 = vmatprep.subr.bf16.mxu0 0
        %2149 = vmatpush2.bf16.msra.mxu0 0
        %2150 = vmatprep.mubr.bf16.mxu0 0
        %2151 = vmatmul.mubr.bf16.gmra.mxu0 %v2104
        %v2152 = vpop.f32.mrf.mxu0
        %v2153 = vadd.f32 %v2073, %v2152
        %v2154 = vpop.f32.mrf.mxu0
        %v2155 = vpop.f32.mrf.mxu0
        %v2156 = vadd.f32 %v2076, %v2155
        %v2157 = vpop.f32.mrf.mxu0
        %2158 = vmatprep.mubr.bf16.mxu0 0
        %2159 = vmatmul.mubr.bf16.gmra.mxu0 %v2107
        %v2160 = vpop.f32.mrf.mxu0
        %v2161 = vadd.f32 %v2081, %v2160
        %v2162 = vpop.f32.mrf.mxu0
        %v2163 = vpop.f32.mrf.mxu0
        %v2164 = vadd.f32 %v2084, %v2163
        %v2165 = vpop.f32.mrf.mxu0
        %2166 = vmatprep.mubr.bf16.mxu0 0
        %2167 = vmatmul.mubr.bf16.gmra.mxu0 %v2110
        %v2168 = vpop.f32.mrf.mxu0
        %v2169 = vadd.f32 %v2089, %v2168
        %v2170 = vpop.f32.mrf.mxu0
        %v2171 = vpop.f32.mrf.mxu0
        %v2172 = vadd.f32 %v2092, %v2171
        %v2173 = vpop.f32.mrf.mxu0
        %2174 = vmatprep.mubr.bf16.mxu0 0
        %2175 = vmatmul.mubr.bf16.gmra.mxu0 %v2113
        %v2176 = vpop.f32.mrf.mxu0
        %v2177 = vadd.f32 %v2097, %v2176
        %v2178 = vpop.f32.mrf.mxu0
        %v2179 = vpop.f32.mrf.mxu0
        %v2180 = vadd.f32 %v2100, %v2179
        %v2181 = vpop.f32.mrf.mxu0
        %2182 = vdwg.mxu0
        %v2183 = vld [vmem:[%s6] sm:$0x1]
        %v2185 = vlaneseq
        %v2186 = vshrl.u32 %v2185, 7
        %v2187 = vsub.s32 0, %v2186
        %v2188 = vrot.slane %v2183, %v2187
        %v2190 = vadd.f32 %v2153, %v2188
        %v2191 = vadd.f32 %v2156, %v2188
        %v2192 = vadd.f32 %v2161, %v2188
        %v2193 = vadd.f32 %v2164, %v2188
        %v2194 = vadd.f32 %v2169, %v2188
        %v2195 = vadd.f32 %v2172, %v2188
        %v2196 = vadd.f32 %v2177, %v2188
        %v2197 = vadd.f32 %v2180, %v2188
        %v2198 = vmax.f32 %v2190, 0.0
        %v2199 = vmax.f32 %v2191, 0.0
        %v2200 = vmax.f32 %v2192, 0.0
        %v2201 = vmax.f32 %v2193, 0.0
        %v2202 = vmax.f32 %v2194, 0.0
        %v2203 = vmax.f32 %v2195, 0.0
        %v2204 = vmax.f32 %v2196, 0.0
        %v2205 = vmax.f32 %v2197, 0.0
        %v2206 = vpack.c.bf16 %v2199, %v2198
        %v2207 = vpack.c.bf16 %v2201, %v2200
        %v2208 = vpack.c.bf16 %v2203, %v2202
        %v2209 = vpack.c.bf16 %v2205, %v2204
        %v2210 = vld [vmem:[%s7] sm:$0xf]
        %v2211 = vld [vmem:[%s7 + $0x4] sm:$0xf]
        %v2212 = vld [vmem:[%s7 + $0x8] sm:$0xf]
        %v2213 = vld [vmem:[%s7 + $0xc] sm:$0xf]
        %v2214 = vld [vmem:[%s7 + $0x10] sm:$0xf]
        %v2215 = vld [vmem:[%s7 + $0x14] sm:$0xf]
        %v2216 = vld [vmem:[%s7 + $0x18] sm:$0xf]
        %v2217 = vld [vmem:[%s7 + $0x1c] sm:$0xf]
        %v2218 = vld [vmem:[%s7 + $0x20] sm:$0xf]
        %v2219 = vld [vmem:[%s7 + $0x24] sm:$0xf]
        %v2220 = vld [vmem:[%s7 + $0x28] sm:$0xf]
        %v2221 = vld [vmem:[%s7 + $0x2c] sm:$0xf]
        %v2222 = vld [vmem:[%s7 + $0x30] sm:$0xf]
        %v2223 = vld [vmem:[%s7 + $0x34] sm:$0xf]
        %v2224 = vld [vmem:[%s7 + $0x38] sm:$0xf]
        %v2225 = vld [vmem:[%s7 + $0x3c] sm:$0xf]
        %v2226 = vld [vmem:[%s8] sm:$0x1]
        %v2228 = vlaneseq
        %v2229 = vshrl.u32 %v2228, 7
        %v2230 = vsub.s32 0, %v2229
        %v2231 = vrot.slane %v2226, %v2230
        %v2249 = vunpack.c.l.b16 %v2210
        %v2250 = vunpack.c.l.b16 %v2211
        %v2251 = vunpack.c.l.b16 %v2212
        %v2252 = vunpack.c.l.b16 %v2213
        %v2253 = vunpack.c.l.b16 %v2214
        %v2254 = vunpack.c.l.b16 %v2215
        %v2255 = vunpack.c.l.b16 %v2216
        %v2256 = vunpack.c.l.b16 %v2217
        %v2257 = vunpack.c.l.b16 %v2218
        %v2258 = vunpack.c.l.b16 %v2219
        %v2259 = vunpack.c.l.b16 %v2220
        %v2260 = vunpack.c.l.b16 %v2221
        %v2261 = vunpack.c.l.b16 %v2222
        %v2262 = vunpack.c.l.b16 %v2223
        %v2263 = vunpack.c.l.b16 %v2224
        %v2264 = vunpack.c.l.b16 %v2225
        %v2265 = vpack.c.b16 %v2250, %v2249
        %v2266 = vpack.c.b16 %v2252, %v2251
        %v2267 = vpack.c.b16 %v2254, %v2253
        %v2268 = vpack.c.b16 %v2256, %v2255
        %v2269 = vpack.c.b16 %v2258, %v2257
        %v2270 = vpack.c.b16 %v2260, %v2259
        %v2271 = vpack.c.b16 %v2262, %v2261
        %v2272 = vpack.c.b16 %v2264, %v2263
        %2281 = vmatprep.subr.bf16.mxu0 0
        %2282 = vmatpush1.bf16.msra.mxu0 %v2272
        %2283 = vmatprep.subr.bf16.mxu0 0
        %2284 = vmatpush1.bf16.msra.mxu0 %v2271
        %2285 = vmatprep.subr.bf16.mxu0 0
        %2286 = vmatpush1.bf16.msra.mxu0 %v2270
        %2287 = vmatprep.subr.bf16.mxu0 0
        %2288 = vmatpush1.bf16.msra.mxu0 %v2269
        %2289 = vmatprep.subr.bf16.mxu0 0
        %2290 = vmatpush1.bf16.msra.mxu0 %v2268
        %2291 = vmatprep.subr.bf16.mxu0 0
        %2292 = vmatpush1.bf16.msra.mxu0 %v2267
        %2293 = vmatprep.subr.bf16.mxu0 0
        %2294 = vmatpush1.bf16.msra.mxu0 %v2266
        %2295 = vmatprep.subr.bf16.mxu0 0
        %2296 = vmatpush1.bf16.msra.mxu0 %v2265
        %2297 = vmatprep.subr.bf16.mxu0 0
        %2298 = vmatpush2.bf16.msra.mxu0 0
        %2299 = vmatprep.subr.bf16.mxu0 0
        %2300 = vmatpush2.bf16.msra.mxu0 0
        %2301 = vmatprep.subr.bf16.mxu0 0
        %2302 = vmatpush2.bf16.msra.mxu0 0
        %2303 = vmatprep.subr.bf16.mxu0 0
        %2304 = vmatpush2.bf16.msra.mxu0 0
        %2305 = vmatprep.subr.bf16.mxu0 0
        %2306 = vmatpush2.bf16.msra.mxu0 0
        %2307 = vmatprep.subr.bf16.mxu0 0
        %2308 = vmatpush2.bf16.msra.mxu0 0
        %2309 = vmatprep.subr.bf16.mxu0 0
        %2310 = vmatpush2.bf16.msra.mxu0 0
        %2311 = vmatprep.subr.bf16.mxu0 0
        %2312 = vmatpush2.bf16.msra.mxu0 0
        %2313 = vmatprep.mubr.bf16.mxu0 0
        %2314 = vmatmul.mubr.bf16.gmra.mxu0 %v2206
        %v2315 = vpop.f32.mrf.mxu0
        %v2316 = vadd.f32 %v2231, %v2315
        %v2317 = vpop.f32.mrf.mxu0
        %v2318 = vpop.f32.mrf.mxu0
        %v2319 = vadd.f32 %v2231, %v2318
        %v2320 = vpop.f32.mrf.mxu0
        %2321 = vmatprep.mubr.bf16.mxu0 0
        %2322 = vmatmul.mubr.bf16.gmra.mxu0 %v2207
        %v2323 = vpop.f32.mrf.mxu0
        %v2324 = vadd.f32 %v2231, %v2323
        %v2325 = vpop.f32.mrf.mxu0
        %v2326 = vpop.f32.mrf.mxu0
        %v2327 = vadd.f32 %v2231, %v2326
        %v2328 = vpop.f32.mrf.mxu0
        %2329 = vmatprep.mubr.bf16.mxu0 0
        %2330 = vmatmul.mubr.bf16.gmra.mxu0 %v2208
        %v2331 = vpop.f32.mrf.mxu0
        %v2332 = vadd.f32 %v2231, %v2331
        %v2333 = vpop.f32.mrf.mxu0
        %v2334 = vpop.f32.mrf.mxu0
        %v2335 = vadd.f32 %v2231, %v2334
        %v2336 = vpop.f32.mrf.mxu0
        %2337 = vmatprep.mubr.bf16.mxu0 0
        %2338 = vmatmul.mubr.bf16.gmra.mxu0 %v2209
        %v2339 = vpop.f32.mrf.mxu0
        %v2340 = vadd.f32 %v2231, %v2339
        %v2341 = vpop.f32.mrf.mxu0
        %v2342 = vpop.f32.mrf.mxu0
        %v2343 = vadd.f32 %v2231, %v2342
        %v2344 = vpop.f32.mrf.mxu0
        %2345 = vdwg.mxu0
        %v2346 = vmax.f32 %v2316, 0.0
        %v2347 = vmax.f32 %v2319, 0.0
        %v2348 = vmax.f32 %v2324, 0.0
        %v2349 = vmax.f32 %v2327, 0.0
        %v2350 = vmax.f32 %v2332, 0.0
        %v2351 = vmax.f32 %v2335, 0.0
        %v2352 = vmax.f32 %v2340, 0.0
        %v2353 = vmax.f32 %v2343, 0.0
        %2354 = vst [vmem:[%s404] sm:$0xff] %v2346
        %2355 = vst [vmem:[%s404 + $0x8] sm:$0xff] %v2347
        %2356 = vst [vmem:[%s404 + $0x10] sm:$0xff] %v2348
        %2357 = vst [vmem:[%s404 + $0x18] sm:$0xff] %v2349
        %2358 = vst [vmem:[%s404 + $0x20] sm:$0xff] %v2350
        %2359 = vst [vmem:[%s404 + $0x28] sm:$0xff] %v2351
        %2360 = vst [vmem:[%s404 + $0x30] sm:$0xff] %v2352
        %2361 = vst [vmem:[%s404 + $0x38] sm:$0xff] %v2353
        %s2362 = sand.u32 %s258, 1
        %s2363 = scalar_lea.sflag [#allocation3], %s2362
        %s2364 = sand.u32 %s258, 1
        %s2365 = smul.addr %s2364, 64
        %s2366 = scalar_lea.vmem [#allocation2], %s2365
        // Predicated region
        $region57: #{tpu_custom_call.1} parent=55 // pred_check
          %p2367 = pneg %p268
        $region58: #{tpu_custom_call.1} parent=55 // pred_check_branch
          %2369 = sbr.rel (%p2367) target = $region60
        $region59: #{tpu_custom_call.1} parent=55 // pred_region
          %s2370 = smul.u32 8, %s28
          %s2372 = ssub.s32 1024, 1024
          %2373 = vsyncadd %s2363, %s2372
          %s2374 = smul.addr %s27, 8
          %s2375 = sadd.s32 %s2370, %s2374
          %s2376 = smul.addr %s2375, 128
          %s2377 = scalar_lea.hbm %s9, %s2376
          %s2378 = sshll.u32 %s2366, 4
          %s2379 = int_to_ptr.vmem [resolvable:$true] %s2378
          %2384 = dma.vmem_to_hbm [thread:$0]  %s2379, 1024, %s2377, %s2363, 128, 128, 8
        $region60: #{tpu_custom_call.1} parent=55 // pred_fallthru
          _
      $region56: #{tpu_custom_call.1} parent=5 // pred_fallthru
        _
      %p2385 = scmp.le.s32.totalorder 2, %s18
      // Predicated region
      $region61: #{tpu_custom_call.1} parent=5 // pred_check
        %p2386 = pneg %p2385
      $region62: #{tpu_custom_call.1} parent=5 // pred_check_branch
        %2388 = sbr.rel (%p2386) target = $region64
      $region63: #{tpu_custom_call.1} parent=5 // pred_region
        %s2389 = ssub.s32 %s18, 2
        // Predicated region
        $region65: #{tpu_custom_call.1} parent=63 // pred_check
          %p2390 = pneg %p274
        $region66: #{tpu_custom_call.1} parent=63 // pred_check_branch
          %2392 = sbr.rel (%p2390) target = $region68
        $region67: #{tpu_custom_call.1} parent=63 // pred_region
          %s2393 = sand.u32 %s259, 1
          %s2394 = scalar_lea.sflag [#allocation3], %s2393
          %s2395 = sand.u32 %s259, 1
          %s2396 = smul.addr %s2395, 64
          %s2397 = scalar_lea.vmem [#allocation2], %s2396
          %2398 = dma.done %s2394, 1024
        $region68: #{tpu_custom_call.1} parent=63 // pred_fallthru
          _
      $region64: #{tpu_custom_call.1} parent=5 // pred_fallthru
        _
    $region6: #{tpu_custom_call.1} parent=1 // loop_footer
      %s22 = sadd.s32 1, %s18
    $region7: #{tpu_custom_call.1} parent=1 // loop_footer_branch
      %17 = sbr.rel target = $region3
    $region8: #{tpu_custom_call.1} parent=1 // loop_exit
      _
    %2399 = vsyncpa [#allocation3], 1
    %s2400 = scalar_lea.sflag [#allocation3], 1
    %2401 = vsyncpa %s2400, 1

</llo_original>
